<compile_context>
chip_gen: v7x
topology: tpu7x:2x2x1
jax: 0.10.0
libtpu: 0.0.40
codegen_flags: <defaults>
</compile_context>

<pallas_src>
import functools

import jax
import jax.numpy as jnp
from jax.experimental import pallas as pl
from jax.experimental.pallas import tpu as pltpu

BN_EPS = 1e-5
MAX_TILE_M = 512      # big row tiles -> memory-bound kernels near the HBM roofline
MAX_TILE_K = 768      # bound matmul VMEM footprint (v7x has only 64 MiB per TC)


def _round_up(x, m):
    return -(-x // m) * m


# ----------------------------- Pallas kernels ------------------------------

def _conv_mm_bn_kernel(a_ref, b_ref, y_ref, psum_ref, psq_ref):
    """(tm, tk)bf16 x (tk, Cout)bf16 matmul accumulated into the resident f32
    output block; at the last K step also emit BN sum / sum-of-squares partials."""
    k = pl.program_id(1)

    @pl.when(k == 0)
    def _():
        y_ref[...] = jnp.zeros_like(y_ref)

    y_ref[...] += jnp.dot(a_ref[...], b_ref[...],
                          preferred_element_type=jnp.float32)

    @pl.when(k == pl.num_programs(1) - 1)
    def _():
        y = y_ref[...]
        s = jnp.sum(y, axis=0, keepdims=True)          # (1, Cout)
        q = jnp.sum(y * y, axis=0, keepdims=True)      # (1, Cout)
        psum_ref[...] = jnp.broadcast_to(s, psum_ref.shape)   # (8, Cout)
        psq_ref[...] = jnp.broadcast_to(q, psq_ref.shape)


def _bn_act_kernel(y_ref, scale_ref, shift_ref, o_ref, *, relu):
    o = y_ref[...] * scale_ref[...] + shift_ref[...]
    if relu:
        o = jnp.maximum(o, 0.0)
    o_ref[...] = o


def _bn_res_relu_kernel(y_ref, scale_ref, shift_ref, res_ref, o_ref):
    o = y_ref[...] * scale_ref[...] + shift_ref[...] + res_ref[...]
    o_ref[...] = jnp.maximum(o, 0.0)


# ----------------------------- tiling helpers ------------------------------

def _m_tiling(M):
    if M >= MAX_TILE_M:
        return _round_up(M, MAX_TILE_M), MAX_TILE_M
    Mp = _round_up(M, 8)
    return Mp, Mp


def _k_tiling(K):
    if K <= 1024:
        return K, K                       # single K step, full-extent block
    Kp = _round_up(K, 128)
    nd = Kp // 128
    tk = 128
    for d in range(1, nd + 1):
        if nd % d == 0 and 128 * d <= MAX_TILE_K:
            tk = 128 * d
    return Kp, tk


def _pick_tile(M):
    for t in (512, 256, 128, 64, 32, 16, 8):
        if M % t == 0:
            return t
    return M


# ----------------------------- kernel wrappers ------------------------------

def conv_matmul_bn(a_bf16, b_bf16, tm, tk):
    """a: (Mp, Kp) bf16, b: (Kp, Cout) bf16 -> y (Mp, Cout) f32 plus per-row-block
    BN sum / sum-of-squares partials (8 identical sublanes per block)."""
    Mp, Kp = a_bf16.shape
    _, Cout = b_bf16.shape
    nm, nk = Mp // tm, Kp // tk
    return pl.pallas_call(
        _conv_mm_bn_kernel,
        out_shape=(jax.ShapeDtypeStruct((Mp, Cout), jnp.float32),
                   jax.ShapeDtypeStruct((8 * nm, Cout), jnp.float32),
                   jax.ShapeDtypeStruct((8 * nm, Cout), jnp.float32)),
        grid=(nm, nk),
        in_specs=[pl.BlockSpec((tm, tk), lambda i, k: (i, k)),
                  pl.BlockSpec((tk, Cout), lambda i, k: (k, 0))],
        out_specs=(pl.BlockSpec((tm, Cout), lambda i, k: (i, 0)),
                   pl.BlockSpec((8, Cout), lambda i, k: (i, 0)),
                   pl.BlockSpec((8, Cout), lambda i, k: (i, 0))),
        compiler_params=pltpu.CompilerParams(
            dimension_semantics=("parallel", "arbitrary"),
            vmem_limit_bytes=48 * 1024 * 1024),
    )(a_bf16, b_bf16)


def bn_finalize(y, scale, shift, *, relu, residual=None):
    """BN affine [+ residual] [+ ReLU] on (Mp, C) f32, lane-dense when C < 128."""
    Mp, C = y.shape
    f = 1
    if C < 128 and 128 % C == 0 and Mp % ((128 // C) * 8) == 0:
        f = 128 // C                      # fold rows so the last dim is 128 lanes
    m2 = Mp // f
    cw = f * C
    yf = y.reshape(m2, cw)
    sc = jnp.tile(scale.reshape(1, C), (1, f))
    sh = jnp.tile(shift.reshape(1, C), (1, f))
    tm = _pick_tile(m2)
    grid = (m2 // tm,)
    cparams = pltpu.CompilerParams(dimension_semantics=("parallel",))

    if residual is None:
        out = pl.pallas_call(
            functools.partial(_bn_act_kernel, relu=relu),
            out_shape=jax.ShapeDtypeStruct((m2, cw), jnp.float32),
            grid=grid,
            in_specs=[pl.BlockSpec((tm, cw), lambda i: (i, 0)),
                      pl.BlockSpec((1, cw), lambda i: (0, 0)),
                      pl.BlockSpec((1, cw), lambda i: (0, 0))],
            out_specs=pl.BlockSpec((tm, cw), lambda i: (i, 0)),
            compiler_params=cparams,
        )(yf, sc, sh)
    else:
        rf = residual.reshape(m2, cw)
        out = pl.pallas_call(
            _bn_res_relu_kernel,
            out_shape=jax.ShapeDtypeStruct((m2, cw), jnp.float32),
            grid=grid,
            in_specs=[pl.BlockSpec((tm, cw), lambda i: (i, 0)),
                      pl.BlockSpec((1, cw), lambda i: (0, 0)),
                      pl.BlockSpec((1, cw), lambda i: (0, 0)),
                      pl.BlockSpec((tm, cw), lambda i: (i, 0))],
            out_specs=pl.BlockSpec((tm, cw), lambda i: (i, 0)),
            compiler_params=cparams,
        )(yf, sc, sh, rf)
    return out.reshape(Mp, C)


# ----------------------------- glue (im2col / block structure) --------------

def im2col(x_nhwc, ksize, stride, pad):
    """Patches emitted directly in bf16 (native MXU dtype, half the HBM traffic)."""
    N, H, W, C = x_nhwc.shape
    Ho = (H + 2 * pad - ksize) // stride + 1
    Wo = (W + 2 * pad - ksize) // stride + 1
    xb = x_nhwc.astype(jnp.bfloat16)
    xp = jnp.pad(xb, ((0, 0), (pad, pad), (pad, pad), (0, 0)))
    cols = []
    for kh in range(ksize):
        for kw in range(ksize):
            cols.append(xp[:, kh:kh + stride * Ho:stride,
                           kw:kw + stride * Wo:stride, :])
    patches = jnp.concatenate(cols, axis=-1)            # (N, Ho, Wo, k*k*C) bf16
    return patches.reshape(N * Ho * Wo, ksize * ksize * C), (N, Ho, Wo)


def conv_bn(x, w, gamma, beta, *, stride, relu, residual=None):
    """conv (no bias) -> BatchNorm (batch stats) -> [+residual] -> [ReLU]."""
    Cout, Cin, kh, kw = w.shape
    pad = kh // 2
    patches, (N, Ho, Wo) = im2col(x, kh, stride, pad)
    M, K = patches.shape
    wmat = jnp.transpose(w, (2, 3, 1, 0)).reshape(K, Cout).astype(jnp.bfloat16)

    Mp, tm = _m_tiling(M)
    Kp, tk = _k_tiling(K)
    a = patches
    if Mp != M:
        a = jnp.pad(a, ((0, Mp - M), (0, 0)))          # zero rows: inert in matmul/stats
    if Kp != K:
        a = jnp.pad(a, ((0, 0), (0, Kp - K)))
        wmat = jnp.pad(wmat, ((0, Kp - K), (0, 0)))

    y, ps, pq = conv_matmul_bn(a, wmat, tm, tk)

    # Training-mode BN batch statistics (biased variance), f32.
    # NOTE: E[x^2] - E[x]^2 form; fine for normalized-scale activations.
    s = ps.reshape(-1, 8, Cout)[:, 0, :].sum(axis=0)
    q = pq.reshape(-1, 8, Cout)[:, 0, :].sum(axis=0)
    mean = s / M
    var = q / M - mean * mean
    inv = jax.lax.rsqrt(var + BN_EPS)
    scale = gamma * inv
    shift = beta - mean * scale

    res = None
    if residual is not None:
        res = residual.reshape(M, Cout)
        if Mp != M:
            res = jnp.pad(res, ((0, Mp - M), (0, 0)))

    out = bn_finalize(y, scale, shift, relu=relu, residual=res)
    return out[:M].reshape(N, Ho, Wo, Cout)


def basic_block(x_nhwc, p, stride):
    identity = x_nhwc
    out = conv_bn(x_nhwc, p["conv1_w"], p["bn1_g"], p["bn1_b"],
                  stride=stride, relu=True)
    if "ds_w" in p:
        # downsample = conv1x1(stride) + BN, using the block's stride
        identity = conv_bn(x_nhwc, p["ds_w"], p["ds_g"], p["ds_b"],
                           stride=stride, relu=False)
    out = conv_bn(out, p["conv2_w"], p["bn2_g"], p["bn2_b"],
                  stride=1, relu=True, residual=identity)
    return out


def basic_block_forward(x_nchw, params, stride):
    x = jnp.transpose(x_nchw, (0, 2, 3, 1)).astype(jnp.float32)   # NCHW -> NHWC
    y = basic_block(x, params, stride)
    return jnp.transpose(y, (0, 3, 1, 2))                         # NHWC -> NCHW


# ----------------------------- parameter init ------------------------------

def init_block_params(key, in_planes, out_planes, *, downsample):
    keys = jax.random.split(key, 3)

    def conv_w(k, cout, cin, ksz):
        std = (2.0 / (cout * ksz * ksz)) ** 0.5       # kaiming_normal_, fan_out, relu
        return jax.random.normal(k, (cout, cin, ksz, ksz), jnp.float32) * std

    p = {
        "conv1_w": conv_w(keys[0], out_planes, in_planes, 3),
        "bn1_g": jnp.ones((out_planes,), jnp.float32),
        "bn1_b": jnp.zeros((out_planes,), jnp.float32),
        "conv2_w": conv_w(keys[1], out_planes, out_planes, 3),
        "bn2_g": jnp.ones((out_planes,), jnp.float32),
        "bn2_b": jnp.zeros((out_planes,), jnp.float32),
    }
    if downsample:
        p["ds_w"] = conv_w(keys[2], out_planes, in_planes, 1)
        p["ds_g"] = jnp.ones((out_planes,), jnp.float32)
        p["ds_b"] = jnp.zeros((out_planes,), jnp.float32)
    return p


# ----------------------------- main -----------------------------------------

if __name__ == "__main__":
    key = jax.random.PRNGKey(0)
    kx, kp1, kp2 = jax.random.split(key, 3)

    # BasicBlock(64, 64, stride=1) followed by BasicBlock(64, 128, stride=2, downsample)
    p1 = init_block_params(kp1, 64, 64, downsample=False)
    p2 = init_block_params(kp2, 64, 128, downsample=True)
    x = jax.random.normal(kx, (2, 64, 16, 16), jnp.float32)

    fwd1 = jax.jit(lambda inp, prm: basic_block_forward(inp, prm, stride=1))
    fwd2 = jax.jit(lambda inp, prm: basic_block_forward(inp, prm, stride=2))

    y1 = fwd1(x, p1)
    y2 = fwd2(y1, p2)
    y2 = jax.block_until_ready(y2)

    assert y1.shape == (2, 64, 16, 16), y1.shape
    assert y2.shape == (2, 128, 8, 8), y2.shape
    assert bool(jnp.all(jnp.isfinite(y1)))
    assert bool(jnp.all(jnp.isfinite(y2)))
    print("KERNEL_OK")
</pallas_src>

<mosaic_0001>
module attributes {stable_mosaic.version = 11 : i64} {
  func.func @_conv_mm_bn_kernel(%arg0: i32, %arg1: i32, %arg2: memref<512x576xbf16, #tpu.memory_space<vmem>>, %arg3: memref<576x64xbf16, #tpu.memory_space<vmem>>, %arg4: memref<512x64xf32, #tpu.memory_space<vmem>>, %arg5: memref<8x64xf32, #tpu.memory_space<vmem>>, %arg6: memref<8x64xf32, #tpu.memory_space<vmem>>) attributes {dimension_semantics = [#tpu.dimension_semantics<parallel>, #tpu.dimension_semantics<arbitrary>], iteration_bounds = array<i64: 1, 1>, scalar_prefetch = 0 : i64, scratch_operands = 0 : i64, tpu.core_type = #tpu.core_type<tc>, window_params = [{transform_indices = @transform_0, window_bounds = array<i64: 512, 576>}, {transform_indices = @transform_1, window_bounds = array<i64: 576, 64>}, {transform_indices = @transform_2, window_bounds = array<i64: 512, 64>}, {transform_indices = @transform_3, window_bounds = array<i64: 8, 64>}, {transform_indices = @transform_4, window_bounds = array<i64: 8, 64>}]} {
    %c0_i32 = arith.constant 0 : i32
    %0 = arith.cmpi eq, %arg1, %c0_i32 : i32
    %1 = arith.extui %0 : i1 to i32
    %c0_i32_0 = arith.constant 0 : i32
    %2 = arith.cmpi ne, %1, %c0_i32_0 : i32
    scf.if %2 {
      %cst_10 = arith.constant 0.000000e+00 : f32
      %12 = vector.broadcast %cst_10 : f32 to vector<512x64xf32>
      %c0_11 = arith.constant 0 : index
      %c0_12 = arith.constant 0 : index
      %13 = vector.load %arg4[%c0_11, %c0_12] : memref<512x64xf32, #tpu.memory_space<vmem>>, vector<512x64xf32>
      tpu.vector_store %arg4[%c0_11, %c0_12], %12 {strides = array<i32>} : memref<512x64xf32, #tpu.memory_space<vmem>>, vector<512x64xf32>,
    } else {
    }
    %c0 = arith.constant 0 : index
    %c0_1 = arith.constant 0 : index
    %3 = vector.load %arg4[%c0, %c0_1] : memref<512x64xf32, #tpu.memory_space<vmem>>, vector<512x64xf32>
    %c0_2 = arith.constant 0 : index
    %c0_3 = arith.constant 0 : index
    %4 = vector.load %arg2[%c0_2, %c0_3] : memref<512x576xbf16, #tpu.memory_space<vmem>>, vector<512x576xbf16>
    %c0_4 = arith.constant 0 : index
    %c0_5 = arith.constant 0 : index
    %5 = vector.load %arg3[%c0_4, %c0_5] : memref<576x64xbf16, #tpu.memory_space<vmem>>, vector<576x64xbf16>
    %cst = arith.constant dense<0.000000e+00> : vector<512x64xf32>
    %6 = tpu.matmul %4, %5, %cst {dimension_numbers = #tpu.dot_dimension_numbers<[1], [0], [0], [1], [0, 0, 1, 1], [], []>} : vector<512x576xbf16>, vector<576x64xbf16>, vector<512x64xf32> -> vector<512x64xf32>
    %7 = arith.addf %3, %6 : vector<512x64xf32>
    %c0_6 = arith.constant 0 : index
    %c0_7 = arith.constant 0 : index
    %8 = vector.load %arg4[%c0_6, %c0_7] : memref<512x64xf32, #tpu.memory_space<vmem>>, vector<512x64xf32>
    tpu.vector_store %arg4[%c0_6, %c0_7], %7 {strides = array<i32>} : memref<512x64xf32, #tpu.memory_space<vmem>>, vector<512x64xf32>,
    %c0_i32_8 = arith.constant 0 : i32
    %9 = arith.cmpi eq, %arg1, %c0_i32_8 : i32
    %10 = arith.extui %9 : i1 to i32
    %c0_i32_9 = arith.constant 0 : i32
    %11 = arith.cmpi ne, %10, %c0_i32_9 : i32
    scf.if %11 {
      %c0_10 = arith.constant 0 : index
      %c0_11 = arith.constant 0 : index
      %12 = vector.load %arg4[%c0_10, %c0_11] : memref<512x64xf32, #tpu.memory_space<vmem>>, vector<512x64xf32>
      %cst_12 = arith.constant dense<0.000000e+00> : vector<64xf32>
      %13 = vector.multi_reduction <add>, %12, %cst_12 [0] : vector<512x64xf32> to vector<64xf32>
      %14 = vector.shape_cast %13 : vector<64xf32> to vector<1x64xf32>
      %15 = arith.mulf %12, %12 : vector<512x64xf32>
      %cst_13 = arith.constant dense<0.000000e+00> : vector<64xf32>
      %16 = vector.multi_reduction <add>, %15, %cst_13 [0] : vector<512x64xf32> to vector<64xf32>
      %17 = vector.shape_cast %16 : vector<64xf32> to vector<1x64xf32>
      %18 = vector.shape_cast %14 : vector<1x64xf32> to vector<1x64xf32>
      %19 = vector.broadcast %18 : vector<1x64xf32> to vector<8x64xf32>
      %c0_14 = arith.constant 0 : index
      %c0_15 = arith.constant 0 : index
      %20 = vector.load %arg5[%c0_14, %c0_15] : memref<8x64xf32, #tpu.memory_space<vmem>>, vector<8x64xf32>
      tpu.vector_store %arg5[%c0_14, %c0_15], %19 {strides = array<i32>} : memref<8x64xf32, #tpu.memory_space<vmem>>, vector<8x64xf32>,
      %21 = vector.shape_cast %17 : vector<1x64xf32> to vector<1x64xf32>
      %22 = vector.broadcast %21 : vector<1x64xf32> to vector<8x64xf32>
      %c0_16 = arith.constant 0 : index
      %c0_17 = arith.constant 0 : index
      %23 = vector.load %arg6[%c0_16, %c0_17] : memref<8x64xf32, #tpu.memory_space<vmem>>, vector<8x64xf32>
      tpu.vector_store %arg6[%c0_16, %c0_17], %22 {strides = array<i32>} : memref<8x64xf32, #tpu.memory_space<vmem>>, vector<8x64xf32>,
    } else {
    }
    return
  }
  func.func @transform_0(%arg0: i32, %arg1: i32) -> (i32, i32) {
    %c0_i32 = arith.constant 0 : i32
    return %arg0, %arg1 : i32, i32
  }
  func.func @transform_1(%arg0: i32, %arg1: i32) -> (i32, i32) {
    %c0_i32 = arith.constant 0 : i32
    %c0_i32_0 = arith.constant 0 : i32
    return %arg1, %c0_i32 : i32, i32
  }
  func.func @transform_2(%arg0: i32, %arg1: i32) -> (i32, i32) {
    %c0_i32 = arith.constant 0 : i32
    %c0_i32_0 = arith.constant 0 : i32
    return %arg0, %c0_i32 : i32, i32
  }
  func.func @transform_3(%arg0: i32, %arg1: i32) -> (i32, i32) {
    %c0_i32 = arith.constant 0 : i32
    %c0_i32_0 = arith.constant 0 : i32
    return %arg0, %c0_i32 : i32, i32
  }
  func.func @transform_4(%arg0: i32, %arg1: i32) -> (i32, i32) {
    %c0_i32 = arith.constant 0 : i32
    %c0_i32_0 = arith.constant 0 : i32
    return %arg0, %c0_i32 : i32, i32
  }
}

module attributes {stable_mosaic.version = 11 : i64} {
  func.func @_bn_act_kernel(%arg0: i32, %arg1: memref<256x128xf32, #tpu.memory_space<vmem>>, %arg2: memref<1x128xf32, #tpu.memory_space<vmem>>, %arg3: memref<1x128xf32, #tpu.memory_space<vmem>>, %arg4: memref<256x128xf32, #tpu.memory_space<vmem>>) attributes {dimension_semantics = [#tpu.dimension_semantics<parallel>], iteration_bounds = array<i64: 1>, scalar_prefetch = 0 : i64, scratch_operands = 0 : i64, tpu.core_type = #tpu.core_type<tc>, window_params = [{transform_indices = @transform_0, window_bounds = array<i64: 256, 128>}, {pipeline_mode = #tpu.pipeline_mode<synchronous>, transform_indices = @transform_1, window_bounds = array<i64: 1, 128>}, {pipeline_mode = #tpu.pipeline_mode<synchronous>, transform_indices = @transform_2, window_bounds = array<i64: 1, 128>}, {transform_indices = @transform_3, window_bounds = array<i64: 256, 128>}]} {
    %c0 = arith.constant 0 : index
    %c0_0 = arith.constant 0 : index
    %0 = vector.load %arg1[%c0, %c0_0] : memref<256x128xf32, #tpu.memory_space<vmem>>, vector<256x128xf32>
    %c0_1 = arith.constant 0 : index
    %c0_2 = arith.constant 0 : index
    %1 = vector.load %arg2[%c0_1, %c0_2] : memref<1x128xf32, #tpu.memory_space<vmem>>, vector<1x128xf32>
    %2 = vector.broadcast %1 : vector<1x128xf32> to vector<256x128xf32>
    %3 = arith.mulf %0, %2 : vector<256x128xf32>
    %c0_3 = arith.constant 0 : index
    %c0_4 = arith.constant 0 : index
    %4 = vector.load %arg3[%c0_3, %c0_4] : memref<1x128xf32, #tpu.memory_space<vmem>>, vector<1x128xf32>
    %5 = vector.broadcast %4 : vector<1x128xf32> to vector<256x128xf32>
    %6 = arith.addf %3, %5 : vector<256x128xf32>
    %cst = arith.constant 0.000000e+00 : f32
    %7 = vector.broadcast %cst : f32 to vector<256x128xf32>
    %8 = arith.maximumf %6, %7 : vector<256x128xf32>
    %c0_5 = arith.constant 0 : index
    %c0_6 = arith.constant 0 : index
    %9 = vector.load %arg4[%c0_5, %c0_6] : memref<256x128xf32, #tpu.memory_space<vmem>>, vector<256x128xf32>
    tpu.vector_store %arg4[%c0_5, %c0_6], %8 {strides = array<i32>} : memref<256x128xf32, #tpu.memory_space<vmem>>, vector<256x128xf32>,
    return
  }
  func.func @transform_0(%arg0: i32) -> (i32, i32) {
    %c0_i32 = arith.constant 0 : i32
    %c0_i32_0 = arith.constant 0 : i32
    return %arg0, %c0_i32 : i32, i32
  }
  func.func @transform_1(%arg0: i32) -> (i32, i32) {
    %c0_i32 = arith.constant 0 : i32
    %c0_i32_0 = arith.constant 0 : i32
    %c0_i32_1 = arith.constant 0 : i32
    return %c0_i32, %c0_i32_0 : i32, i32
  }
  func.func @transform_2(%arg0: i32) -> (i32, i32) {
    %c0_i32 = arith.constant 0 : i32
    %c0_i32_0 = arith.constant 0 : i32
    %c0_i32_1 = arith.constant 0 : i32
    return %c0_i32, %c0_i32_0 : i32, i32
  }
  func.func @transform_3(%arg0: i32) -> (i32, i32) {
    %c0_i32 = arith.constant 0 : i32
    %c0_i32_0 = arith.constant 0 : i32
    return %arg0, %c0_i32 : i32, i32
  }
}

module attributes {stable_mosaic.version = 11 : i64} {
  func.func @_bn_res_relu_kernel(%arg0: i32, %arg1: memref<256x128xf32, #tpu.memory_space<vmem>>, %arg2: memref<1x128xf32, #tpu.memory_space<vmem>>, %arg3: memref<1x128xf32, #tpu.memory_space<vmem>>, %arg4: memref<256x128xf32, #tpu.memory_space<vmem>>, %arg5: memref<256x128xf32, #tpu.memory_space<vmem>>) attributes {dimension_semantics = [#tpu.dimension_semantics<parallel>], iteration_bounds = array<i64: 1>, scalar_prefetch = 0 : i64, scratch_operands = 0 : i64, tpu.core_type = #tpu.core_type<tc>, window_params = [{transform_indices = @transform_0, window_bounds = array<i64: 256, 128>}, {pipeline_mode = #tpu.pipeline_mode<synchronous>, transform_indices = @transform_1, window_bounds = array<i64: 1, 128>}, {pipeline_mode = #tpu.pipeline_mode<synchronous>, transform_indices = @transform_2, window_bounds = array<i64: 1, 128>}, {transform_indices = @transform_3, window_bounds = array<i64: 256, 128>}, {transform_indices = @transform_4, window_bounds = array<i64: 256, 128>}]} {
    %c0 = arith.constant 0 : index
    %c0_0 = arith.constant 0 : index
    %0 = vector.load %arg1[%c0, %c0_0] : memref<256x128xf32, #tpu.memory_space<vmem>>, vector<256x128xf32>
    %c0_1 = arith.constant 0 : index
    %c0_2 = arith.constant 0 : index
    %1 = vector.load %arg2[%c0_1, %c0_2] : memref<1x128xf32, #tpu.memory_space<vmem>>, vector<1x128xf32>
    %2 = vector.broadcast %1 : vector<1x128xf32> to vector<256x128xf32>
    %3 = arith.mulf %0, %2 : vector<256x128xf32>
    %c0_3 = arith.constant 0 : index
    %c0_4 = arith.constant 0 : index
    %4 = vector.load %arg3[%c0_3, %c0_4] : memref<1x128xf32, #tpu.memory_space<vmem>>, vector<1x128xf32>
    %5 = vector.broadcast %4 : vector<1x128xf32> to vector<256x128xf32>
    %6 = arith.addf %3, %5 : vector<256x128xf32>
    %c0_5 = arith.constant 0 : index
    %c0_6 = arith.constant 0 : index
    %7 = vector.load %arg4[%c0_5, %c0_6] : memref<256x128xf32, #tpu.memory_space<vmem>>, vector<256x128xf32>
    %8 = arith.addf %6, %7 : vector<256x128xf32>
    %cst = arith.constant 0.000000e+00 : f32
    %9 = vector.broadcast %cst : f32 to vector<256x128xf32>
    %10 = arith.maximumf %8, %9 : vector<256x128xf32>
    %c0_7 = arith.constant 0 : index
    %c0_8 = arith.constant 0 : index
    %11 = vector.load %arg5[%c0_7, %c0_8] : memref<256x128xf32, #tpu.memory_space<vmem>>, vector<256x128xf32>
    tpu.vector_store %arg5[%c0_7, %c0_8], %10 {strides = array<i32>} : memref<256x128xf32, #tpu.memory_space<vmem>>, vector<256x128xf32>,
    return
  }
  func.func @transform_0(%arg0: i32) -> (i32, i32) {
    %c0_i32 = arith.constant 0 : i32
    %c0_i32_0 = arith.constant 0 : i32
    return %arg0, %c0_i32 : i32, i32
  }
  func.func @transform_1(%arg0: i32) -> (i32, i32) {
    %c0_i32 = arith.constant 0 : i32
    %c0_i32_0 = arith.constant 0 : i32
    %c0_i32_1 = arith.constant 0 : i32
    return %c0_i32, %c0_i32_0 : i32, i32
  }
  func.func @transform_2(%arg0: i32) -> (i32, i32) {
    %c0_i32 = arith.constant 0 : i32
    %c0_i32_0 = arith.constant 0 : i32
    %c0_i32_1 = arith.constant 0 : i32
    return %c0_i32, %c0_i32_0 : i32, i32
  }
  func.func @transform_3(%arg0: i32) -> (i32, i32) {
    %c0_i32 = arith.constant 0 : i32
    %c0_i32_0 = arith.constant 0 : i32
    return %arg0, %c0_i32 : i32, i32
  }
  func.func @transform_4(%arg0: i32) -> (i32, i32) {
    %c0_i32 = arith.constant 0 : i32
    %c0_i32_0 = arith.constant 0 : i32
    return %arg0, %c0_i32 : i32, i32
  }
}

</mosaic_0001>

<llo_original>
// kernel: _lambda_.5
$region0: #{_lambda_.5}
  #allocation0 [shape = 'u32[]', space=smem, size = 0x4, offset = 0x4, fixed_abs, tag = 'smem constant byte address 0x4 - core index']
  #allocation1 [shape = 'u32[144,128]{1,0:T(1,128)}', space=vmem, size = 0x12000, scoped, tag = 'internal scratch']
  %s0 = inlined_call_operand.vmem [shape: f32[256,128], index: 0, kind: input, shape index: {}]
  %s1 = inlined_call_operand.vmem [shape: f32[1,128], index: 1, kind: input, shape index: {}]
  %s2 = inlined_call_operand.vmem [shape: f32[1,128], index: 2, kind: input, shape index: {}]
  %s3 = inlined_call_operand.vmem [shape: f32[256,128], index: 3, kind: output, shape index: {}]
  %s4 = sld [smem:[#allocation0]]
  $region22: #{_lambda_.5} parent=0
    _
  %s6 = ssub.s32 1, %s4
  %s7 = scalar_select 0, %s6, %s4
  // Predicated region
  $region2: #{_lambda_.5} parent=0 // pred_check
    _
  $region3: #{_lambda_.5} parent=0 // pred_check_branch
    %9 = sbr.rel (0) target = $region5
  $region4: #{_lambda_.5} parent=0 // pred_region
    _
  $region5: #{_lambda_.5} parent=0 // pred_fallthru
    _
  // Predicated region
  $region6: #{_lambda_.5} parent=0 // pred_check
    _
  $region7: #{_lambda_.5} parent=0 // pred_check_branch
    %11 = sbr.rel (0) target = $region9
  $region8: #{_lambda_.5} parent=0 // pred_region
    _
  $region9: #{_lambda_.5} parent=0 // pred_fallthru
    _
  // Predicated region
  $region10: #{_lambda_.5} parent=0 // pred_check
    _
  $region11: #{_lambda_.5} parent=0 // pred_check_branch
    %13 = sbr.rel (0) target = $region13
  $region12: #{_lambda_.5} parent=0 // pred_region
    _
  $region13: #{_lambda_.5} parent=0 // pred_fallthru
    _
  %v14 = vld [vmem:[%s0] sm:$0xff]
  %v15 = vld [vmem:[%s0 + $0x8] sm:$0xff]
  %v16 = vld [vmem:[%s0 + $0x10] sm:$0xff]
  %v17 = vld [vmem:[%s0 + $0x18] sm:$0xff]
  %v18 = vld [vmem:[%s0 + $0x20] sm:$0xff]
  %v19 = vld [vmem:[%s0 + $0x28] sm:$0xff]
  %v20 = vld [vmem:[%s0 + $0x30] sm:$0xff]
  %v21 = vld [vmem:[%s0 + $0x38] sm:$0xff]
  %v22 = vld [vmem:[%s0 + $0x40] sm:$0xff]
  %v23 = vld [vmem:[%s0 + $0x48] sm:$0xff]
  %v24 = vld [vmem:[%s0 + $0x50] sm:$0xff]
  %v25 = vld [vmem:[%s0 + $0x58] sm:$0xff]
  %v26 = vld [vmem:[%s0 + $0x60] sm:$0xff]
  %v27 = vld [vmem:[%s0 + $0x68] sm:$0xff]
  %v28 = vld [vmem:[%s0 + $0x70] sm:$0xff]
  %v29 = vld [vmem:[%s0 + $0x78] sm:$0xff]
  %v30 = vld [vmem:[%s0 + $0x80] sm:$0xff]
  %v31 = vld [vmem:[%s0 + $0x88] sm:$0xff]
  %v32 = vld [vmem:[%s0 + $0x90] sm:$0xff]
  %v33 = vld [vmem:[%s0 + $0x98] sm:$0xff]
  %v34 = vld [vmem:[%s0 + $0xa0] sm:$0xff]
  %v35 = vld [vmem:[%s0 + $0xa8] sm:$0xff]
  %v36 = vld [vmem:[%s0 + $0xb0] sm:$0xff]
  %v37 = vld [vmem:[%s0 + $0xb8] sm:$0xff]
  %v38 = vld [vmem:[%s0 + $0xc0] sm:$0xff]
  %v39 = vld [vmem:[%s0 + $0xc8] sm:$0xff]
  %v40 = vld [vmem:[%s0 + $0xd0] sm:$0xff]
  %v41 = vld [vmem:[%s0 + $0xd8] sm:$0xff]
  %v42 = vld [vmem:[%s0 + $0xe0] sm:$0xff]
  %v43 = vld [vmem:[%s0 + $0xe8] sm:$0xff]
  %v44 = vld [vmem:[%s0 + $0xf0] sm:$0xff]
  %v45 = vld [vmem:[%s0 + $0xf8] sm:$0xff]
  %v46 = vld [vmem:[%s1] sm:$0x1]
  %v48 = vlaneseq
  %v49 = vshrl.u32 %v48, 7
  %v50 = vsub.s32 0, %v49
  %v51 = vrot.slane %v46, %v50
  %v53 = vmul.f32 %v14, %v51
  %v54 = vmul.f32 %v15, %v51
  %v55 = vmul.f32 %v16, %v51
  %v56 = vmul.f32 %v17, %v51
  %v57 = vmul.f32 %v18, %v51
  %v58 = vmul.f32 %v19, %v51
  %v59 = vmul.f32 %v20, %v51
  %v60 = vmul.f32 %v21, %v51
  %v61 = vmul.f32 %v22, %v51
  %v62 = vmul.f32 %v23, %v51
  %v63 = vmul.f32 %v24, %v51
  %v64 = vmul.f32 %v25, %v51
  %v65 = vmul.f32 %v26, %v51
  %v66 = vmul.f32 %v27, %v51
  %v67 = vmul.f32 %v28, %v51
  %v68 = vmul.f32 %v29, %v51
  %v69 = vmul.f32 %v30, %v51
  %v70 = vmul.f32 %v31, %v51
  %v71 = vmul.f32 %v32, %v51
  %v72 = vmul.f32 %v33, %v51
  %v73 = vmul.f32 %v34, %v51
  %v74 = vmul.f32 %v35, %v51
  %v75 = vmul.f32 %v36, %v51
  %v76 = vmul.f32 %v37, %v51
  %v77 = vmul.f32 %v38, %v51
  %v78 = vmul.f32 %v39, %v51
  %v79 = vmul.f32 %v40, %v51
  %v80 = vmul.f32 %v41, %v51
  %v81 = vmul.f32 %v42, %v51
  %v82 = vmul.f32 %v43, %v51
  %v83 = vmul.f32 %v44, %v51
  %v84 = vmul.f32 %v45, %v51
  %v85 = vld [vmem:[%s2] sm:$0x1]
  %v87 = vlaneseq
  %v88 = vshrl.u32 %v87, 7
  %v89 = vsub.s32 0, %v88
  %v90 = vrot.slane %v85, %v89
  %v92 = vadd.f32 %v53, %v90
  %v93 = vadd.f32 %v54, %v90
  %v94 = vadd.f32 %v55, %v90
  %v95 = vadd.f32 %v56, %v90
  %v96 = vadd.f32 %v57, %v90
  %v97 = vadd.f32 %v58, %v90
  %v98 = vadd.f32 %v59, %v90
  %v99 = vadd.f32 %v60, %v90
  %v100 = vadd.f32 %v61, %v90
  %v101 = vadd.f32 %v62, %v90
  %v102 = vadd.f32 %v63, %v90
  %v103 = vadd.f32 %v64, %v90
  %v104 = vadd.f32 %v65, %v90
  %v105 = vadd.f32 %v66, %v90
  %v106 = vadd.f32 %v67, %v90
  %v107 = vadd.f32 %v68, %v90
  %v108 = vadd.f32 %v69, %v90
  %v109 = vadd.f32 %v70, %v90
  %v110 = vadd.f32 %v71, %v90
  %v111 = vadd.f32 %v72, %v90
  %v112 = vadd.f32 %v73, %v90
  %v113 = vadd.f32 %v74, %v90
  %v114 = vadd.f32 %v75, %v90
  %v115 = vadd.f32 %v76, %v90
  %v116 = vadd.f32 %v77, %v90
  %v117 = vadd.f32 %v78, %v90
  %v118 = vadd.f32 %v79, %v90
  %v119 = vadd.f32 %v80, %v90
  %v120 = vadd.f32 %v81, %v90
  %v121 = vadd.f32 %v82, %v90
  %v122 = vadd.f32 %v83, %v90
  %v123 = vadd.f32 %v84, %v90
  %v124 = vmax.f32 %v92, 0.0
  %v125 = vmax.f32 %v93, 0.0
  %v126 = vmax.f32 %v94, 0.0
  %v127 = vmax.f32 %v95, 0.0
  %v128 = vmax.f32 %v96, 0.0
  %v129 = vmax.f32 %v97, 0.0
  %v130 = vmax.f32 %v98, 0.0
  %v131 = vmax.f32 %v99, 0.0
  %v132 = vmax.f32 %v100, 0.0
  %v133 = vmax.f32 %v101, 0.0
  %v134 = vmax.f32 %v102, 0.0
  %v135 = vmax.f32 %v103, 0.0
  %v136 = vmax.f32 %v104, 0.0
  %v137 = vmax.f32 %v105, 0.0
  %v138 = vmax.f32 %v106, 0.0
  %v139 = vmax.f32 %v107, 0.0
  %v140 = vmax.f32 %v108, 0.0
  %v141 = vmax.f32 %v109, 0.0
  %v142 = vmax.f32 %v110, 0.0
  %v143 = vmax.f32 %v111, 0.0
  %v144 = vmax.f32 %v112, 0.0
  %v145 = vmax.f32 %v113, 0.0
  %v146 = vmax.f32 %v114, 0.0
  %v147 = vmax.f32 %v115, 0.0
  %v148 = vmax.f32 %v116, 0.0
  %v149 = vmax.f32 %v117, 0.0
  %v150 = vmax.f32 %v118, 0.0
  %v151 = vmax.f32 %v119, 0.0
  %v152 = vmax.f32 %v120, 0.0
  %v153 = vmax.f32 %v121, 0.0
  %v154 = vmax.f32 %v122, 0.0
  %v155 = vmax.f32 %v123, 0.0
  %156 = vst [vmem:[%s3] sm:$0xff] %v124
  %157 = vst [vmem:[%s3 + $0x8] sm:$0xff] %v125
  %158 = vst [vmem:[%s3 + $0x10] sm:$0xff] %v126
  %159 = vst [vmem:[%s3 + $0x18] sm:$0xff] %v127
  %160 = vst [vmem:[%s3 + $0x20] sm:$0xff] %v128
  %161 = vst [vmem:[%s3 + $0x28] sm:$0xff] %v129
  %162 = vst [vmem:[%s3 + $0x30] sm:$0xff] %v130
  %163 = vst [vmem:[%s3 + $0x38] sm:$0xff] %v131
  %164 = vst [vmem:[%s3 + $0x40] sm:$0xff] %v132
  %165 = vst [vmem:[%s3 + $0x48] sm:$0xff] %v133
  %166 = vst [vmem:[%s3 + $0x50] sm:$0xff] %v134
  %167 = vst [vmem:[%s3 + $0x58] sm:$0xff] %v135
  %168 = vst [vmem:[%s3 + $0x60] sm:$0xff] %v136
  %169 = vst [vmem:[%s3 + $0x68] sm:$0xff] %v137
  %170 = vst [vmem:[%s3 + $0x70] sm:$0xff] %v138
  %171 = vst [vmem:[%s3 + $0x78] sm:$0xff] %v139
  %172 = vst [vmem:[%s3 + $0x80] sm:$0xff] %v140
  %173 = vst [vmem:[%s3 + $0x88] sm:$0xff] %v141
  %174 = vst [vmem:[%s3 + $0x90] sm:$0xff] %v142
  %175 = vst [vmem:[%s3 + $0x98] sm:$0xff] %v143
  %176 = vst [vmem:[%s3 + $0xa0] sm:$0xff] %v144
  %177 = vst [vmem:[%s3 + $0xa8] sm:$0xff] %v145
  %178 = vst [vmem:[%s3 + $0xb0] sm:$0xff] %v146
  %179 = vst [vmem:[%s3 + $0xb8] sm:$0xff] %v147
  %180 = vst [vmem:[%s3 + $0xc0] sm:$0xff] %v148
  %181 = vst [vmem:[%s3 + $0xc8] sm:$0xff] %v149
  %182 = vst [vmem:[%s3 + $0xd0] sm:$0xff] %v150
  %183 = vst [vmem:[%s3 + $0xd8] sm:$0xff] %v151
  %184 = vst [vmem:[%s3 + $0xe0] sm:$0xff] %v152
  %185 = vst [vmem:[%s3 + $0xe8] sm:$0xff] %v153
  %186 = vst [vmem:[%s3 + $0xf0] sm:$0xff] %v154
  %187 = vst [vmem:[%s3 + $0xf8] sm:$0xff] %v155
  // Predicated region
  $region14: #{_lambda_.5} parent=0 // pred_check
    _
  $region15: #{_lambda_.5} parent=0 // pred_check_branch
    %189 = sbr.rel (0) target = $region17
  $region16: #{_lambda_.5} parent=0 // pred_region
    _
  $region17: #{_lambda_.5} parent=0 // pred_fallthru
    _
  // Predicated region
  $region18: #{_lambda_.5} parent=0 // pred_check
    _
  $region19: #{_lambda_.5} parent=0 // pred_check_branch
    %191 = sbr.rel (0) target = $region21
  $region20: #{_lambda_.5} parent=0 // pred_region
    _
  $region21: #{_lambda_.5} parent=0 // pred_fallthru
    _

// kernel: _lambda_.7
$region0: #{_lambda_.7}
  #allocation0 [shape = 'u32[]', space=smem, size = 0x4, offset = 0x4, fixed_abs, tag = 'smem constant byte address 0x4 - core index']
  #allocation1 [shape = 'u32[144,128]{1,0:T(1,128)}', space=vmem, size = 0x12000, scoped, tag = 'internal scratch']
  %s0 = inlined_call_operand.vmem [shape: f32[256,128], index: 0, kind: input, shape index: {}]
  %s1 = inlined_call_operand.vmem [shape: f32[1,128], index: 1, kind: input, shape index: {}]
  %s2 = inlined_call_operand.vmem [shape: f32[1,128], index: 2, kind: input, shape index: {}]
  %s3 = inlined_call_operand.vmem [shape: f32[256,128], index: 3, kind: input, shape index: {}]
  %s4 = inlined_call_operand.vmem [shape: f32[256,128], index: 4, kind: output, shape index: {}]
  %s5 = sld [smem:[#allocation0]]
  $region26: #{_lambda_.7} parent=0
    _
  %s7 = ssub.s32 1, %s5
  %s8 = scalar_select 0, %s7, %s5
  // Predicated region
  $region2: #{_lambda_.7} parent=0 // pred_check
    _
  $region3: #{_lambda_.7} parent=0 // pred_check_branch
    %10 = sbr.rel (0) target = $region5
  $region4: #{_lambda_.7} parent=0 // pred_region
    _
  $region5: #{_lambda_.7} parent=0 // pred_fallthru
    _
  // Predicated region
  $region6: #{_lambda_.7} parent=0 // pred_check
    _
  $region7: #{_lambda_.7} parent=0 // pred_check_branch
    %12 = sbr.rel (0) target = $region9
  $region8: #{_lambda_.7} parent=0 // pred_region
    _
  $region9: #{_lambda_.7} parent=0 // pred_fallthru
    _
  // Predicated region
  $region10: #{_lambda_.7} parent=0 // pred_check
    _
  $region11: #{_lambda_.7} parent=0 // pred_check_branch
    %14 = sbr.rel (0) target = $region13
  $region12: #{_lambda_.7} parent=0 // pred_region
    _
  $region13: #{_lambda_.7} parent=0 // pred_fallthru
    _
  // Predicated region
  $region14: #{_lambda_.7} parent=0 // pred_check
    _
  $region15: #{_lambda_.7} parent=0 // pred_check_branch
    %16 = sbr.rel (0) target = $region17
  $region16: #{_lambda_.7} parent=0 // pred_region
    _
  $region17: #{_lambda_.7} parent=0 // pred_fallthru
    _
  %v17 = vld [vmem:[%s0] sm:$0xff]
  %v18 = vld [vmem:[%s0 + $0x8] sm:$0xff]
  %v19 = vld [vmem:[%s0 + $0x10] sm:$0xff]
  %v20 = vld [vmem:[%s0 + $0x18] sm:$0xff]
  %v21 = vld [vmem:[%s0 + $0x20] sm:$0xff]
  %v22 = vld [vmem:[%s0 + $0x28] sm:$0xff]
  %v23 = vld [vmem:[%s0 + $0x30] sm:$0xff]
  %v24 = vld [vmem:[%s0 + $0x38] sm:$0xff]
  %v25 = vld [vmem:[%s0 + $0x40] sm:$0xff]
  %v26 = vld [vmem:[%s0 + $0x48] sm:$0xff]
  %v27 = vld [vmem:[%s0 + $0x50] sm:$0xff]
  %v28 = vld [vmem:[%s0 + $0x58] sm:$0xff]
  %v29 = vld [vmem:[%s0 + $0x60] sm:$0xff]
  %v30 = vld [vmem:[%s0 + $0x68] sm:$0xff]
  %v31 = vld [vmem:[%s0 + $0x70] sm:$0xff]
  %v32 = vld [vmem:[%s0 + $0x78] sm:$0xff]
  %v33 = vld [vmem:[%s0 + $0x80] sm:$0xff]
  %v34 = vld [vmem:[%s0 + $0x88] sm:$0xff]
  %v35 = vld [vmem:[%s0 + $0x90] sm:$0xff]
  %v36 = vld [vmem:[%s0 + $0x98] sm:$0xff]
  %v37 = vld [vmem:[%s0 + $0xa0] sm:$0xff]
  %v38 = vld [vmem:[%s0 + $0xa8] sm:$0xff]
  %v39 = vld [vmem:[%s0 + $0xb0] sm:$0xff]
  %v40 = vld [vmem:[%s0 + $0xb8] sm:$0xff]
  %v41 = vld [vmem:[%s0 + $0xc0] sm:$0xff]
  %v42 = vld [vmem:[%s0 + $0xc8] sm:$0xff]
  %v43 = vld [vmem:[%s0 + $0xd0] sm:$0xff]
  %v44 = vld [vmem:[%s0 + $0xd8] sm:$0xff]
  %v45 = vld [vmem:[%s0 + $0xe0] sm:$0xff]
  %v46 = vld [vmem:[%s0 + $0xe8] sm:$0xff]
  %v47 = vld [vmem:[%s0 + $0xf0] sm:$0xff]
  %v48 = vld [vmem:[%s0 + $0xf8] sm:$0xff]
  %v49 = vld [vmem:[%s1] sm:$0x1]
  %v51 = vlaneseq
  %v52 = vshrl.u32 %v51, 7
  %v53 = vsub.s32 0, %v52
  %v54 = vrot.slane %v49, %v53
  %v56 = vmul.f32 %v17, %v54
  %v57 = vmul.f32 %v18, %v54
  %v58 = vmul.f32 %v19, %v54
  %v59 = vmul.f32 %v20, %v54
  %v60 = vmul.f32 %v21, %v54
  %v61 = vmul.f32 %v22, %v54
  %v62 = vmul.f32 %v23, %v54
  %v63 = vmul.f32 %v24, %v54
  %v64 = vmul.f32 %v25, %v54
  %v65 = vmul.f32 %v26, %v54
  %v66 = vmul.f32 %v27, %v54
  %v67 = vmul.f32 %v28, %v54
  %v68 = vmul.f32 %v29, %v54
  %v69 = vmul.f32 %v30, %v54
  %v70 = vmul.f32 %v31, %v54
  %v71 = vmul.f32 %v32, %v54
  %v72 = vmul.f32 %v33, %v54
  %v73 = vmul.f32 %v34, %v54
  %v74 = vmul.f32 %v35, %v54
  %v75 = vmul.f32 %v36, %v54
  %v76 = vmul.f32 %v37, %v54
  %v77 = vmul.f32 %v38, %v54
  %v78 = vmul.f32 %v39, %v54
  %v79 = vmul.f32 %v40, %v54
  %v80 = vmul.f32 %v41, %v54
  %v81 = vmul.f32 %v42, %v54
  %v82 = vmul.f32 %v43, %v54
  %v83 = vmul.f32 %v44, %v54
  %v84 = vmul.f32 %v45, %v54
  %v85 = vmul.f32 %v46, %v54
  %v86 = vmul.f32 %v47, %v54
  %v87 = vmul.f32 %v48, %v54
  %v88 = vld [vmem:[%s2] sm:$0x1]
  %v90 = vlaneseq
  %v91 = vshrl.u32 %v90, 7
  %v92 = vsub.s32 0, %v91
  %v93 = vrot.slane %v88, %v92
  %v95 = vadd.f32 %v56, %v93
  %v96 = vadd.f32 %v57, %v93
  %v97 = vadd.f32 %v58, %v93
  %v98 = vadd.f32 %v59, %v93
  %v99 = vadd.f32 %v60, %v93
  %v100 = vadd.f32 %v61, %v93
  %v101 = vadd.f32 %v62, %v93
  %v102 = vadd.f32 %v63, %v93
  %v103 = vadd.f32 %v64, %v93
  %v104 = vadd.f32 %v65, %v93
  %v105 = vadd.f32 %v66, %v93
  %v106 = vadd.f32 %v67, %v93
  %v107 = vadd.f32 %v68, %v93
  %v108 = vadd.f32 %v69, %v93
  %v109 = vadd.f32 %v70, %v93
  %v110 = vadd.f32 %v71, %v93
  %v111 = vadd.f32 %v72, %v93
  %v112 = vadd.f32 %v73, %v93
  %v113 = vadd.f32 %v74, %v93
  %v114 = vadd.f32 %v75, %v93
  %v115 = vadd.f32 %v76, %v93
  %v116 = vadd.f32 %v77, %v93
  %v117 = vadd.f32 %v78, %v93
  %v118 = vadd.f32 %v79, %v93
  %v119 = vadd.f32 %v80, %v93
  %v120 = vadd.f32 %v81, %v93
  %v121 = vadd.f32 %v82, %v93
  %v122 = vadd.f32 %v83, %v93
  %v123 = vadd.f32 %v84, %v93
  %v124 = vadd.f32 %v85, %v93
  %v125 = vadd.f32 %v86, %v93
  %v126 = vadd.f32 %v87, %v93
  %v127 = vld [vmem:[%s3] sm:$0xff]
  %v128 = vld [vmem:[%s3 + $0x8] sm:$0xff]
  %v129 = vld [vmem:[%s3 + $0x10] sm:$0xff]
  %v130 = vld [vmem:[%s3 + $0x18] sm:$0xff]
  %v131 = vld [vmem:[%s3 + $0x20] sm:$0xff]
  %v132 = vld [vmem:[%s3 + $0x28] sm:$0xff]
  %v133 = vld [vmem:[%s3 + $0x30] sm:$0xff]
  %v134 = vld [vmem:[%s3 + $0x38] sm:$0xff]
  %v135 = vld [vmem:[%s3 + $0x40] sm:$0xff]
  %v136 = vld [vmem:[%s3 + $0x48] sm:$0xff]
  %v137 = vld [vmem:[%s3 + $0x50] sm:$0xff]
  %v138 = vld [vmem:[%s3 + $0x58] sm:$0xff]
  %v139 = vld [vmem:[%s3 + $0x60] sm:$0xff]
  %v140 = vld [vmem:[%s3 + $0x68] sm:$0xff]
  %v141 = vld [vmem:[%s3 + $0x70] sm:$0xff]
  %v142 = vld [vmem:[%s3 + $0x78] sm:$0xff]
  %v143 = vld [vmem:[%s3 + $0x80] sm:$0xff]
  %v144 = vld [vmem:[%s3 + $0x88] sm:$0xff]
  %v145 = vld [vmem:[%s3 + $0x90] sm:$0xff]
  %v146 = vld [vmem:[%s3 + $0x98] sm:$0xff]
  %v147 = vld [vmem:[%s3 + $0xa0] sm:$0xff]
  %v148 = vld [vmem:[%s3 + $0xa8] sm:$0xff]
  %v149 = vld [vmem:[%s3 + $0xb0] sm:$0xff]
  %v150 = vld [vmem:[%s3 + $0xb8] sm:$0xff]
  %v151 = vld [vmem:[%s3 + $0xc0] sm:$0xff]
  %v152 = vld [vmem:[%s3 + $0xc8] sm:$0xff]
  %v153 = vld [vmem:[%s3 + $0xd0] sm:$0xff]
  %v154 = vld [vmem:[%s3 + $0xd8] sm:$0xff]
  %v155 = vld [vmem:[%s3 + $0xe0] sm:$0xff]
  %v156 = vld [vmem:[%s3 + $0xe8] sm:$0xff]
  %v157 = vld [vmem:[%s3 + $0xf0] sm:$0xff]
  %v158 = vld [vmem:[%s3 + $0xf8] sm:$0xff]
  %v159 = vadd.f32 %v95, %v127
  %v160 = vadd.f32 %v96, %v128
  %v161 = vadd.f32 %v97, %v129
  %v162 = vadd.f32 %v98, %v130
  %v163 = vadd.f32 %v99, %v131
  %v164 = vadd.f32 %v100, %v132
  %v165 = vadd.f32 %v101, %v133
  %v166 = vadd.f32 %v102, %v134
  %v167 = vadd.f32 %v103, %v135
  %v168 = vadd.f32 %v104, %v136
  %v169 = vadd.f32 %v105, %v137
  %v170 = vadd.f32 %v106, %v138
  %v171 = vadd.f32 %v107, %v139
  %v172 = vadd.f32 %v108, %v140
  %v173 = vadd.f32 %v109, %v141
  %v174 = vadd.f32 %v110, %v142
  %v175 = vadd.f32 %v111, %v143
  %v176 = vadd.f32 %v112, %v144
  %v177 = vadd.f32 %v113, %v145
  %v178 = vadd.f32 %v114, %v146
  %v179 = vadd.f32 %v115, %v147
  %v180 = vadd.f32 %v116, %v148
  %v181 = vadd.f32 %v117, %v149
  %v182 = vadd.f32 %v118, %v150
  %v183 = vadd.f32 %v119, %v151
  %v184 = vadd.f32 %v120, %v152
  %v185 = vadd.f32 %v121, %v153
  %v186 = vadd.f32 %v122, %v154
  %v187 = vadd.f32 %v123, %v155
  %v188 = vadd.f32 %v124, %v156
  %v189 = vadd.f32 %v125, %v157
  %v190 = vadd.f32 %v126, %v158
  %v191 = vmax.f32 %v159, 0.0
  %v192 = vmax.f32 %v160, 0.0
  %v193 = vmax.f32 %v161, 0.0
  %v194 = vmax.f32 %v162, 0.0
  %v195 = vmax.f32 %v163, 0.0
  %v196 = vmax.f32 %v164, 0.0
  %v197 = vmax.f32 %v165, 0.0
  %v198 = vmax.f32 %v166, 0.0
  %v199 = vmax.f32 %v167, 0.0
  %v200 = vmax.f32 %v168, 0.0
  %v201 = vmax.f32 %v169, 0.0
  %v202 = vmax.f32 %v170, 0.0
  %v203 = vmax.f32 %v171, 0.0
  %v204 = vmax.f32 %v172, 0.0
  %v205 = vmax.f32 %v173, 0.0
  %v206 = vmax.f32 %v174, 0.0
  %v207 = vmax.f32 %v175, 0.0
  %v208 = vmax.f32 %v176, 0.0
  %v209 = vmax.f32 %v177, 0.0
  %v210 = vmax.f32 %v178, 0.0
  %v211 = vmax.f32 %v179, 0.0
  %v212 = vmax.f32 %v180, 0.0
  %v213 = vmax.f32 %v181, 0.0
  %v214 = vmax.f32 %v182, 0.0
  %v215 = vmax.f32 %v183, 0.0
  %v216 = vmax.f32 %v184, 0.0
  %v217 = vmax.f32 %v185, 0.0
  %v218 = vmax.f32 %v186, 0.0
  %v219 = vmax.f32 %v187, 0.0
  %v220 = vmax.f32 %v188, 0.0
  %v221 = vmax.f32 %v189, 0.0
  %v222 = vmax.f32 %v190, 0.0
  %223 = vst [vmem:[%s4] sm:$0xff] %v191
  %224 = vst [vmem:[%s4 + $0x8] sm:$0xff] %v192
  %225 = vst [vmem:[%s4 + $0x10] sm:$0xff] %v193
  %226 = vst [vmem:[%s4 + $0x18] sm:$0xff] %v194
  %227 = vst [vmem:[%s4 + $0x20] sm:$0xff] %v195
  %228 = vst [vmem:[%s4 + $0x28] sm:$0xff] %v196
  %229 = vst [vmem:[%s4 + $0x30] sm:$0xff] %v197
  %230 = vst [vmem:[%s4 + $0x38] sm:$0xff] %v198
  %231 = vst [vmem:[%s4 + $0x40] sm:$0xff] %v199
  %232 = vst [vmem:[%s4 + $0x48] sm:$0xff] %v200
  %233 = vst [vmem:[%s4 + $0x50] sm:$0xff] %v201
  %234 = vst [vmem:[%s4 + $0x58] sm:$0xff] %v202
  %235 = vst [vmem:[%s4 + $0x60] sm:$0xff] %v203
  %236 = vst [vmem:[%s4 + $0x68] sm:$0xff] %v204
  %237 = vst [vmem:[%s4 + $0x70] sm:$0xff] %v205
  %238 = vst [vmem:[%s4 + $0x78] sm:$0xff] %v206
  %239 = vst [vmem:[%s4 + $0x80] sm:$0xff] %v207
  %240 = vst [vmem:[%s4 + $0x88] sm:$0xff] %v208
  %241 = vst [vmem:[%s4 + $0x90] sm:$0xff] %v209
  %242 = vst [vmem:[%s4 + $0x98] sm:$0xff] %v210
  %243 = vst [vmem:[%s4 + $0xa0] sm:$0xff] %v211
  %244 = vst [vmem:[%s4 + $0xa8] sm:$0xff] %v212
  %245 = vst [vmem:[%s4 + $0xb0] sm:$0xff] %v213
  %246 = vst [vmem:[%s4 + $0xb8] sm:$0xff] %v214
  %247 = vst [vmem:[%s4 + $0xc0] sm:$0xff] %v215
  %248 = vst [vmem:[%s4 + $0xc8] sm:$0xff] %v216
  %249 = vst [vmem:[%s4 + $0xd0] sm:$0xff] %v217
  %250 = vst [vmem:[%s4 + $0xd8] sm:$0xff] %v218
  %251 = vst [vmem:[%s4 + $0xe0] sm:$0xff] %v219
  %252 = vst [vmem:[%s4 + $0xe8] sm:$0xff] %v220
  %253 = vst [vmem:[%s4 + $0xf0] sm:$0xff] %v221
  %254 = vst [vmem:[%s4 + $0xf8] sm:$0xff] %v222
  // Predicated region
  $region18: #{_lambda_.7} parent=0 // pred_check
    _
  $region19: #{_lambda_.7} parent=0 // pred_check_branch
    %256 = sbr.rel (0) target = $region21
  $region20: #{_lambda_.7} parent=0 // pred_region
    _
  $region21: #{_lambda_.7} parent=0 // pred_fallthru
    _
  // Predicated region
  $region22: #{_lambda_.7} parent=0 // pred_check
    _
  $region23: #{_lambda_.7} parent=0 // pred_check_branch
    %258 = sbr.rel (0) target = $region25
  $region24: #{_lambda_.7} parent=0 // pred_region
    _
  $region25: #{_lambda_.7} parent=0 // pred_fallthru
    _

// kernel: _lambda_.4
$region0: #{_lambda_.4}
  #allocation0 [shape = 'u32[]', space=smem, size = 0x4, offset = 0x4, fixed_abs, tag = 'smem constant byte address 0x4 - core index']
  #allocation1 [shape = 'u32[144,128]{1,0:T(1,128)}', space=vmem, size = 0x12000, scoped, tag = 'internal scratch']
  %s0 = inlined_call_operand.vmem [shape: bf16[512,576], index: 0, kind: input, shape index: {}]
  %s1 = inlined_call_operand.vmem [shape: bf16[576,64], index: 1, kind: input, shape index: {}]
  %s2 = inlined_call_operand.vmem [shape: f32[512,64], index: 2, kind: output, shape index: {0}]
  %s3 = inlined_call_operand.vmem [shape: f32[8,64], index: 3, kind: output, shape index: {1}]
  %s4 = inlined_call_operand.vmem [shape: f32[8,64], index: 4, kind: output, shape index: {2}]
  %5 = xla_tuple %s2, %s3, %s4
  %s6 = sld [smem:[#allocation0]]
  $region42: #{_lambda_.4} parent=0
    _
  %s8 = ssub.s32 1, %s6
  %s9 = scalar_select 0, %s8, %s6
  // Predicated region
  $region2: #{_lambda_.4} parent=0 // pred_check
    _
  $region3: #{_lambda_.4} parent=0 // pred_check_branch
    %11 = sbr.rel (0) target = $region5
  $region4: #{_lambda_.4} parent=0 // pred_region
    _
  $region5: #{_lambda_.4} parent=0 // pred_fallthru
    _
  // Predicated region
  $region6: #{_lambda_.4} parent=0 // pred_check
    _
  $region7: #{_lambda_.4} parent=0 // pred_check_branch
    %13 = sbr.rel (0) target = $region9
  $region8: #{_lambda_.4} parent=0 // pred_region
    _
  $region9: #{_lambda_.4} parent=0 // pred_fallthru
    _
  %p15 = scmp.eq.s32.totalorder 0, 0
  // Predicated region
  $region10: #{_lambda_.4} parent=0 // pred_check
    %p16 = pneg %p15
  $region11: #{_lambda_.4} parent=0 // pred_check_branch
    %18 = sbr.rel (%p16) target = $region13
  $region12: #{_lambda_.4} parent=0 // pred_region
    %vm19 = vcmask 523264
    %20 = vst.msk [vmem:[%s2] sm:$0xff] %vm19, 0.0
    %21 = vst.msk [vmem:[%s2 + $0x8] sm:$0xff] %vm19, 0.0
    %22 = vst.msk [vmem:[%s2 + $0x10] sm:$0xff] %vm19, 0.0
    %23 = vst.msk [vmem:[%s2 + $0x18] sm:$0xff] %vm19, 0.0
    %24 = vst.msk [vmem:[%s2 + $0x20] sm:$0xff] %vm19, 0.0
    %25 = vst.msk [vmem:[%s2 + $0x28] sm:$0xff] %vm19, 0.0
    %26 = vst.msk [vmem:[%s2 + $0x30] sm:$0xff] %vm19, 0.0
    %27 = vst.msk [vmem:[%s2 + $0x38] sm:$0xff] %vm19, 0.0
    %28 = vst.msk [vmem:[%s2 + $0x40] sm:$0xff] %vm19, 0.0
    %29 = vst.msk [vmem:[%s2 + $0x48] sm:$0xff] %vm19, 0.0
    %30 = vst.msk [vmem:[%s2 + $0x50] sm:$0xff] %vm19, 0.0
    %31 = vst.msk [vmem:[%s2 + $0x58] sm:$0xff] %vm19, 0.0
    %32 = vst.msk [vmem:[%s2 + $0x60] sm:$0xff] %vm19, 0.0
    %33 = vst.msk [vmem:[%s2 + $0x68] sm:$0xff] %vm19, 0.0
    %34 = vst.msk [vmem:[%s2 + $0x70] sm:$0xff] %vm19, 0.0
    %35 = vst.msk [vmem:[%s2 + $0x78] sm:$0xff] %vm19, 0.0
    %36 = vst.msk [vmem:[%s2 + $0x80] sm:$0xff] %vm19, 0.0
    %37 = vst.msk [vmem:[%s2 + $0x88] sm:$0xff] %vm19, 0.0
    %38 = vst.msk [vmem:[%s2 + $0x90] sm:$0xff] %vm19, 0.0
    %39 = vst.msk [vmem:[%s2 + $0x98] sm:$0xff] %vm19, 0.0
    %40 = vst.msk [vmem:[%s2 + $0xa0] sm:$0xff] %vm19, 0.0
    %41 = vst.msk [vmem:[%s2 + $0xa8] sm:$0xff] %vm19, 0.0
    %42 = vst.msk [vmem:[%s2 + $0xb0] sm:$0xff] %vm19, 0.0
    %43 = vst.msk [vmem:[%s2 + $0xb8] sm:$0xff] %vm19, 0.0
    %44 = vst.msk [vmem:[%s2 + $0xc0] sm:$0xff] %vm19, 0.0
    %45 = vst.msk [vmem:[%s2 + $0xc8] sm:$0xff] %vm19, 0.0
    %46 = vst.msk [vmem:[%s2 + $0xd0] sm:$0xff] %vm19, 0.0
    %47 = vst.msk [vmem:[%s2 + $0xd8] sm:$0xff] %vm19, 0.0
    %48 = vst.msk [vmem:[%s2 + $0xe0] sm:$0xff] %vm19, 0.0
    %49 = vst.msk [vmem:[%s2 + $0xe8] sm:$0xff] %vm19, 0.0
    %50 = vst.msk [vmem:[%s2 + $0xf0] sm:$0xff] %vm19, 0.0
    %51 = vst.msk [vmem:[%s2 + $0xf8] sm:$0xff] %vm19, 0.0
    %52 = vst.msk [vmem:[%s2 + $0x100] sm:$0xff] %vm19, 0.0
    %53 = vst.msk [vmem:[%s2 + $0x108] sm:$0xff] %vm19, 0.0
    %54 = vst.msk [vmem:[%s2 + $0x110] sm:$0xff] %vm19, 0.0
    %55 = vst.msk [vmem:[%s2 + $0x118] sm:$0xff] %vm19, 0.0
    %56 = vst.msk [vmem:[%s2 + $0x120] sm:$0xff] %vm19, 0.0
    %57 = vst.msk [vmem:[%s2 + $0x128] sm:$0xff] %vm19, 0.0
    %58 = vst.msk [vmem:[%s2 + $0x130] sm:$0xff] %vm19, 0.0
    %59 = vst.msk [vmem:[%s2 + $0x138] sm:$0xff] %vm19, 0.0
    %60 = vst.msk [vmem:[%s2 + $0x140] sm:$0xff] %vm19, 0.0
    %61 = vst.msk [vmem:[%s2 + $0x148] sm:$0xff] %vm19, 0.0
    %62 = vst.msk [vmem:[%s2 + $0x150] sm:$0xff] %vm19, 0.0
    %63 = vst.msk [vmem:[%s2 + $0x158] sm:$0xff] %vm19, 0.0
    %64 = vst.msk [vmem:[%s2 + $0x160] sm:$0xff] %vm19, 0.0
    %65 = vst.msk [vmem:[%s2 + $0x168] sm:$0xff] %vm19, 0.0
    %66 = vst.msk [vmem:[%s2 + $0x170] sm:$0xff] %vm19, 0.0
    %67 = vst.msk [vmem:[%s2 + $0x178] sm:$0xff] %vm19, 0.0
    %68 = vst.msk [vmem:[%s2 + $0x180] sm:$0xff] %vm19, 0.0
    %69 = vst.msk [vmem:[%s2 + $0x188] sm:$0xff] %vm19, 0.0
    %70 = vst.msk [vmem:[%s2 + $0x190] sm:$0xff] %vm19, 0.0
    %71 = vst.msk [vmem:[%s2 + $0x198] sm:$0xff] %vm19, 0.0
    %72 = vst.msk [vmem:[%s2 + $0x1a0] sm:$0xff] %vm19, 0.0
    %73 = vst.msk [vmem:[%s2 + $0x1a8] sm:$0xff] %vm19, 0.0
    %74 = vst.msk [vmem:[%s2 + $0x1b0] sm:$0xff] %vm19, 0.0
    %75 = vst.msk [vmem:[%s2 + $0x1b8] sm:$0xff] %vm19, 0.0
    %76 = vst.msk [vmem:[%s2 + $0x1c0] sm:$0xff] %vm19, 0.0
    %77 = vst.msk [vmem:[%s2 + $0x1c8] sm:$0xff] %vm19, 0.0
    %78 = vst.msk [vmem:[%s2 + $0x1d0] sm:$0xff] %vm19, 0.0
    %79 = vst.msk [vmem:[%s2 + $0x1d8] sm:$0xff] %vm19, 0.0
    %80 = vst.msk [vmem:[%s2 + $0x1e0] sm:$0xff] %vm19, 0.0
    %81 = vst.msk [vmem:[%s2 + $0x1e8] sm:$0xff] %vm19, 0.0
    %82 = vst.msk [vmem:[%s2 + $0x1f0] sm:$0xff] %vm19, 0.0
    %83 = vst.msk [vmem:[%s2 + $0x1f8] sm:$0xff] %vm19, 0.0
  $region13: #{_lambda_.4} parent=0 // pred_fallthru
    _
  %v84 = vld [vmem:[%s2] sm:$0xff]
  %v85 = vld [vmem:[%s2 + $0x8] sm:$0xff]
  %v86 = vld [vmem:[%s2 + $0x10] sm:$0xff]
  %v87 = vld [vmem:[%s2 + $0x18] sm:$0xff]
  %v88 = vld [vmem:[%s2 + $0x20] sm:$0xff]
  %v89 = vld [vmem:[%s2 + $0x28] sm:$0xff]
  %v90 = vld [vmem:[%s2 + $0x30] sm:$0xff]
  %v91 = vld [vmem:[%s2 + $0x38] sm:$0xff]
  %v92 = vld [vmem:[%s2 + $0x40] sm:$0xff]
  %v93 = vld [vmem:[%s2 + $0x48] sm:$0xff]
  %v94 = vld [vmem:[%s2 + $0x50] sm:$0xff]
  %v95 = vld [vmem:[%s2 + $0x58] sm:$0xff]
  %v96 = vld [vmem:[%s2 + $0x60] sm:$0xff]
  %v97 = vld [vmem:[%s2 + $0x68] sm:$0xff]
  %v98 = vld [vmem:[%s2 + $0x70] sm:$0xff]
  %v99 = vld [vmem:[%s2 + $0x78] sm:$0xff]
  %v100 = vld [vmem:[%s2 + $0x80] sm:$0xff]
  %v101 = vld [vmem:[%s2 + $0x88] sm:$0xff]
  %v102 = vld [vmem:[%s2 + $0x90] sm:$0xff]
  %v103 = vld [vmem:[%s2 + $0x98] sm:$0xff]
  %v104 = vld [vmem:[%s2 + $0xa0] sm:$0xff]
  %v105 = vld [vmem:[%s2 + $0xa8] sm:$0xff]
  %v106 = vld [vmem:[%s2 + $0xb0] sm:$0xff]
  %v107 = vld [vmem:[%s2 + $0xb8] sm:$0xff]
  %v108 = vld [vmem:[%s2 + $0xc0] sm:$0xff]
  %v109 = vld [vmem:[%s2 + $0xc8] sm:$0xff]
  %v110 = vld [vmem:[%s2 + $0xd0] sm:$0xff]
  %v111 = vld [vmem:[%s2 + $0xd8] sm:$0xff]
  %v112 = vld [vmem:[%s2 + $0xe0] sm:$0xff]
  %v113 = vld [vmem:[%s2 + $0xe8] sm:$0xff]
  %v114 = vld [vmem:[%s2 + $0xf0] sm:$0xff]
  %v115 = vld [vmem:[%s2 + $0xf8] sm:$0xff]
  %v116 = vld [vmem:[%s2 + $0x100] sm:$0xff]
  %v117 = vld [vmem:[%s2 + $0x108] sm:$0xff]
  %v118 = vld [vmem:[%s2 + $0x110] sm:$0xff]
  %v119 = vld [vmem:[%s2 + $0x118] sm:$0xff]
  %v120 = vld [vmem:[%s2 + $0x120] sm:$0xff]
  %v121 = vld [vmem:[%s2 + $0x128] sm:$0xff]
  %v122 = vld [vmem:[%s2 + $0x130] sm:$0xff]
  %v123 = vld [vmem:[%s2 + $0x138] sm:$0xff]
  %v124 = vld [vmem:[%s2 + $0x140] sm:$0xff]
  %v125 = vld [vmem:[%s2 + $0x148] sm:$0xff]
  %v126 = vld [vmem:[%s2 + $0x150] sm:$0xff]
  %v127 = vld [vmem:[%s2 + $0x158] sm:$0xff]
  %v128 = vld [vmem:[%s2 + $0x160] sm:$0xff]
  %v129 = vld [vmem:[%s2 + $0x168] sm:$0xff]
  %v130 = vld [vmem:[%s2 + $0x170] sm:$0xff]
  %v131 = vld [vmem:[%s2 + $0x178] sm:$0xff]
  %v132 = vld [vmem:[%s2 + $0x180] sm:$0xff]
  %v133 = vld [vmem:[%s2 + $0x188] sm:$0xff]
  %v134 = vld [vmem:[%s2 + $0x190] sm:$0xff]
  %v135 = vld [vmem:[%s2 + $0x198] sm:$0xff]
  %v136 = vld [vmem:[%s2 + $0x1a0] sm:$0xff]
  %v137 = vld [vmem:[%s2 + $0x1a8] sm:$0xff]
  %v138 = vld [vmem:[%s2 + $0x1b0] sm:$0xff]
  %v139 = vld [vmem:[%s2 + $0x1b8] sm:$0xff]
  %v140 = vld [vmem:[%s2 + $0x1c0] sm:$0xff]
  %v141 = vld [vmem:[%s2 + $0x1c8] sm:$0xff]
  %v142 = vld [vmem:[%s2 + $0x1d0] sm:$0xff]
  %v143 = vld [vmem:[%s2 + $0x1d8] sm:$0xff]
  %v144 = vld [vmem:[%s2 + $0x1e0] sm:$0xff]
  %v145 = vld [vmem:[%s2 + $0x1e8] sm:$0xff]
  %v146 = vld [vmem:[%s2 + $0x1f0] sm:$0xff]
  %v147 = vld [vmem:[%s2 + $0x1f8] sm:$0xff]
  %v148 = vld [vmem:[%s0] sm:$0xff]
  %v149 = vld [vmem:[%s0 + $0x8] sm:$0xff]
  %v150 = vld [vmem:[%s0 + $0x10] sm:$0xf]
  %v151 = vld [vmem:[%s0 + $0x14] sm:$0xff]
  %v152 = vld [vmem:[%s0 + $0x1c] sm:$0xff]
  %v153 = vld [vmem:[%s0 + $0x24] sm:$0xf]
  %v154 = vld [vmem:[%s0 + $0x28] sm:$0xff]
  %v155 = vld [vmem:[%s0 + $0x30] sm:$0xff]
  %v156 = vld [vmem:[%s0 + $0x38] sm:$0xf]
  %v157 = vld [vmem:[%s0 + $0x3c] sm:$0xff]
  %v158 = vld [vmem:[%s0 + $0x44] sm:$0xff]
  %v159 = vld [vmem:[%s0 + $0x4c] sm:$0xf]
  %v160 = vld [vmem:[%s0 + $0x50] sm:$0xff]
  %v161 = vld [vmem:[%s0 + $0x58] sm:$0xff]
  %v162 = vld [vmem:[%s0 + $0x60] sm:$0xf]
  %v163 = vld [vmem:[%s0 + $0x64] sm:$0xff]
  %v164 = vld [vmem:[%s0 + $0x6c] sm:$0xff]
  %v165 = vld [vmem:[%s0 + $0x74] sm:$0xf]
  %v166 = vld [vmem:[%s0 + $0x78] sm:$0xff]
  %v167 = vld [vmem:[%s0 + $0x80] sm:$0xff]
  %v168 = vld [vmem:[%s0 + $0x88] sm:$0xf]
  %v169 = vld [vmem:[%s0 + $0x8c] sm:$0xff]
  %v170 = vld [vmem:[%s0 + $0x94] sm:$0xff]
  %v171 = vld [vmem:[%s0 + $0x9c] sm:$0xf]
  %v172 = vld [vmem:[%s0 + $0xa0] sm:$0xff]
  %v173 = vld [vmem:[%s0 + $0xa8] sm:$0xff]
  %v174 = vld [vmem:[%s0 + $0xb0] sm:$0xf]
  %v175 = vld [vmem:[%s0 + $0xb4] sm:$0xff]
  %v176 = vld [vmem:[%s0 + $0xbc] sm:$0xff]
  %v177 = vld [vmem:[%s0 + $0xc4] sm:$0xf]
  %v178 = vld [vmem:[%s0 + $0xc8] sm:$0xff]
  %v179 = vld [vmem:[%s0 + $0xd0] sm:$0xff]
  %v180 = vld [vmem:[%s0 + $0xd8] sm:$0xf]
  %v181 = vld [vmem:[%s0 + $0xdc] sm:$0xff]
  %v182 = vld [vmem:[%s0 + $0xe4] sm:$0xff]
  %v183 = vld [vmem:[%s0 + $0xec] sm:$0xf]
  %v184 = vld [vmem:[%s0 + $0xf0] sm:$0xff]
  %v185 = vld [vmem:[%s0 + $0xf8] sm:$0xff]
  %v186 = vld [vmem:[%s0 + $0x100] sm:$0xf]
  %v187 = vld [vmem:[%s0 + $0x104] sm:$0xff]
  %v188 = vld [vmem:[%s0 + $0x10c] sm:$0xff]
  %v189 = vld [vmem:[%s0 + $0x114] sm:$0xf]
  %v190 = vld [vmem:[%s0 + $0x118] sm:$0xff]
  %v191 = vld [vmem:[%s0 + $0x120] sm:$0xff]
  %v192 = vld [vmem:[%s0 + $0x128] sm:$0xf]
  %v193 = vld [vmem:[%s0 + $0x12c] sm:$0xff]
  %v194 = vld [vmem:[%s0 + $0x134] sm:$0xff]
  %v195 = vld [vmem:[%s0 + $0x13c] sm:$0xf]
  %v196 = vld [vmem:[%s0 + $0x140] sm:$0xff]
  %v197 = vld [vmem:[%s0 + $0x148] sm:$0xff]
  %v198 = vld [vmem:[%s0 + $0x150] sm:$0xf]
  %v199 = vld [vmem:[%s0 + $0x154] sm:$0xff]
  %v200 = vld [vmem:[%s0 + $0x15c] sm:$0xff]
  %v201 = vld [vmem:[%s0 + $0x164] sm:$0xf]
  %v202 = vld [vmem:[%s0 + $0x168] sm:$0xff]
  %v203 = vld [vmem:[%s0 + $0x170] sm:$0xff]
  %v204 = vld [vmem:[%s0 + $0x178] sm:$0xf]
  %v205 = vld [vmem:[%s0 + $0x17c] sm:$0xff]
  %v206 = vld [vmem:[%s0 + $0x184] sm:$0xff]
  %v207 = vld [vmem:[%s0 + $0x18c] sm:$0xf]
  %v208 = vld [vmem:[%s0 + $0x190] sm:$0xff]
  %v209 = vld [vmem:[%s0 + $0x198] sm:$0xff]
  %v210 = vld [vmem:[%s0 + $0x1a0] sm:$0xf]
  %v211 = vld [vmem:[%s0 + $0x1a4] sm:$0xff]
  %v212 = vld [vmem:[%s0 + $0x1ac] sm:$0xff]
  %v213 = vld [vmem:[%s0 + $0x1b4] sm:$0xf]
  %v214 = vld [vmem:[%s0 + $0x1b8] sm:$0xff]
  %v215 = vld [vmem:[%s0 + $0x1c0] sm:$0xff]
  %v216 = vld [vmem:[%s0 + $0x1c8] sm:$0xf]
  %v217 = vld [vmem:[%s0 + $0x1cc] sm:$0xff]
  %v218 = vld [vmem:[%s0 + $0x1d4] sm:$0xff]
  %v219 = vld [vmem:[%s0 + $0x1dc] sm:$0xf]
  %v220 = vld [vmem:[%s0 + $0x1e0] sm:$0xff]
  %v221 = vld [vmem:[%s0 + $0x1e8] sm:$0xff]
  %v222 = vld [vmem:[%s0 + $0x1f0] sm:$0xf]
  %v223 = vld [vmem:[%s0 + $0x1f4] sm:$0xff]
  %v224 = vld [vmem:[%s0 + $0x1fc] sm:$0xff]
  %v225 = vld [vmem:[%s0 + $0x204] sm:$0xf]
  %v226 = vld [vmem:[%s0 + $0x208] sm:$0xff]
  %v227 = vld [vmem:[%s0 + $0x210] sm:$0xff]
  %v228 = vld [vmem:[%s0 + $0x218] sm:$0xf]
  %v229 = vld [vmem:[%s0 + $0x21c] sm:$0xff]
  %v230 = vld [vmem:[%s0 + $0x224] sm:$0xff]
  %v231 = vld [vmem:[%s0 + $0x22c] sm:$0xf]
  %v232 = vld [vmem:[%s0 + $0x230] sm:$0xff]
  %v233 = vld [vmem:[%s0 + $0x238] sm:$0xff]
  %v234 = vld [vmem:[%s0 + $0x240] sm:$0xf]
  %v235 = vld [vmem:[%s0 + $0x244] sm:$0xff]
  %v236 = vld [vmem:[%s0 + $0x24c] sm:$0xff]
  %v237 = vld [vmem:[%s0 + $0x254] sm:$0xf]
  %v238 = vld [vmem:[%s0 + $0x258] sm:$0xff]
  %v239 = vld [vmem:[%s0 + $0x260] sm:$0xff]
  %v240 = vld [vmem:[%s0 + $0x268] sm:$0xf]
  %v241 = vld [vmem:[%s0 + $0x26c] sm:$0xff]
  %v242 = vld [vmem:[%s0 + $0x274] sm:$0xff]
  %v243 = vld [vmem:[%s0 + $0x27c] sm:$0xf]
  %v244 = vld [vmem:[%s0 + $0x280] sm:$0xff]
  %v245 = vld [vmem:[%s0 + $0x288] sm:$0xff]
  %v246 = vld [vmem:[%s0 + $0x290] sm:$0xf]
  %v247 = vld [vmem:[%s0 + $0x294] sm:$0xff]
  %v248 = vld [vmem:[%s0 + $0x29c] sm:$0xff]
  %v249 = vld [vmem:[%s0 + $0x2a4] sm:$0xf]
  %v250 = vld [vmem:[%s0 + $0x2a8] sm:$0xff]
  %v251 = vld [vmem:[%s0 + $0x2b0] sm:$0xff]
  %v252 = vld [vmem:[%s0 + $0x2b8] sm:$0xf]
  %v253 = vld [vmem:[%s0 + $0x2bc] sm:$0xff]
  %v254 = vld [vmem:[%s0 + $0x2c4] sm:$0xff]
  %v255 = vld [vmem:[%s0 + $0x2cc] sm:$0xf]
  %v256 = vld [vmem:[%s0 + $0x2d0] sm:$0xff]
  %v257 = vld [vmem:[%s0 + $0x2d8] sm:$0xff]
  %v258 = vld [vmem:[%s0 + $0x2e0] sm:$0xf]
  %v259 = vld [vmem:[%s0 + $0x2e4] sm:$0xff]
  %v260 = vld [vmem:[%s0 + $0x2ec] sm:$0xff]
  %v261 = vld [vmem:[%s0 + $0x2f4] sm:$0xf]
  %v262 = vld [vmem:[%s0 + $0x2f8] sm:$0xff]
  %v263 = vld [vmem:[%s0 + $0x300] sm:$0xff]
  %v264 = vld [vmem:[%s0 + $0x308] sm:$0xf]
  %v265 = vld [vmem:[%s0 + $0x30c] sm:$0xff]
  %v266 = vld [vmem:[%s0 + $0x314] sm:$0xff]
  %v267 = vld [vmem:[%s0 + $0x31c] sm:$0xf]
  %v268 = vld [vmem:[%s0 + $0x320] sm:$0xff]
  %v269 = vld [vmem:[%s0 + $0x328] sm:$0xff]
  %v270 = vld [vmem:[%s0 + $0x330] sm:$0xf]
  %v271 = vld [vmem:[%s0 + $0x334] sm:$0xff]
  %v272 = vld [vmem:[%s0 + $0x33c] sm:$0xff]
  %v273 = vld [vmem:[%s0 + $0x344] sm:$0xf]
  %v274 = vld [vmem:[%s0 + $0x348] sm:$0xff]
  %v275 = vld [vmem:[%s0 + $0x350] sm:$0xff]
  %v276 = vld [vmem:[%s0 + $0x358] sm:$0xf]
  %v277 = vld [vmem:[%s0 + $0x35c] sm:$0xff]
  %v278 = vld [vmem:[%s0 + $0x364] sm:$0xff]
  %v279 = vld [vmem:[%s0 + $0x36c] sm:$0xf]
  %v280 = vld [vmem:[%s0 + $0x370] sm:$0xff]
  %v281 = vld [vmem:[%s0 + $0x378] sm:$0xff]
  %v282 = vld [vmem:[%s0 + $0x380] sm:$0xf]
  %v283 = vld [vmem:[%s0 + $0x384] sm:$0xff]
  %v284 = vld [vmem:[%s0 + $0x38c] sm:$0xff]
  %v285 = vld [vmem:[%s0 + $0x394] sm:$0xf]
  %v286 = vld [vmem:[%s0 + $0x398] sm:$0xff]
  %v287 = vld [vmem:[%s0 + $0x3a0] sm:$0xff]
  %v288 = vld [vmem:[%s0 + $0x3a8] sm:$0xf]
  %v289 = vld [vmem:[%s0 + $0x3ac] sm:$0xff]
  %v290 = vld [vmem:[%s0 + $0x3b4] sm:$0xff]
  %v291 = vld [vmem:[%s0 + $0x3bc] sm:$0xf]
  %v292 = vld [vmem:[%s0 + $0x3c0] sm:$0xff]
  %v293 = vld [vmem:[%s0 + $0x3c8] sm:$0xff]
  %v294 = vld [vmem:[%s0 + $0x3d0] sm:$0xf]
  %v295 = vld [vmem:[%s0 + $0x3d4] sm:$0xff]
  %v296 = vld [vmem:[%s0 + $0x3dc] sm:$0xff]
  %v297 = vld [vmem:[%s0 + $0x3e4] sm:$0xf]
  %v298 = vld [vmem:[%s0 + $0x3e8] sm:$0xff]
  %v299 = vld [vmem:[%s0 + $0x3f0] sm:$0xff]
  %v300 = vld [vmem:[%s0 + $0x3f8] sm:$0xf]
  %v301 = vld [vmem:[%s0 + $0x3fc] sm:$0xff]
  %v302 = vld [vmem:[%s0 + $0x404] sm:$0xff]
  %v303 = vld [vmem:[%s0 + $0x40c] sm:$0xf]
  %v304 = vld [vmem:[%s0 + $0x410] sm:$0xff]
  %v305 = vld [vmem:[%s0 + $0x418] sm:$0xff]
  %v306 = vld [vmem:[%s0 + $0x420] sm:$0xf]
  %v307 = vld [vmem:[%s0 + $0x424] sm:$0xff]
  %v308 = vld [vmem:[%s0 + $0x42c] sm:$0xff]
  %v309 = vld [vmem:[%s0 + $0x434] sm:$0xf]
  %v310 = vld [vmem:[%s0 + $0x438] sm:$0xff]
  %v311 = vld [vmem:[%s0 + $0x440] sm:$0xff]
  %v312 = vld [vmem:[%s0 + $0x448] sm:$0xf]
  %v313 = vld [vmem:[%s0 + $0x44c] sm:$0xff]
  %v314 = vld [vmem:[%s0 + $0x454] sm:$0xff]
  %v315 = vld [vmem:[%s0 + $0x45c] sm:$0xf]
  %v316 = vld [vmem:[%s0 + $0x460] sm:$0xff]
  %v317 = vld [vmem:[%s0 + $0x468] sm:$0xff]
  %v318 = vld [vmem:[%s0 + $0x470] sm:$0xf]
  %v319 = vld [vmem:[%s0 + $0x474] sm:$0xff]
  %v320 = vld [vmem:[%s0 + $0x47c] sm:$0xff]
  %v321 = vld [vmem:[%s0 + $0x484] sm:$0xf]
  %v322 = vld [vmem:[%s0 + $0x488] sm:$0xff]
  %v323 = vld [vmem:[%s0 + $0x490] sm:$0xff]
  %v324 = vld [vmem:[%s0 + $0x498] sm:$0xf]
  %v325 = vld [vmem:[%s0 + $0x49c] sm:$0xff]
  %v326 = vld [vmem:[%s0 + $0x4a4] sm:$0xff]
  %v327 = vld [vmem:[%s0 + $0x4ac] sm:$0xf]
  %v328 = vld [vmem:[%s0 + $0x4b0] sm:$0xff]
  %v329 = vld [vmem:[%s0 + $0x4b8] sm:$0xff]
  %v330 = vld [vmem:[%s0 + $0x4c0] sm:$0xf]
  %v331 = vld [vmem:[%s0 + $0x4c4] sm:$0xff]
  %v332 = vld [vmem:[%s0 + $0x4cc] sm:$0xff]
  %v333 = vld [vmem:[%s0 + $0x4d4] sm:$0xf]
  %v334 = vld [vmem:[%s0 + $0x4d8] sm:$0xff]
  %v335 = vld [vmem:[%s0 + $0x4e0] sm:$0xff]
  %v336 = vld [vmem:[%s0 + $0x4e8] sm:$0xf]
  %v337 = vld [vmem:[%s0 + $0x4ec] sm:$0xff]
  %v338 = vld [vmem:[%s0 + $0x4f4] sm:$0xff]
  %v339 = vld [vmem:[%s0 + $0x4fc] sm:$0xf]
  %v340 = vld [vmem:[%s1] sm:$0xf]
  %v341 = vld [vmem:[%s1 + $0x4] sm:$0xf]
  %v342 = vld [vmem:[%s1 + $0x8] sm:$0xf]
  %v343 = vld [vmem:[%s1 + $0xc] sm:$0xf]
  %v344 = vld [vmem:[%s1 + $0x10] sm:$0xf]
  %v345 = vld [vmem:[%s1 + $0x14] sm:$0xf]
  %v346 = vld [vmem:[%s1 + $0x18] sm:$0xf]
  %v347 = vld [vmem:[%s1 + $0x1c] sm:$0xf]
  %v348 = vld [vmem:[%s1 + $0x20] sm:$0xf]
  %v349 = vld [vmem:[%s1 + $0x24] sm:$0xf]
  %v350 = vld [vmem:[%s1 + $0x28] sm:$0xf]
  %v351 = vld [vmem:[%s1 + $0x2c] sm:$0xf]
  %v352 = vld [vmem:[%s1 + $0x30] sm:$0xf]
  %v353 = vld [vmem:[%s1 + $0x34] sm:$0xf]
  %v354 = vld [vmem:[%s1 + $0x38] sm:$0xf]
  %v355 = vld [vmem:[%s1 + $0x3c] sm:$0xf]
  %v356 = vld [vmem:[%s1 + $0x40] sm:$0xf]
  %v357 = vld [vmem:[%s1 + $0x44] sm:$0xf]
  %v358 = vld [vmem:[%s1 + $0x48] sm:$0xf]
  %v359 = vld [vmem:[%s1 + $0x4c] sm:$0xf]
  %v360 = vld [vmem:[%s1 + $0x50] sm:$0xf]
  %v361 = vld [vmem:[%s1 + $0x54] sm:$0xf]
  %v362 = vld [vmem:[%s1 + $0x58] sm:$0xf]
  %v363 = vld [vmem:[%s1 + $0x5c] sm:$0xf]
  %v364 = vld [vmem:[%s1 + $0x60] sm:$0xf]
  %v365 = vld [vmem:[%s1 + $0x64] sm:$0xf]
  %v366 = vld [vmem:[%s1 + $0x68] sm:$0xf]
  %v367 = vld [vmem:[%s1 + $0x6c] sm:$0xf]
  %v368 = vld [vmem:[%s1 + $0x70] sm:$0xf]
  %v369 = vld [vmem:[%s1 + $0x74] sm:$0xf]
  %v370 = vld [vmem:[%s1 + $0x78] sm:$0xf]
  %v371 = vld [vmem:[%s1 + $0x7c] sm:$0xf]
  %v372 = vld [vmem:[%s1 + $0x80] sm:$0xf]
  %v373 = vld [vmem:[%s1 + $0x84] sm:$0xf]
  %v374 = vld [vmem:[%s1 + $0x88] sm:$0xf]
  %v375 = vld [vmem:[%s1 + $0x8c] sm:$0xf]
  %v376 = vld [vmem:[%s1 + $0x90] sm:$0xf]
  %v377 = vld [vmem:[%s1 + $0x94] sm:$0xf]
  %v378 = vld [vmem:[%s1 + $0x98] sm:$0xf]
  %v379 = vld [vmem:[%s1 + $0x9c] sm:$0xf]
  %v380 = vld [vmem:[%s1 + $0xa0] sm:$0xf]
  %v381 = vld [vmem:[%s1 + $0xa4] sm:$0xf]
  %v382 = vld [vmem:[%s1 + $0xa8] sm:$0xf]
  %v383 = vld [vmem:[%s1 + $0xac] sm:$0xf]
  %v384 = vld [vmem:[%s1 + $0xb0] sm:$0xf]
  %v385 = vld [vmem:[%s1 + $0xb4] sm:$0xf]
  %v386 = vld [vmem:[%s1 + $0xb8] sm:$0xf]
  %v387 = vld [vmem:[%s1 + $0xbc] sm:$0xf]
  %v388 = vld [vmem:[%s1 + $0xc0] sm:$0xf]
  %v389 = vld [vmem:[%s1 + $0xc4] sm:$0xf]
  %v390 = vld [vmem:[%s1 + $0xc8] sm:$0xf]
  %v391 = vld [vmem:[%s1 + $0xcc] sm:$0xf]
  %v392 = vld [vmem:[%s1 + $0xd0] sm:$0xf]
  %v393 = vld [vmem:[%s1 + $0xd4] sm:$0xf]
  %v394 = vld [vmem:[%s1 + $0xd8] sm:$0xf]
  %v395 = vld [vmem:[%s1 + $0xdc] sm:$0xf]
  %v396 = vld [vmem:[%s1 + $0xe0] sm:$0xf]
  %v397 = vld [vmem:[%s1 + $0xe4] sm:$0xf]
  %v398 = vld [vmem:[%s1 + $0xe8] sm:$0xf]
  %v399 = vld [vmem:[%s1 + $0xec] sm:$0xf]
  %v400 = vld [vmem:[%s1 + $0xf0] sm:$0xf]
  %v401 = vld [vmem:[%s1 + $0xf4] sm:$0xf]
  %v402 = vld [vmem:[%s1 + $0xf8] sm:$0xf]
  %v403 = vld [vmem:[%s1 + $0xfc] sm:$0xf]
  %v404 = vld [vmem:[%s1 + $0x100] sm:$0xf]
  %v405 = vld [vmem:[%s1 + $0x104] sm:$0xf]
  %v406 = vld [vmem:[%s1 + $0x108] sm:$0xf]
  %v407 = vld [vmem:[%s1 + $0x10c] sm:$0xf]
  %v408 = vld [vmem:[%s1 + $0x110] sm:$0xf]
  %v409 = vld [vmem:[%s1 + $0x114] sm:$0xf]
  %v410 = vld [vmem:[%s1 + $0x118] sm:$0xf]
  %v411 = vld [vmem:[%s1 + $0x11c] sm:$0xf]
  %v604 = vunpack.c.l.b16 %v148
  %v605 = vunpack.c.h.b16 %v148
  %v606 = vunpack.c.l.b16 %v149
  %v607 = vunpack.c.h.b16 %v149
  %v608 = vunpack.c.l.b16 %v150
  %v609 = vunpack.c.l.b16 %v151
  %v610 = vunpack.c.h.b16 %v151
  %v611 = vunpack.c.l.b16 %v152
  %v612 = vunpack.c.h.b16 %v152
  %v613 = vunpack.c.l.b16 %v153
  %v614 = vunpack.c.l.b16 %v154
  %v615 = vunpack.c.h.b16 %v154
  %v616 = vunpack.c.l.b16 %v155
  %v617 = vunpack.c.h.b16 %v155
  %v618 = vunpack.c.l.b16 %v156
  %v619 = vunpack.c.l.b16 %v157
  %v620 = vunpack.c.h.b16 %v157
  %v621 = vunpack.c.l.b16 %v158
  %v622 = vunpack.c.h.b16 %v158
  %v623 = vunpack.c.l.b16 %v159
  %v624 = vunpack.c.l.b16 %v160
  %v625 = vunpack.c.h.b16 %v160
  %v626 = vunpack.c.l.b16 %v161
  %v627 = vunpack.c.h.b16 %v161
  %v628 = vunpack.c.l.b16 %v162
  %v629 = vunpack.c.l.b16 %v163
  %v630 = vunpack.c.h.b16 %v163
  %v631 = vunpack.c.l.b16 %v164
  %v632 = vunpack.c.h.b16 %v164
  %v633 = vunpack.c.l.b16 %v165
  %v634 = vunpack.c.l.b16 %v166
  %v635 = vunpack.c.h.b16 %v166
  %v636 = vunpack.c.l.b16 %v167
  %v637 = vunpack.c.h.b16 %v167
  %v638 = vunpack.c.l.b16 %v168
  %v639 = vunpack.c.l.b16 %v169
  %v640 = vunpack.c.h.b16 %v169
  %v641 = vunpack.c.l.b16 %v170
  %v642 = vunpack.c.h.b16 %v170
  %v643 = vunpack.c.l.b16 %v171
  %v644 = vunpack.c.l.b16 %v172
  %v645 = vunpack.c.h.b16 %v172
  %v646 = vunpack.c.l.b16 %v173
  %v647 = vunpack.c.h.b16 %v173
  %v648 = vunpack.c.l.b16 %v174
  %v649 = vunpack.c.l.b16 %v175
  %v650 = vunpack.c.h.b16 %v175
  %v651 = vunpack.c.l.b16 %v176
  %v652 = vunpack.c.h.b16 %v176
  %v653 = vunpack.c.l.b16 %v177
  %v654 = vunpack.c.l.b16 %v178
  %v655 = vunpack.c.h.b16 %v178
  %v656 = vunpack.c.l.b16 %v179
  %v657 = vunpack.c.h.b16 %v179
  %v658 = vunpack.c.l.b16 %v180
  %v659 = vunpack.c.l.b16 %v181
  %v660 = vunpack.c.h.b16 %v181
  %v661 = vunpack.c.l.b16 %v182
  %v662 = vunpack.c.h.b16 %v182
  %v663 = vunpack.c.l.b16 %v183
  %v664 = vunpack.c.l.b16 %v184
  %v665 = vunpack.c.h.b16 %v184
  %v666 = vunpack.c.l.b16 %v185
  %v667 = vunpack.c.h.b16 %v185
  %v668 = vunpack.c.l.b16 %v186
  %v669 = vunpack.c.l.b16 %v187
  %v670 = vunpack.c.h.b16 %v187
  %v671 = vunpack.c.l.b16 %v188
  %v672 = vunpack.c.h.b16 %v188
  %v673 = vunpack.c.l.b16 %v189
  %v674 = vunpack.c.l.b16 %v190
  %v675 = vunpack.c.h.b16 %v190
  %v676 = vunpack.c.l.b16 %v191
  %v677 = vunpack.c.h.b16 %v191
  %v678 = vunpack.c.l.b16 %v192
  %v679 = vunpack.c.l.b16 %v193
  %v680 = vunpack.c.h.b16 %v193
  %v681 = vunpack.c.l.b16 %v194
  %v682 = vunpack.c.h.b16 %v194
  %v683 = vunpack.c.l.b16 %v195
  %v684 = vunpack.c.l.b16 %v196
  %v685 = vunpack.c.h.b16 %v196
  %v686 = vunpack.c.l.b16 %v197
  %v687 = vunpack.c.h.b16 %v197
  %v688 = vunpack.c.l.b16 %v198
  %v689 = vunpack.c.l.b16 %v199
  %v690 = vunpack.c.h.b16 %v199
  %v691 = vunpack.c.l.b16 %v200
  %v692 = vunpack.c.h.b16 %v200
  %v693 = vunpack.c.l.b16 %v201
  %v694 = vunpack.c.l.b16 %v202
  %v695 = vunpack.c.h.b16 %v202
  %v696 = vunpack.c.l.b16 %v203
  %v697 = vunpack.c.h.b16 %v203
  %v698 = vunpack.c.l.b16 %v204
  %v699 = vunpack.c.l.b16 %v205
  %v700 = vunpack.c.h.b16 %v205
  %v701 = vunpack.c.l.b16 %v206
  %v702 = vunpack.c.h.b16 %v206
  %v703 = vunpack.c.l.b16 %v207
  %v704 = vunpack.c.l.b16 %v208
  %v705 = vunpack.c.h.b16 %v208
  %v706 = vunpack.c.l.b16 %v209
  %v707 = vunpack.c.h.b16 %v209
  %v708 = vunpack.c.l.b16 %v210
  %v709 = vunpack.c.l.b16 %v211
  %v710 = vunpack.c.h.b16 %v211
  %v711 = vunpack.c.l.b16 %v212
  %v712 = vunpack.c.h.b16 %v212
  %v713 = vunpack.c.l.b16 %v213
  %v714 = vunpack.c.l.b16 %v214
  %v715 = vunpack.c.h.b16 %v214
  %v716 = vunpack.c.l.b16 %v215
  %v717 = vunpack.c.h.b16 %v215
  %v718 = vunpack.c.l.b16 %v216
  %v719 = vunpack.c.l.b16 %v217
  %v720 = vunpack.c.h.b16 %v217
  %v721 = vunpack.c.l.b16 %v218
  %v722 = vunpack.c.h.b16 %v218
  %v723 = vunpack.c.l.b16 %v219
  %v724 = vunpack.c.l.b16 %v220
  %v725 = vunpack.c.h.b16 %v220
  %v726 = vunpack.c.l.b16 %v221
  %v727 = vunpack.c.h.b16 %v221
  %v728 = vunpack.c.l.b16 %v222
  %v729 = vunpack.c.l.b16 %v223
  %v730 = vunpack.c.h.b16 %v223
  %v731 = vunpack.c.l.b16 %v224
  %v732 = vunpack.c.h.b16 %v224
  %v733 = vunpack.c.l.b16 %v225
  %v734 = vunpack.c.l.b16 %v226
  %v735 = vunpack.c.h.b16 %v226
  %v736 = vunpack.c.l.b16 %v227
  %v737 = vunpack.c.h.b16 %v227
  %v738 = vunpack.c.l.b16 %v228
  %v739 = vunpack.c.l.b16 %v229
  %v740 = vunpack.c.h.b16 %v229
  %v741 = vunpack.c.l.b16 %v230
  %v742 = vunpack.c.h.b16 %v230
  %v743 = vunpack.c.l.b16 %v231
  %v744 = vunpack.c.l.b16 %v232
  %v745 = vunpack.c.h.b16 %v232
  %v746 = vunpack.c.l.b16 %v233
  %v747 = vunpack.c.h.b16 %v233
  %v748 = vunpack.c.l.b16 %v234
  %v749 = vunpack.c.l.b16 %v235
  %v750 = vunpack.c.h.b16 %v235
  %v751 = vunpack.c.l.b16 %v236
  %v752 = vunpack.c.h.b16 %v236
  %v753 = vunpack.c.l.b16 %v237
  %v754 = vunpack.c.l.b16 %v238
  %v755 = vunpack.c.h.b16 %v238
  %v756 = vunpack.c.l.b16 %v239
  %v757 = vunpack.c.h.b16 %v239
  %v758 = vunpack.c.l.b16 %v240
  %v759 = vunpack.c.l.b16 %v241
  %v760 = vunpack.c.h.b16 %v241
  %v761 = vunpack.c.l.b16 %v242
  %v762 = vunpack.c.h.b16 %v242
  %v763 = vunpack.c.l.b16 %v243
  %v764 = vunpack.c.l.b16 %v244
  %v765 = vunpack.c.h.b16 %v244
  %v766 = vunpack.c.l.b16 %v245
  %v767 = vunpack.c.h.b16 %v245
  %v768 = vunpack.c.l.b16 %v246
  %v769 = vunpack.c.l.b16 %v247
  %v770 = vunpack.c.h.b16 %v247
  %v771 = vunpack.c.l.b16 %v248
  %v772 = vunpack.c.h.b16 %v248
  %v773 = vunpack.c.l.b16 %v249
  %v774 = vunpack.c.l.b16 %v250
  %v775 = vunpack.c.h.b16 %v250
  %v776 = vunpack.c.l.b16 %v251
  %v777 = vunpack.c.h.b16 %v251
  %v778 = vunpack.c.l.b16 %v252
  %v779 = vunpack.c.l.b16 %v253
  %v780 = vunpack.c.h.b16 %v253
  %v781 = vunpack.c.l.b16 %v254
  %v782 = vunpack.c.h.b16 %v254
  %v783 = vunpack.c.l.b16 %v255
  %v784 = vunpack.c.l.b16 %v256
  %v785 = vunpack.c.h.b16 %v256
  %v786 = vunpack.c.l.b16 %v257
  %v787 = vunpack.c.h.b16 %v257
  %v788 = vunpack.c.l.b16 %v258
  %v789 = vunpack.c.l.b16 %v259
  %v790 = vunpack.c.h.b16 %v259
  %v791 = vunpack.c.l.b16 %v260
  %v792 = vunpack.c.h.b16 %v260
  %v793 = vunpack.c.l.b16 %v261
  %v794 = vunpack.c.l.b16 %v262
  %v795 = vunpack.c.h.b16 %v262
  %v796 = vunpack.c.l.b16 %v263
  %v797 = vunpack.c.h.b16 %v263
  %v798 = vunpack.c.l.b16 %v264
  %v799 = vunpack.c.l.b16 %v265
  %v800 = vunpack.c.h.b16 %v265
  %v801 = vunpack.c.l.b16 %v266
  %v802 = vunpack.c.h.b16 %v266
  %v803 = vunpack.c.l.b16 %v267
  %v804 = vunpack.c.l.b16 %v268
  %v805 = vunpack.c.h.b16 %v268
  %v806 = vunpack.c.l.b16 %v269
  %v807 = vunpack.c.h.b16 %v269
  %v808 = vunpack.c.l.b16 %v270
  %v809 = vunpack.c.l.b16 %v271
  %v810 = vunpack.c.h.b16 %v271
  %v811 = vunpack.c.l.b16 %v272
  %v812 = vunpack.c.h.b16 %v272
  %v813 = vunpack.c.l.b16 %v273
  %v814 = vunpack.c.l.b16 %v274
  %v815 = vunpack.c.h.b16 %v274
  %v816 = vunpack.c.l.b16 %v275
  %v817 = vunpack.c.h.b16 %v275
  %v818 = vunpack.c.l.b16 %v276
  %v819 = vunpack.c.l.b16 %v277
  %v820 = vunpack.c.h.b16 %v277
  %v821 = vunpack.c.l.b16 %v278
  %v822 = vunpack.c.h.b16 %v278
  %v823 = vunpack.c.l.b16 %v279
  %v824 = vunpack.c.l.b16 %v280
  %v825 = vunpack.c.h.b16 %v280
  %v826 = vunpack.c.l.b16 %v281
  %v827 = vunpack.c.h.b16 %v281
  %v828 = vunpack.c.l.b16 %v282
  %v829 = vunpack.c.l.b16 %v283
  %v830 = vunpack.c.h.b16 %v283
  %v831 = vunpack.c.l.b16 %v284
  %v832 = vunpack.c.h.b16 %v284
  %v833 = vunpack.c.l.b16 %v285
  %v834 = vunpack.c.l.b16 %v286
  %v835 = vunpack.c.h.b16 %v286
  %v836 = vunpack.c.l.b16 %v287
  %v837 = vunpack.c.h.b16 %v287
  %v838 = vunpack.c.l.b16 %v288
  %v839 = vunpack.c.l.b16 %v289
  %v840 = vunpack.c.h.b16 %v289
  %v841 = vunpack.c.l.b16 %v290
  %v842 = vunpack.c.h.b16 %v290
  %v843 = vunpack.c.l.b16 %v291
  %v844 = vunpack.c.l.b16 %v292
  %v845 = vunpack.c.h.b16 %v292
  %v846 = vunpack.c.l.b16 %v293
  %v847 = vunpack.c.h.b16 %v293
  %v848 = vunpack.c.l.b16 %v294
  %v849 = vunpack.c.l.b16 %v295
  %v850 = vunpack.c.h.b16 %v295
  %v851 = vunpack.c.l.b16 %v296
  %v852 = vunpack.c.h.b16 %v296
  %v853 = vunpack.c.l.b16 %v297
  %v854 = vunpack.c.l.b16 %v298
  %v855 = vunpack.c.h.b16 %v298
  %v856 = vunpack.c.l.b16 %v299
  %v857 = vunpack.c.h.b16 %v299
  %v858 = vunpack.c.l.b16 %v300
  %v859 = vunpack.c.l.b16 %v301
  %v860 = vunpack.c.h.b16 %v301
  %v861 = vunpack.c.l.b16 %v302
  %v862 = vunpack.c.h.b16 %v302
  %v863 = vunpack.c.l.b16 %v303
  %v864 = vunpack.c.l.b16 %v304
  %v865 = vunpack.c.h.b16 %v304
  %v866 = vunpack.c.l.b16 %v305
  %v867 = vunpack.c.h.b16 %v305
  %v868 = vunpack.c.l.b16 %v306
  %v869 = vunpack.c.l.b16 %v307
  %v870 = vunpack.c.h.b16 %v307
  %v871 = vunpack.c.l.b16 %v308
  %v872 = vunpack.c.h.b16 %v308
  %v873 = vunpack.c.l.b16 %v309
  %v874 = vunpack.c.l.b16 %v310
  %v875 = vunpack.c.h.b16 %v310
  %v876 = vunpack.c.l.b16 %v311
  %v877 = vunpack.c.h.b16 %v311
  %v878 = vunpack.c.l.b16 %v312
  %v879 = vunpack.c.l.b16 %v313
  %v880 = vunpack.c.h.b16 %v313
  %v881 = vunpack.c.l.b16 %v314
  %v882 = vunpack.c.h.b16 %v314
  %v883 = vunpack.c.l.b16 %v315
  %v884 = vunpack.c.l.b16 %v316
  %v885 = vunpack.c.h.b16 %v316
  %v886 = vunpack.c.l.b16 %v317
  %v887 = vunpack.c.h.b16 %v317
  %v888 = vunpack.c.l.b16 %v318
  %v889 = vunpack.c.l.b16 %v319
  %v890 = vunpack.c.h.b16 %v319
  %v891 = vunpack.c.l.b16 %v320
  %v892 = vunpack.c.h.b16 %v320
  %v893 = vunpack.c.l.b16 %v321
  %v894 = vunpack.c.l.b16 %v322
  %v895 = vunpack.c.h.b16 %v322
  %v896 = vunpack.c.l.b16 %v323
  %v897 = vunpack.c.h.b16 %v323
  %v898 = vunpack.c.l.b16 %v324
  %v899 = vunpack.c.l.b16 %v325
  %v900 = vunpack.c.h.b16 %v325
  %v901 = vunpack.c.l.b16 %v326
  %v902 = vunpack.c.h.b16 %v326
  %v903 = vunpack.c.l.b16 %v327
  %v904 = vunpack.c.l.b16 %v328
  %v905 = vunpack.c.h.b16 %v328
  %v906 = vunpack.c.l.b16 %v329
  %v907 = vunpack.c.h.b16 %v329
  %v908 = vunpack.c.l.b16 %v330
  %v909 = vunpack.c.l.b16 %v331
  %v910 = vunpack.c.h.b16 %v331
  %v911 = vunpack.c.l.b16 %v332
  %v912 = vunpack.c.h.b16 %v332
  %v913 = vunpack.c.l.b16 %v333
  %v914 = vunpack.c.l.b16 %v334
  %v915 = vunpack.c.h.b16 %v334
  %v916 = vunpack.c.l.b16 %v335
  %v917 = vunpack.c.h.b16 %v335
  %v918 = vunpack.c.l.b16 %v336
  %v919 = vunpack.c.l.b16 %v337
  %v920 = vunpack.c.h.b16 %v337
  %v921 = vunpack.c.l.b16 %v338
  %v922 = vunpack.c.h.b16 %v338
  %v923 = vunpack.c.l.b16 %v339
  %v924 = vpack.c.b16 %v609, %v604
  %v925 = vpack.c.b16 %v610, %v605
  %v926 = vpack.c.b16 %v611, %v606
  %v927 = vpack.c.b16 %v612, %v607
  %v928 = vpack.c.b16 %v613, %v608
  %v929 = vpack.c.b16 %v619, %v614
  %v930 = vpack.c.b16 %v620, %v615
  %v931 = vpack.c.b16 %v621, %v616
  %v932 = vpack.c.b16 %v622, %v617
  %v933 = vpack.c.b16 %v623, %v618
  %v934 = vpack.c.b16 %v629, %v624
  %v935 = vpack.c.b16 %v630, %v625
  %v936 = vpack.c.b16 %v631, %v626
  %v937 = vpack.c.b16 %v632, %v627
  %v938 = vpack.c.b16 %v633, %v628
  %v939 = vpack.c.b16 %v639, %v634
  %v940 = vpack.c.b16 %v640, %v635
  %v941 = vpack.c.b16 %v641, %v636
  %v942 = vpack.c.b16 %v642, %v637
  %v943 = vpack.c.b16 %v643, %v638
  %v944 = vpack.c.b16 %v649, %v644
  %v945 = vpack.c.b16 %v650, %v645
  %v946 = vpack.c.b16 %v651, %v646
  %v947 = vpack.c.b16 %v652, %v647
  %v948 = vpack.c.b16 %v653, %v648
  %v949 = vpack.c.b16 %v659, %v654
  %v950 = vpack.c.b16 %v660, %v655
  %v951 = vpack.c.b16 %v661, %v656
  %v952 = vpack.c.b16 %v662, %v657
  %v953 = vpack.c.b16 %v663, %v658
  %v954 = vpack.c.b16 %v669, %v664
  %v955 = vpack.c.b16 %v670, %v665
  %v956 = vpack.c.b16 %v671, %v666
  %v957 = vpack.c.b16 %v672, %v667
  %v958 = vpack.c.b16 %v673, %v668
  %v959 = vpack.c.b16 %v679, %v674
  %v960 = vpack.c.b16 %v680, %v675
  %v961 = vpack.c.b16 %v681, %v676
  %v962 = vpack.c.b16 %v682, %v677
  %v963 = vpack.c.b16 %v683, %v678
  %v964 = vpack.c.b16 %v689, %v684
  %v965 = vpack.c.b16 %v690, %v685
  %v966 = vpack.c.b16 %v691, %v686
  %v967 = vpack.c.b16 %v692, %v687
  %v968 = vpack.c.b16 %v693, %v688
  %v969 = vpack.c.b16 %v699, %v694
  %v970 = vpack.c.b16 %v700, %v695
  %v971 = vpack.c.b16 %v701, %v696
  %v972 = vpack.c.b16 %v702, %v697
  %v973 = vpack.c.b16 %v703, %v698
  %v974 = vpack.c.b16 %v709, %v704
  %v975 = vpack.c.b16 %v710, %v705
  %v976 = vpack.c.b16 %v711, %v706
  %v977 = vpack.c.b16 %v712, %v707
  %v978 = vpack.c.b16 %v713, %v708
  %v979 = vpack.c.b16 %v719, %v714
  %v980 = vpack.c.b16 %v720, %v715
  %v981 = vpack.c.b16 %v721, %v716
  %v982 = vpack.c.b16 %v722, %v717
  %v983 = vpack.c.b16 %v723, %v718
  %v984 = vpack.c.b16 %v729, %v724
  %v985 = vpack.c.b16 %v730, %v725
  %v986 = vpack.c.b16 %v731, %v726
  %v987 = vpack.c.b16 %v732, %v727
  %v988 = vpack.c.b16 %v733, %v728
  %v989 = vpack.c.b16 %v739, %v734
  %v990 = vpack.c.b16 %v740, %v735
  %v991 = vpack.c.b16 %v741, %v736
  %v992 = vpack.c.b16 %v742, %v737
  %v993 = vpack.c.b16 %v743, %v738
  %v994 = vpack.c.b16 %v749, %v744
  %v995 = vpack.c.b16 %v750, %v745
  %v996 = vpack.c.b16 %v751, %v746
  %v997 = vpack.c.b16 %v752, %v747
  %v998 = vpack.c.b16 %v753, %v748
  %v999 = vpack.c.b16 %v759, %v754
  %v1000 = vpack.c.b16 %v760, %v755
  %v1001 = vpack.c.b16 %v761, %v756
  %v1002 = vpack.c.b16 %v762, %v757
  %v1003 = vpack.c.b16 %v763, %v758
  %v1004 = vpack.c.b16 %v769, %v764
  %v1005 = vpack.c.b16 %v770, %v765
  %v1006 = vpack.c.b16 %v771, %v766
  %v1007 = vpack.c.b16 %v772, %v767
  %v1008 = vpack.c.b16 %v773, %v768
  %v1009 = vpack.c.b16 %v779, %v774
  %v1010 = vpack.c.b16 %v780, %v775
  %v1011 = vpack.c.b16 %v781, %v776
  %v1012 = vpack.c.b16 %v782, %v777
  %v1013 = vpack.c.b16 %v783, %v778
  %v1014 = vpack.c.b16 %v789, %v784
  %v1015 = vpack.c.b16 %v790, %v785
  %v1016 = vpack.c.b16 %v791, %v786
  %v1017 = vpack.c.b16 %v792, %v787
  %v1018 = vpack.c.b16 %v793, %v788
  %v1019 = vpack.c.b16 %v799, %v794
  %v1020 = vpack.c.b16 %v800, %v795
  %v1021 = vpack.c.b16 %v801, %v796
  %v1022 = vpack.c.b16 %v802, %v797
  %v1023 = vpack.c.b16 %v803, %v798
  %v1024 = vpack.c.b16 %v809, %v804
  %v1025 = vpack.c.b16 %v810, %v805
  %v1026 = vpack.c.b16 %v811, %v806
  %v1027 = vpack.c.b16 %v812, %v807
  %v1028 = vpack.c.b16 %v813, %v808
  %v1029 = vpack.c.b16 %v819, %v814
  %v1030 = vpack.c.b16 %v820, %v815
  %v1031 = vpack.c.b16 %v821, %v816
  %v1032 = vpack.c.b16 %v822, %v817
  %v1033 = vpack.c.b16 %v823, %v818
  %v1034 = vpack.c.b16 %v829, %v824
  %v1035 = vpack.c.b16 %v830, %v825
  %v1036 = vpack.c.b16 %v831, %v826
  %v1037 = vpack.c.b16 %v832, %v827
  %v1038 = vpack.c.b16 %v833, %v828
  %v1039 = vpack.c.b16 %v839, %v834
  %v1040 = vpack.c.b16 %v840, %v835
  %v1041 = vpack.c.b16 %v841, %v836
  %v1042 = vpack.c.b16 %v842, %v837
  %v1043 = vpack.c.b16 %v843, %v838
  %v1044 = vpack.c.b16 %v849, %v844
  %v1045 = vpack.c.b16 %v850, %v845
  %v1046 = vpack.c.b16 %v851, %v846
  %v1047 = vpack.c.b16 %v852, %v847
  %v1048 = vpack.c.b16 %v853, %v848
  %v1049 = vpack.c.b16 %v859, %v854
  %v1050 = vpack.c.b16 %v860, %v855
  %v1051 = vpack.c.b16 %v861, %v856
  %v1052 = vpack.c.b16 %v862, %v857
  %v1053 = vpack.c.b16 %v863, %v858
  %v1054 = vpack.c.b16 %v869, %v864
  %v1055 = vpack.c.b16 %v870, %v865
  %v1056 = vpack.c.b16 %v871, %v866
  %v1057 = vpack.c.b16 %v872, %v867
  %v1058 = vpack.c.b16 %v873, %v868
  %v1059 = vpack.c.b16 %v879, %v874
  %v1060 = vpack.c.b16 %v880, %v875
  %v1061 = vpack.c.b16 %v881, %v876
  %v1062 = vpack.c.b16 %v882, %v877
  %v1063 = vpack.c.b16 %v883, %v878
  %v1064 = vpack.c.b16 %v889, %v884
  %v1065 = vpack.c.b16 %v890, %v885
  %v1066 = vpack.c.b16 %v891, %v886
  %v1067 = vpack.c.b16 %v892, %v887
  %v1068 = vpack.c.b16 %v893, %v888
  %v1069 = vpack.c.b16 %v899, %v894
  %v1070 = vpack.c.b16 %v900, %v895
  %v1071 = vpack.c.b16 %v901, %v896
  %v1072 = vpack.c.b16 %v902, %v897
  %v1073 = vpack.c.b16 %v903, %v898
  %v1074 = vpack.c.b16 %v909, %v904
  %v1075 = vpack.c.b16 %v910, %v905
  %v1076 = vpack.c.b16 %v911, %v906
  %v1077 = vpack.c.b16 %v912, %v907
  %v1078 = vpack.c.b16 %v913, %v908
  %v1079 = vpack.c.b16 %v919, %v914
  %v1080 = vpack.c.b16 %v920, %v915
  %v1081 = vpack.c.b16 %v921, %v916
  %v1082 = vpack.c.b16 %v922, %v917
  %v1083 = vpack.c.b16 %v923, %v918
  %v1284 = vunpack.c.l.b16 %v340
  %v1285 = vunpack.c.l.b16 %v341
  %v1286 = vunpack.c.l.b16 %v342
  %v1287 = vunpack.c.l.b16 %v343
  %v1288 = vunpack.c.l.b16 %v344
  %v1289 = vunpack.c.l.b16 %v345
  %v1290 = vunpack.c.l.b16 %v346
  %v1291 = vunpack.c.l.b16 %v347
  %v1292 = vunpack.c.l.b16 %v348
  %v1293 = vunpack.c.l.b16 %v349
  %v1294 = vunpack.c.l.b16 %v350
  %v1295 = vunpack.c.l.b16 %v351
  %v1296 = vunpack.c.l.b16 %v352
  %v1297 = vunpack.c.l.b16 %v353
  %v1298 = vunpack.c.l.b16 %v354
  %v1299 = vunpack.c.l.b16 %v355
  %v1300 = vunpack.c.l.b16 %v356
  %v1301 = vunpack.c.l.b16 %v357
  %v1302 = vunpack.c.l.b16 %v358
  %v1303 = vunpack.c.l.b16 %v359
  %v1304 = vunpack.c.l.b16 %v360
  %v1305 = vunpack.c.l.b16 %v361
  %v1306 = vunpack.c.l.b16 %v362
  %v1307 = vunpack.c.l.b16 %v363
  %v1308 = vunpack.c.l.b16 %v364
  %v1309 = vunpack.c.l.b16 %v365
  %v1310 = vunpack.c.l.b16 %v366
  %v1311 = vunpack.c.l.b16 %v367
  %v1312 = vunpack.c.l.b16 %v368
  %v1313 = vunpack.c.l.b16 %v369
  %v1314 = vunpack.c.l.b16 %v370
  %v1315 = vunpack.c.l.b16 %v371
  %v1316 = vunpack.c.l.b16 %v372
  %v1317 = vunpack.c.l.b16 %v373
  %v1318 = vunpack.c.l.b16 %v374
  %v1319 = vunpack.c.l.b16 %v375
  %v1320 = vunpack.c.l.b16 %v376
  %v1321 = vunpack.c.l.b16 %v377
  %v1322 = vunpack.c.l.b16 %v378
  %v1323 = vunpack.c.l.b16 %v379
  %v1324 = vunpack.c.l.b16 %v380
  %v1325 = vunpack.c.l.b16 %v381
  %v1326 = vunpack.c.l.b16 %v382
  %v1327 = vunpack.c.l.b16 %v383
  %v1328 = vunpack.c.l.b16 %v384
  %v1329 = vunpack.c.l.b16 %v385
  %v1330 = vunpack.c.l.b16 %v386
  %v1331 = vunpack.c.l.b16 %v387
  %v1332 = vunpack.c.l.b16 %v388
  %v1333 = vunpack.c.l.b16 %v389
  %v1334 = vunpack.c.l.b16 %v390
  %v1335 = vunpack.c.l.b16 %v391
  %v1336 = vunpack.c.l.b16 %v392
  %v1337 = vunpack.c.l.b16 %v393
  %v1338 = vunpack.c.l.b16 %v394
  %v1339 = vunpack.c.l.b16 %v395
  %v1340 = vunpack.c.l.b16 %v396
  %v1341 = vunpack.c.l.b16 %v397
  %v1342 = vunpack.c.l.b16 %v398
  %v1343 = vunpack.c.l.b16 %v399
  %v1344 = vunpack.c.l.b16 %v400
  %v1345 = vunpack.c.l.b16 %v401
  %v1346 = vunpack.c.l.b16 %v402
  %v1347 = vunpack.c.l.b16 %v403
  %v1348 = vunpack.c.l.b16 %v404
  %v1349 = vunpack.c.l.b16 %v405
  %v1350 = vunpack.c.l.b16 %v406
  %v1351 = vunpack.c.l.b16 %v407
  %v1352 = vunpack.c.l.b16 %v408
  %v1353 = vunpack.c.l.b16 %v409
  %v1354 = vunpack.c.l.b16 %v410
  %v1355 = vunpack.c.l.b16 %v411
  %v1356 = vpack.c.b16 %v1285, %v1284
  %v1357 = vpack.c.b16 %v1287, %v1286
  %v1358 = vpack.c.b16 %v1289, %v1288
  %v1359 = vpack.c.b16 %v1291, %v1290
  %v1360 = vpack.c.b16 %v1293, %v1292
  %v1361 = vpack.c.b16 %v1295, %v1294
  %v1362 = vpack.c.b16 %v1297, %v1296
  %v1363 = vpack.c.b16 %v1299, %v1298
  %v1364 = vpack.c.b16 %v1301, %v1300
  %v1365 = vpack.c.b16 %v1303, %v1302
  %v1366 = vpack.c.b16 %v1305, %v1304
  %v1367 = vpack.c.b16 %v1307, %v1306
  %v1368 = vpack.c.b16 %v1309, %v1308
  %v1369 = vpack.c.b16 %v1311, %v1310
  %v1370 = vpack.c.b16 %v1313, %v1312
  %v1371 = vpack.c.b16 %v1315, %v1314
  %v1372 = vpack.c.b16 %v1317, %v1316
  %v1373 = vpack.c.b16 %v1319, %v1318
  %v1374 = vpack.c.b16 %v1321, %v1320
  %v1375 = vpack.c.b16 %v1323, %v1322
  %v1376 = vpack.c.b16 %v1325, %v1324
  %v1377 = vpack.c.b16 %v1327, %v1326
  %v1378 = vpack.c.b16 %v1329, %v1328
  %v1379 = vpack.c.b16 %v1331, %v1330
  %v1380 = vpack.c.b16 %v1333, %v1332
  %v1381 = vpack.c.b16 %v1335, %v1334
  %v1382 = vpack.c.b16 %v1337, %v1336
  %v1383 = vpack.c.b16 %v1339, %v1338
  %v1384 = vpack.c.b16 %v1341, %v1340
  %v1385 = vpack.c.b16 %v1343, %v1342
  %v1386 = vpack.c.b16 %v1345, %v1344
  %v1387 = vpack.c.b16 %v1347, %v1346
  %v1388 = vpack.c.b16 %v1349, %v1348
  %v1389 = vpack.c.b16 %v1351, %v1350
  %v1390 = vpack.c.b16 %v1353, %v1352
  %v1391 = vpack.c.b16 %v1355, %v1354
  %vm1428 = vcmask 523264
  %v1430 = vsel %vm1428, %v928, 0
  %v1433 = vsel %vm1428, %v933, 0
  %v1436 = vsel %vm1428, %v938, 0
  %v1439 = vsel %vm1428, %v943, 0
  %v1442 = vsel %vm1428, %v948, 0
  %v1445 = vsel %vm1428, %v953, 0
  %v1448 = vsel %vm1428, %v958, 0
  %v1451 = vsel %vm1428, %v963, 0
  %v1454 = vsel %vm1428, %v968, 0
  %v1457 = vsel %vm1428, %v973, 0
  %v1460 = vsel %vm1428, %v978, 0
  %v1463 = vsel %vm1428, %v983, 0
  %v1466 = vsel %vm1428, %v988, 0
  %v1469 = vsel %vm1428, %v993, 0
  %v1472 = vsel %vm1428, %v998, 0
  %v1475 = vsel %vm1428, %v1003, 0
  %v1478 = vsel %vm1428, %v1008, 0
  %v1481 = vsel %vm1428, %v1013, 0
  %v1484 = vsel %vm1428, %v1018, 0
  %v1487 = vsel %vm1428, %v1023, 0
  %v1490 = vsel %vm1428, %v1028, 0
  %v1493 = vsel %vm1428, %v1033, 0
  %v1496 = vsel %vm1428, %v1038, 0
  %v1499 = vsel %vm1428, %v1043, 0
  %v1502 = vsel %vm1428, %v1048, 0
  %v1505 = vsel %vm1428, %v1053, 0
  %v1508 = vsel %vm1428, %v1058, 0
  %v1511 = vsel %vm1428, %v1063, 0
  %v1514 = vsel %vm1428, %v1068, 0
  %v1517 = vsel %vm1428, %v1073, 0
  %v1520 = vsel %vm1428, %v1078, 0
  %v1523 = vsel %vm1428, %v1083, 0
  %1525 = vmatprep.subr.bf16.mxu0 0
  %1526 = vmatpush1.bf16.msra.mxu0 %v1356
  %1527 = vmatprep.subr.bf16.mxu0 0
  %1528 = vmatpush1.bf16.msra.mxu0 %v1357
  %1529 = vmatprep.subr.bf16.mxu0 0
  %1530 = vmatpush1.bf16.msra.mxu0 %v1358
  %1531 = vmatprep.subr.bf16.mxu0 0
  %1532 = vmatpush1.bf16.msra.mxu0 %v1359
  %1533 = vmatprep.subr.bf16.mxu0 0
  %1534 = vmatpush1.bf16.msra.mxu0 %v1360
  %1535 = vmatprep.subr.bf16.mxu0 0
  %1536 = vmatpush1.bf16.msra.mxu0 %v1361
  %1537 = vmatprep.subr.bf16.mxu0 0
  %1538 = vmatpush1.bf16.msra.mxu0 %v1362
  %1539 = vmatprep.subr.bf16.mxu0 0
  %1540 = vmatpush1.bf16.msra.mxu0 %v1363
  %1541 = vmatprep.subr.bf16.mxu0 0
  %1542 = vmatpush1.bf16.msra.mxu0 %v1364
  %1543 = vmatprep.subr.bf16.mxu0 0
  %1544 = vmatpush1.bf16.msra.mxu0 %v1365
  %1545 = vmatprep.subr.bf16.mxu0 0
  %1546 = vmatpush1.bf16.msra.mxu0 %v1366
  %1547 = vmatprep.subr.bf16.mxu0 0
  %1548 = vmatpush1.bf16.msra.mxu0 %v1367
  %1549 = vmatprep.subr.bf16.mxu0 0
  %1550 = vmatpush1.bf16.msra.mxu0 %v1368
  %1551 = vmatprep.subr.bf16.mxu0 0
  %1552 = vmatpush1.bf16.msra.mxu0 %v1369
  %1553 = vmatprep.subr.bf16.mxu0 0
  %1554 = vmatpush1.bf16.msra.mxu0 %v1370
  %1555 = vmatprep.subr.bf16.mxu0 0
  %1556 = vmatpush1.bf16.msra.mxu0 %v1371
  %1557 = vmatprep.mubr.bf16.mxu0 %v925
  %1558 = vmatmul.mubr.bf16.gmra.mrb[0].mxu0 %v924
  %v1559 = vpop.f32.mrb[0].mxu0
  %v1560 = vadd.f32 0.0, %v1559
  %v1561 = vpop.f32.mrb[0].mxu0
  %v1562 = vpop.f32.mrb[0].mxu0
  %v1563 = vadd.f32 0.0, %v1562
  %v1564 = vpop.f32.mrb[0].mxu0
  %1565 = vmatprep.mubr.bf16.mxu0 %v930
  %1566 = vmatmul.mubr.bf16.gmra.mrb[0].mxu0 %v929
  %v1567 = vpop.f32.mrb[0].mxu0
  %v1568 = vadd.f32 0.0, %v1567
  %v1569 = vpop.f32.mrb[0].mxu0
  %v1570 = vpop.f32.mrb[0].mxu0
  %v1571 = vadd.f32 0.0, %v1570
  %v1572 = vpop.f32.mrb[0].mxu0
  %1573 = vmatprep.mubr.bf16.mxu0 %v935
  %1574 = vmatmul.mubr.bf16.gmra.mrb[0].mxu0 %v934
  %v1575 = vpop.f32.mrb[0].mxu0
  %v1576 = vadd.f32 0.0, %v1575
  %v1577 = vpop.f32.mrb[0].mxu0
  %v1578 = vpop.f32.mrb[0].mxu0
  %v1579 = vadd.f32 0.0, %v1578
  %v1580 = vpop.f32.mrb[0].mxu0
  %1581 = vmatprep.mubr.bf16.mxu0 %v940
  %1582 = vmatmul.mubr.bf16.gmra.mrb[0].mxu0 %v939
  %v1583 = vpop.f32.mrb[0].mxu0
  %v1584 = vadd.f32 0.0, %v1583
  %v1585 = vpop.f32.mrb[0].mxu0
  %v1586 = vpop.f32.mrb[0].mxu0
  %v1587 = vadd.f32 0.0, %v1586
  %v1588 = vpop.f32.mrb[0].mxu0
  %1589 = vmatprep.mubr.bf16.mxu0 %v945
  %1590 = vmatmul.mubr.bf16.gmra.mrb[0].mxu0 %v944
  %v1591 = vpop.f32.mrb[0].mxu0
  %v1592 = vadd.f32 0.0, %v1591
  %v1593 = vpop.f32.mrb[0].mxu0
  %v1594 = vpop.f32.mrb[0].mxu0
  %v1595 = vadd.f32 0.0, %v1594
  %v1596 = vpop.f32.mrb[0].mxu0
  %1597 = vmatprep.mubr.bf16.mxu0 %v950
  %1598 = vmatmul.mubr.bf16.gmra.mrb[0].mxu0 %v949
  %v1599 = vpop.f32.mrb[0].mxu0
  %v1600 = vadd.f32 0.0, %v1599
  %v1601 = vpop.f32.mrb[0].mxu0
  %v1602 = vpop.f32.mrb[0].mxu0
  %v1603 = vadd.f32 0.0, %v1602
  %v1604 = vpop.f32.mrb[0].mxu0
  %1605 = vmatprep.mubr.bf16.mxu0 %v955
  %1606 = vmatmul.mubr.bf16.gmra.mrb[0].mxu0 %v954
  %v1607 = vpop.f32.mrb[0].mxu0
  %v1608 = vadd.f32 0.0, %v1607
  %v1609 = vpop.f32.mrb[0].mxu0
  %v1610 = vpop.f32.mrb[0].mxu0
  %v1611 = vadd.f32 0.0, %v1610
  %v1612 = vpop.f32.mrb[0].mxu0
  %1613 = vmatprep.mubr.bf16.mxu0 %v960
  %1614 = vmatmul.mubr.bf16.gmra.mrb[0].mxu0 %v959
  %v1615 = vpop.f32.mrb[0].mxu0
  %v1616 = vadd.f32 0.0, %v1615
  %v1617 = vpop.f32.mrb[0].mxu0
  %v1618 = vpop.f32.mrb[0].mxu0
  %v1619 = vadd.f32 0.0, %v1618
  %v1620 = vpop.f32.mrb[0].mxu0
  %1621 = vmatprep.mubr.bf16.mxu0 %v965
  %1622 = vmatmul.mubr.bf16.gmra.mrb[0].mxu0 %v964
  %v1623 = vpop.f32.mrb[0].mxu0
  %v1624 = vadd.f32 0.0, %v1623
  %v1625 = vpop.f32.mrb[0].mxu0
  %v1626 = vpop.f32.mrb[0].mxu0
  %v1627 = vadd.f32 0.0, %v1626
  %v1628 = vpop.f32.mrb[0].mxu0
  %1629 = vmatprep.mubr.bf16.mxu0 %v970
  %1630 = vmatmul.mubr.bf16.gmra.mrb[0].mxu0 %v969
  %v1631 = vpop.f32.mrb[0].mxu0
  %v1632 = vadd.f32 0.0, %v1631
  %v1633 = vpop.f32.mrb[0].mxu0
  %v1634 = vpop.f32.mrb[0].mxu0
  %v1635 = vadd.f32 0.0, %v1634
  %v1636 = vpop.f32.mrb[0].mxu0
  %1637 = vmatprep.mubr.bf16.mxu0 %v975
  %1638 = vmatmul.mubr.bf16.gmra.mrb[0].mxu0 %v974
  %v1639 = vpop.f32.mrb[0].mxu0
  %v1640 = vadd.f32 0.0, %v1639
  %v1641 = vpop.f32.mrb[0].mxu0
  %v1642 = vpop.f32.mrb[0].mxu0
  %v1643 = vadd.f32 0.0, %v1642
  %v1644 = vpop.f32.mrb[0].mxu0
  %1645 = vmatprep.mubr.bf16.mxu0 %v980
  %1646 = vmatmul.mubr.bf16.gmra.mrb[0].mxu0 %v979
  %v1647 = vpop.f32.mrb[0].mxu0
  %v1648 = vadd.f32 0.0, %v1647
  %v1649 = vpop.f32.mrb[0].mxu0
  %v1650 = vpop.f32.mrb[0].mxu0
  %v1651 = vadd.f32 0.0, %v1650
  %v1652 = vpop.f32.mrb[0].mxu0
  %1653 = vmatprep.mubr.bf16.mxu0 %v985
  %1654 = vmatmul.mubr.bf16.gmra.mrb[0].mxu0 %v984
  %v1655 = vpop.f32.mrb[0].mxu0
  %v1656 = vadd.f32 0.0, %v1655
  %v1657 = vpop.f32.mrb[0].mxu0
  %v1658 = vpop.f32.mrb[0].mxu0
  %v1659 = vadd.f32 0.0, %v1658
  %v1660 = vpop.f32.mrb[0].mxu0
  %1661 = vmatprep.mubr.bf16.mxu0 %v990
  %1662 = vmatmul.mubr.bf16.gmra.mrb[0].mxu0 %v989
  %v1663 = vpop.f32.mrb[0].mxu0
  %v1664 = vadd.f32 0.0, %v1663
  %v1665 = vpop.f32.mrb[0].mxu0
  %v1666 = vpop.f32.mrb[0].mxu0
  %v1667 = vadd.f32 0.0, %v1666
  %v1668 = vpop.f32.mrb[0].mxu0
  %1669 = vmatprep.mubr.bf16.mxu0 %v995
  %1670 = vmatmul.mubr.bf16.gmra.mrb[0].mxu0 %v994
  %v1671 = vpop.f32.mrb[0].mxu0
  %v1672 = vadd.f32 0.0, %v1671
  %v1673 = vpop.f32.mrb[0].mxu0
  %v1674 = vpop.f32.mrb[0].mxu0
  %v1675 = vadd.f32 0.0, %v1674
  %v1676 = vpop.f32.mrb[0].mxu0
  %1677 = vmatprep.mubr.bf16.mxu0 %v1000
  %1678 = vmatmul.mubr.bf16.gmra.mrb[0].mxu0 %v999
  %v1679 = vpop.f32.mrb[0].mxu0
  %v1680 = vadd.f32 0.0, %v1679
  %v1681 = vpop.f32.mrb[0].mxu0
  %v1682 = vpop.f32.mrb[0].mxu0
  %v1683 = vadd.f32 0.0, %v1682
  %v1684 = vpop.f32.mrb[0].mxu0
  %1685 = vmatprep.mubr.bf16.mxu0 %v1005
  %1686 = vmatmul.mubr.bf16.gmra.mrb[0].mxu0 %v1004
  %v1687 = vpop.f32.mrb[0].mxu0
  %v1688 = vadd.f32 0.0, %v1687
  %v1689 = vpop.f32.mrb[0].mxu0
  %v1690 = vpop.f32.mrb[0].mxu0
  %v1691 = vadd.f32 0.0, %v1690
  %v1692 = vpop.f32.mrb[0].mxu0
  %1693 = vmatprep.mubr.bf16.mxu0 %v1010
  %1694 = vmatmul.mubr.bf16.gmra.mrb[0].mxu0 %v1009
  %v1695 = vpop.f32.mrb[0].mxu0
  %v1696 = vadd.f32 0.0, %v1695
  %v1697 = vpop.f32.mrb[0].mxu0
  %v1698 = vpop.f32.mrb[0].mxu0
  %v1699 = vadd.f32 0.0, %v1698
  %v1700 = vpop.f32.mrb[0].mxu0
  %1701 = vmatprep.mubr.bf16.mxu0 %v1015
  %1702 = vmatmul.mubr.bf16.gmra.mrb[0].mxu0 %v1014
  %v1703 = vpop.f32.mrb[0].mxu0
  %v1704 = vadd.f32 0.0, %v1703
  %v1705 = vpop.f32.mrb[0].mxu0
  %v1706 = vpop.f32.mrb[0].mxu0
  %v1707 = vadd.f32 0.0, %v1706
  %v1708 = vpop.f32.mrb[0].mxu0
  %1709 = vmatprep.mubr.bf16.mxu0 %v1020
  %1710 = vmatmul.mubr.bf16.gmra.mrb[0].mxu0 %v1019
  %v1711 = vpop.f32.mrb[0].mxu0
  %v1712 = vadd.f32 0.0, %v1711
  %v1713 = vpop.f32.mrb[0].mxu0
  %v1714 = vpop.f32.mrb[0].mxu0
  %v1715 = vadd.f32 0.0, %v1714
  %v1716 = vpop.f32.mrb[0].mxu0
  %1717 = vmatprep.mubr.bf16.mxu0 %v1025
  %1718 = vmatmul.mubr.bf16.gmra.mrb[0].mxu0 %v1024
  %v1719 = vpop.f32.mrb[0].mxu0
  %v1720 = vadd.f32 0.0, %v1719
  %v1721 = vpop.f32.mrb[0].mxu0
  %v1722 = vpop.f32.mrb[0].mxu0
  %v1723 = vadd.f32 0.0, %v1722
  %v1724 = vpop.f32.mrb[0].mxu0
  %1725 = vmatprep.mubr.bf16.mxu0 %v1030
  %1726 = vmatmul.mubr.bf16.gmra.mrb[0].mxu0 %v1029
  %v1727 = vpop.f32.mrb[0].mxu0
  %v1728 = vadd.f32 0.0, %v1727
  %v1729 = vpop.f32.mrb[0].mxu0
  %v1730 = vpop.f32.mrb[0].mxu0
  %v1731 = vadd.f32 0.0, %v1730
  %v1732 = vpop.f32.mrb[0].mxu0
  %1733 = vmatprep.mubr.bf16.mxu0 %v1035
  %1734 = vmatmul.mubr.bf16.gmra.mrb[0].mxu0 %v1034
  %v1735 = vpop.f32.mrb[0].mxu0
  %v1736 = vadd.f32 0.0, %v1735
  %v1737 = vpop.f32.mrb[0].mxu0
  %v1738 = vpop.f32.mrb[0].mxu0
  %v1739 = vadd.f32 0.0, %v1738
  %v1740 = vpop.f32.mrb[0].mxu0
  %1741 = vmatprep.mubr.bf16.mxu0 %v1040
  %1742 = vmatmul.mubr.bf16.gmra.mrb[0].mxu0 %v1039
  %v1743 = vpop.f32.mrb[0].mxu0
  %v1744 = vadd.f32 0.0, %v1743
  %v1745 = vpop.f32.mrb[0].mxu0
  %v1746 = vpop.f32.mrb[0].mxu0
  %v1747 = vadd.f32 0.0, %v1746
  %v1748 = vpop.f32.mrb[0].mxu0
  %1749 = vmatprep.mubr.bf16.mxu0 %v1045
  %1750 = vmatmul.mubr.bf16.gmra.mrb[0].mxu0 %v1044
  %v1751 = vpop.f32.mrb[0].mxu0
  %v1752 = vadd.f32 0.0, %v1751
  %v1753 = vpop.f32.mrb[0].mxu0
  %v1754 = vpop.f32.mrb[0].mxu0
  %v1755 = vadd.f32 0.0, %v1754
  %v1756 = vpop.f32.mrb[0].mxu0
  %1757 = vmatprep.mubr.bf16.mxu0 %v1050
  %1758 = vmatmul.mubr.bf16.gmra.mrb[0].mxu0 %v1049
  %v1759 = vpop.f32.mrb[0].mxu0
  %v1760 = vadd.f32 0.0, %v1759
  %v1761 = vpop.f32.mrb[0].mxu0
  %v1762 = vpop.f32.mrb[0].mxu0
  %v1763 = vadd.f32 0.0, %v1762
  %v1764 = vpop.f32.mrb[0].mxu0
  %1765 = vmatprep.mubr.bf16.mxu0 %v1055
  %1766 = vmatmul.mubr.bf16.gmra.mrb[0].mxu0 %v1054
  %v1767 = vpop.f32.mrb[0].mxu0
  %v1768 = vadd.f32 0.0, %v1767
  %v1769 = vpop.f32.mrb[0].mxu0
  %v1770 = vpop.f32.mrb[0].mxu0
  %v1771 = vadd.f32 0.0, %v1770
  %v1772 = vpop.f32.mrb[0].mxu0
  %1773 = vmatprep.mubr.bf16.mxu0 %v1060
  %1774 = vmatmul.mubr.bf16.gmra.mrb[0].mxu0 %v1059
  %v1775 = vpop.f32.mrb[0].mxu0
  %v1776 = vadd.f32 0.0, %v1775
  %v1777 = vpop.f32.mrb[0].mxu0
  %v1778 = vpop.f32.mrb[0].mxu0
  %v1779 = vadd.f32 0.0, %v1778
  %v1780 = vpop.f32.mrb[0].mxu0
  %1781 = vmatprep.mubr.bf16.mxu0 %v1065
  %1782 = vmatmul.mubr.bf16.gmra.mrb[0].mxu0 %v1064
  %v1783 = vpop.f32.mrb[0].mxu0
  %v1784 = vadd.f32 0.0, %v1783
  %v1785 = vpop.f32.mrb[0].mxu0
  %v1786 = vpop.f32.mrb[0].mxu0
  %v1787 = vadd.f32 0.0, %v1786
  %v1788 = vpop.f32.mrb[0].mxu0
  %1789 = vmatprep.mubr.bf16.mxu0 %v1070
  %1790 = vmatmul.mubr.bf16.gmra.mrb[0].mxu0 %v1069
  %v1791 = vpop.f32.mrb[0].mxu0
  %v1792 = vadd.f32 0.0, %v1791
  %v1793 = vpop.f32.mrb[0].mxu0
  %v1794 = vpop.f32.mrb[0].mxu0
  %v1795 = vadd.f32 0.0, %v1794
  %v1796 = vpop.f32.mrb[0].mxu0
  %1797 = vmatprep.mubr.bf16.mxu0 %v1075
  %1798 = vmatmul.mubr.bf16.gmra.mrb[0].mxu0 %v1074
  %v1799 = vpop.f32.mrb[0].mxu0
  %v1800 = vadd.f32 0.0, %v1799
  %v1801 = vpop.f32.mrb[0].mxu0
  %v1802 = vpop.f32.mrb[0].mxu0
  %v1803 = vadd.f32 0.0, %v1802
  %v1804 = vpop.f32.mrb[0].mxu0
  %1805 = vmatprep.mubr.bf16.mxu0 %v1080
  %1806 = vmatmul.mubr.bf16.gmra.mrb[0].mxu0 %v1079
  %v1807 = vpop.f32.mrb[0].mxu0
  %v1808 = vadd.f32 0.0, %v1807
  %v1809 = vpop.f32.mrb[0].mxu0
  %v1810 = vpop.f32.mrb[0].mxu0
  %v1811 = vadd.f32 0.0, %v1810
  %v1812 = vpop.f32.mrb[0].mxu0
  %1813 = vdwg.mxu0
  %1814 = vmatprep.subr.bf16.mxu0 0
  %1815 = vmatpush1.bf16.msra.mxu0 %v1372
  %1816 = vmatprep.subr.bf16.mxu0 0
  %1817 = vmatpush1.bf16.msra.mxu0 %v1373
  %1818 = vmatprep.subr.bf16.mxu0 0
  %1819 = vmatpush1.bf16.msra.mxu0 %v1374
  %1820 = vmatprep.subr.bf16.mxu0 0
  %1821 = vmatpush1.bf16.msra.mxu0 %v1375
  %1822 = vmatprep.subr.bf16.mxu0 0
  %1823 = vmatpush1.bf16.msra.mxu0 %v1376
  %1824 = vmatprep.subr.bf16.mxu0 0
  %1825 = vmatpush1.bf16.msra.mxu0 %v1377
  %1826 = vmatprep.subr.bf16.mxu0 0
  %1827 = vmatpush1.bf16.msra.mxu0 %v1378
  %1828 = vmatprep.subr.bf16.mxu0 0
  %1829 = vmatpush1.bf16.msra.mxu0 %v1379
  %1830 = vmatprep.subr.bf16.mxu0 0
  %1831 = vmatpush1.bf16.msra.mxu0 %v1380
  %1832 = vmatprep.subr.bf16.mxu0 0
  %1833 = vmatpush1.bf16.msra.mxu0 %v1381
  %1834 = vmatprep.subr.bf16.mxu0 0
  %1835 = vmatpush1.bf16.msra.mxu0 %v1382
  %1836 = vmatprep.subr.bf16.mxu0 0
  %1837 = vmatpush1.bf16.msra.mxu0 %v1383
  %1838 = vmatprep.subr.bf16.mxu0 0
  %1839 = vmatpush1.bf16.msra.mxu0 %v1384
  %1840 = vmatprep.subr.bf16.mxu0 0
  %1841 = vmatpush1.bf16.msra.mxu0 %v1385
  %1842 = vmatprep.subr.bf16.mxu0 0
  %1843 = vmatpush1.bf16.msra.mxu0 %v1386
  %1844 = vmatprep.subr.bf16.mxu0 0
  %1845 = vmatpush1.bf16.msra.mxu0 %v1387
  %1846 = vmatprep.mubr.bf16.mxu0 %v927
  %1847 = vmatmul.mubr.bf16.gmra.mrb[0].mxu0 %v926
  %v1848 = vpop.f32.mrb[0].mxu0
  %v1849 = vadd.f32 %v1560, %v1848
  %v1850 = vpop.f32.mrb[0].mxu0
  %v1851 = vpop.f32.mrb[0].mxu0
  %v1852 = vadd.f32 %v1563, %v1851
  %v1853 = vpop.f32.mrb[0].mxu0
  %1854 = vmatprep.mubr.bf16.mxu0 %v932
  %1855 = vmatmul.mubr.bf16.gmra.mrb[0].mxu0 %v931
  %v1856 = vpop.f32.mrb[0].mxu0
  %v1857 = vadd.f32 %v1568, %v1856
  %v1858 = vpop.f32.mrb[0].mxu0
  %v1859 = vpop.f32.mrb[0].mxu0
  %v1860 = vadd.f32 %v1571, %v1859
  %v1861 = vpop.f32.mrb[0].mxu0
  %1862 = vmatprep.mubr.bf16.mxu0 %v937
  %1863 = vmatmul.mubr.bf16.gmra.mrb[0].mxu0 %v936
  %v1864 = vpop.f32.mrb[0].mxu0
  %v1865 = vadd.f32 %v1576, %v1864
  %v1866 = vpop.f32.mrb[0].mxu0
  %v1867 = vpop.f32.mrb[0].mxu0
  %v1868 = vadd.f32 %v1579, %v1867
  %v1869 = vpop.f32.mrb[0].mxu0
  %1870 = vmatprep.mubr.bf16.mxu0 %v942
  %1871 = vmatmul.mubr.bf16.gmra.mrb[0].mxu0 %v941
  %v1872 = vpop.f32.mrb[0].mxu0
  %v1873 = vadd.f32 %v1584, %v1872
  %v1874 = vpop.f32.mrb[0].mxu0
  %v1875 = vpop.f32.mrb[0].mxu0
  %v1876 = vadd.f32 %v1587, %v1875
  %v1877 = vpop.f32.mrb[0].mxu0
  %1878 = vmatprep.mubr.bf16.mxu0 %v947
  %1879 = vmatmul.mubr.bf16.gmra.mrb[0].mxu0 %v946
  %v1880 = vpop.f32.mrb[0].mxu0
  %v1881 = vadd.f32 %v1592, %v1880
  %v1882 = vpop.f32.mrb[0].mxu0
  %v1883 = vpop.f32.mrb[0].mxu0
  %v1884 = vadd.f32 %v1595, %v1883
  %v1885 = vpop.f32.mrb[0].mxu0
  %1886 = vmatprep.mubr.bf16.mxu0 %v952
  %1887 = vmatmul.mubr.bf16.gmra.mrb[0].mxu0 %v951
  %v1888 = vpop.f32.mrb[0].mxu0
  %v1889 = vadd.f32 %v1600, %v1888
  %v1890 = vpop.f32.mrb[0].mxu0
  %v1891 = vpop.f32.mrb[0].mxu0
  %v1892 = vadd.f32 %v1603, %v1891
  %v1893 = vpop.f32.mrb[0].mxu0
  %1894 = vmatprep.mubr.bf16.mxu0 %v957
  %1895 = vmatmul.mubr.bf16.gmra.mrb[0].mxu0 %v956
  %v1896 = vpop.f32.mrb[0].mxu0
  %v1897 = vadd.f32 %v1608, %v1896
  %v1898 = vpop.f32.mrb[0].mxu0
  %v1899 = vpop.f32.mrb[0].mxu0
  %v1900 = vadd.f32 %v1611, %v1899
  %v1901 = vpop.f32.mrb[0].mxu0
  %1902 = vmatprep.mubr.bf16.mxu0 %v962
  %1903 = vmatmul.mubr.bf16.gmra.mrb[0].mxu0 %v961
  %v1904 = vpop.f32.mrb[0].mxu0
  %v1905 = vadd.f32 %v1616, %v1904
  %v1906 = vpop.f32.mrb[0].mxu0
  %v1907 = vpop.f32.mrb[0].mxu0
  %v1908 = vadd.f32 %v1619, %v1907
  %v1909 = vpop.f32.mrb[0].mxu0
  %1910 = vmatprep.mubr.bf16.mxu0 %v967
  %1911 = vmatmul.mubr.bf16.gmra.mrb[0].mxu0 %v966
  %v1912 = vpop.f32.mrb[0].mxu0
  %v1913 = vadd.f32 %v1624, %v1912
  %v1914 = vpop.f32.mrb[0].mxu0
  %v1915 = vpop.f32.mrb[0].mxu0
  %v1916 = vadd.f32 %v1627, %v1915
  %v1917 = vpop.f32.mrb[0].mxu0
  %1918 = vmatprep.mubr.bf16.mxu0 %v972
  %1919 = vmatmul.mubr.bf16.gmra.mrb[0].mxu0 %v971
  %v1920 = vpop.f32.mrb[0].mxu0
  %v1921 = vadd.f32 %v1632, %v1920
  %v1922 = vpop.f32.mrb[0].mxu0
  %v1923 = vpop.f32.mrb[0].mxu0
  %v1924 = vadd.f32 %v1635, %v1923
  %v1925 = vpop.f32.mrb[0].mxu0
  %1926 = vmatprep.mubr.bf16.mxu0 %v977
  %1927 = vmatmul.mubr.bf16.gmra.mrb[0].mxu0 %v976
  %v1928 = vpop.f32.mrb[0].mxu0
  %v1929 = vadd.f32 %v1640, %v1928
  %v1930 = vpop.f32.mrb[0].mxu0
  %v1931 = vpop.f32.mrb[0].mxu0
  %v1932 = vadd.f32 %v1643, %v1931
  %v1933 = vpop.f32.mrb[0].mxu0
  %1934 = vmatprep.mubr.bf16.mxu0 %v982
  %1935 = vmatmul.mubr.bf16.gmra.mrb[0].mxu0 %v981
  %v1936 = vpop.f32.mrb[0].mxu0
  %v1937 = vadd.f32 %v1648, %v1936
  %v1938 = vpop.f32.mrb[0].mxu0
  %v1939 = vpop.f32.mrb[0].mxu0
  %v1940 = vadd.f32 %v1651, %v1939
  %v1941 = vpop.f32.mrb[0].mxu0
  %1942 = vmatprep.mubr.bf16.mxu0 %v987
  %1943 = vmatmul.mubr.bf16.gmra.mrb[0].mxu0 %v986
  %v1944 = vpop.f32.mrb[0].mxu0
  %v1945 = vadd.f32 %v1656, %v1944
  %v1946 = vpop.f32.mrb[0].mxu0
  %v1947 = vpop.f32.mrb[0].mxu0
  %v1948 = vadd.f32 %v1659, %v1947
  %v1949 = vpop.f32.mrb[0].mxu0
  %1950 = vmatprep.mubr.bf16.mxu0 %v992
  %1951 = vmatmul.mubr.bf16.gmra.mrb[0].mxu0 %v991
  %v1952 = vpop.f32.mrb[0].mxu0
  %v1953 = vadd.f32 %v1664, %v1952
  %v1954 = vpop.f32.mrb[0].mxu0
  %v1955 = vpop.f32.mrb[0].mxu0
  %v1956 = vadd.f32 %v1667, %v1955
  %v1957 = vpop.f32.mrb[0].mxu0
  %1958 = vmatprep.mubr.bf16.mxu0 %v997
  %1959 = vmatmul.mubr.bf16.gmra.mrb[0].mxu0 %v996
  %v1960 = vpop.f32.mrb[0].mxu0
  %v1961 = vadd.f32 %v1672, %v1960
  %v1962 = vpop.f32.mrb[0].mxu0
  %v1963 = vpop.f32.mrb[0].mxu0
  %v1964 = vadd.f32 %v1675, %v1963
  %v1965 = vpop.f32.mrb[0].mxu0
  %1966 = vmatprep.mubr.bf16.mxu0 %v1002
  %1967 = vmatmul.mubr.bf16.gmra.mrb[0].mxu0 %v1001
  %v1968 = vpop.f32.mrb[0].mxu0
  %v1969 = vadd.f32 %v1680, %v1968
  %v1970 = vpop.f32.mrb[0].mxu0
  %v1971 = vpop.f32.mrb[0].mxu0
  %v1972 = vadd.f32 %v1683, %v1971
  %v1973 = vpop.f32.mrb[0].mxu0
  %1974 = vmatprep.mubr.bf16.mxu0 %v1007
  %1975 = vmatmul.mubr.bf16.gmra.mrb[0].mxu0 %v1006
  %v1976 = vpop.f32.mrb[0].mxu0
  %v1977 = vadd.f32 %v1688, %v1976
  %v1978 = vpop.f32.mrb[0].mxu0
  %v1979 = vpop.f32.mrb[0].mxu0
  %v1980 = vadd.f32 %v1691, %v1979
  %v1981 = vpop.f32.mrb[0].mxu0
  %1982 = vmatprep.mubr.bf16.mxu0 %v1012
  %1983 = vmatmul.mubr.bf16.gmra.mrb[0].mxu0 %v1011
  %v1984 = vpop.f32.mrb[0].mxu0
  %v1985 = vadd.f32 %v1696, %v1984
  %v1986 = vpop.f32.mrb[0].mxu0
  %v1987 = vpop.f32.mrb[0].mxu0
  %v1988 = vadd.f32 %v1699, %v1987
  %v1989 = vpop.f32.mrb[0].mxu0
  %1990 = vmatprep.mubr.bf16.mxu0 %v1017
  %1991 = vmatmul.mubr.bf16.gmra.mrb[0].mxu0 %v1016
  %v1992 = vpop.f32.mrb[0].mxu0
  %v1993 = vadd.f32 %v1704, %v1992
  %v1994 = vpop.f32.mrb[0].mxu0
  %v1995 = vpop.f32.mrb[0].mxu0
  %v1996 = vadd.f32 %v1707, %v1995
  %v1997 = vpop.f32.mrb[0].mxu0
  %1998 = vmatprep.mubr.bf16.mxu0 %v1022
  %1999 = vmatmul.mubr.bf16.gmra.mrb[0].mxu0 %v1021
  %v2000 = vpop.f32.mrb[0].mxu0
  %v2001 = vadd.f32 %v1712, %v2000
  %v2002 = vpop.f32.mrb[0].mxu0
  %v2003 = vpop.f32.mrb[0].mxu0
  %v2004 = vadd.f32 %v1715, %v2003
  %v2005 = vpop.f32.mrb[0].mxu0
  %2006 = vmatprep.mubr.bf16.mxu0 %v1027
  %2007 = vmatmul.mubr.bf16.gmra.mrb[0].mxu0 %v1026
  %v2008 = vpop.f32.mrb[0].mxu0
  %v2009 = vadd.f32 %v1720, %v2008
  %v2010 = vpop.f32.mrb[0].mxu0
  %v2011 = vpop.f32.mrb[0].mxu0
  %v2012 = vadd.f32 %v1723, %v2011
  %v2013 = vpop.f32.mrb[0].mxu0
  %2014 = vmatprep.mubr.bf16.mxu0 %v1032
  %2015 = vmatmul.mubr.bf16.gmra.mrb[0].mxu0 %v1031
  %v2016 = vpop.f32.mrb[0].mxu0
  %v2017 = vadd.f32 %v1728, %v2016
  %v2018 = vpop.f32.mrb[0].mxu0
  %v2019 = vpop.f32.mrb[0].mxu0
  %v2020 = vadd.f32 %v1731, %v2019
  %v2021 = vpop.f32.mrb[0].mxu0
  %2022 = vmatprep.mubr.bf16.mxu0 %v1037
  %2023 = vmatmul.mubr.bf16.gmra.mrb[0].mxu0 %v1036
  %v2024 = vpop.f32.mrb[0].mxu0
  %v2025 = vadd.f32 %v1736, %v2024
  %v2026 = vpop.f32.mrb[0].mxu0
  %v2027 = vpop.f32.mrb[0].mxu0
  %v2028 = vadd.f32 %v1739, %v2027
  %v2029 = vpop.f32.mrb[0].mxu0
  %2030 = vmatprep.mubr.bf16.mxu0 %v1042
  %2031 = vmatmul.mubr.bf16.gmra.mrb[0].mxu0 %v1041
  %v2032 = vpop.f32.mrb[0].mxu0
  %v2033 = vadd.f32 %v1744, %v2032
  %v2034 = vpop.f32.mrb[0].mxu0
  %v2035 = vpop.f32.mrb[0].mxu0
  %v2036 = vadd.f32 %v1747, %v2035
  %v2037 = vpop.f32.mrb[0].mxu0
  %2038 = vmatprep.mubr.bf16.mxu0 %v1047
  %2039 = vmatmul.mubr.bf16.gmra.mrb[0].mxu0 %v1046
  %v2040 = vpop.f32.mrb[0].mxu0
  %v2041 = vadd.f32 %v1752, %v2040
  %v2042 = vpop.f32.mrb[0].mxu0
  %v2043 = vpop.f32.mrb[0].mxu0
  %v2044 = vadd.f32 %v1755, %v2043
  %v2045 = vpop.f32.mrb[0].mxu0
  %2046 = vmatprep.mubr.bf16.mxu0 %v1052
  %2047 = vmatmul.mubr.bf16.gmra.mrb[0].mxu0 %v1051
  %v2048 = vpop.f32.mrb[0].mxu0
  %v2049 = vadd.f32 %v1760, %v2048
  %v2050 = vpop.f32.mrb[0].mxu0
  %v2051 = vpop.f32.mrb[0].mxu0
  %v2052 = vadd.f32 %v1763, %v2051
  %v2053 = vpop.f32.mrb[0].mxu0
  %2054 = vmatprep.mubr.bf16.mxu0 %v1057
  %2055 = vmatmul.mubr.bf16.gmra.mrb[0].mxu0 %v1056
  %v2056 = vpop.f32.mrb[0].mxu0
  %v2057 = vadd.f32 %v1768, %v2056
  %v2058 = vpop.f32.mrb[0].mxu0
  %v2059 = vpop.f32.mrb[0].mxu0
  %v2060 = vadd.f32 %v1771, %v2059
  %v2061 = vpop.f32.mrb[0].mxu0
  %2062 = vmatprep.mubr.bf16.mxu0 %v1062
  %2063 = vmatmul.mubr.bf16.gmra.mrb[0].mxu0 %v1061
  %v2064 = vpop.f32.mrb[0].mxu0
  %v2065 = vadd.f32 %v1776, %v2064
  %v2066 = vpop.f32.mrb[0].mxu0
  %v2067 = vpop.f32.mrb[0].mxu0
  %v2068 = vadd.f32 %v1779, %v2067
  %v2069 = vpop.f32.mrb[0].mxu0
  %2070 = vmatprep.mubr.bf16.mxu0 %v1067
  %2071 = vmatmul.mubr.bf16.gmra.mrb[0].mxu0 %v1066
  %v2072 = vpop.f32.mrb[0].mxu0
  %v2073 = vadd.f32 %v1784, %v2072
  %v2074 = vpop.f32.mrb[0].mxu0
  %v2075 = vpop.f32.mrb[0].mxu0
  %v2076 = vadd.f32 %v1787, %v2075
  %v2077 = vpop.f32.mrb[0].mxu0
  %2078 = vmatprep.mubr.bf16.mxu0 %v1072
  %2079 = vmatmul.mubr.bf16.gmra.mrb[0].mxu0 %v1071
  %v2080 = vpop.f32.mrb[0].mxu0
  %v2081 = vadd.f32 %v1792, %v2080
  %v2082 = vpop.f32.mrb[0].mxu0
  %v2083 = vpop.f32.mrb[0].mxu0
  %v2084 = vadd.f32 %v1795, %v2083
  %v2085 = vpop.f32.mrb[0].mxu0
  %2086 = vmatprep.mubr.bf16.mxu0 %v1077
  %2087 = vmatmul.mubr.bf16.gmra.mrb[0].mxu0 %v1076
  %v2088 = vpop.f32.mrb[0].mxu0
  %v2089 = vadd.f32 %v1800, %v2088
  %v2090 = vpop.f32.mrb[0].mxu0
  %v2091 = vpop.f32.mrb[0].mxu0
  %v2092 = vadd.f32 %v1803, %v2091
  %v2093 = vpop.f32.mrb[0].mxu0
  %2094 = vmatprep.mubr.bf16.mxu0 %v1082
  %2095 = vmatmul.mubr.bf16.gmra.mrb[0].mxu0 %v1081
  %v2096 = vpop.f32.mrb[0].mxu0
  %v2097 = vadd.f32 %v1808, %v2096
  %v2098 = vpop.f32.mrb[0].mxu0
  %v2099 = vpop.f32.mrb[0].mxu0
  %v2100 = vadd.f32 %v1811, %v2099
  %v2101 = vpop.f32.mrb[0].mxu0
  %2102 = vdwg.mxu0
  %2103 = vmatprep.subr.bf16.mxu0 0
  %2104 = vmatpush1.bf16.msra.mxu0 %v1388
  %2105 = vmatprep.subr.bf16.mxu0 0
  %2106 = vmatpush1.bf16.msra.mxu0 %v1389
  %2107 = vmatprep.subr.bf16.mxu0 0
  %2108 = vmatpush1.bf16.msra.mxu0 %v1390
  %2109 = vmatprep.subr.bf16.mxu0 0
  %2110 = vmatpush1.bf16.msra.mxu0 %v1391
  %2111 = vmatprep.subr.bf16.mxu0 0
  %2112 = vmatpush1.bf16.msra.mxu0 0
  %2113 = vmatprep.subr.bf16.mxu0 0
  %2114 = vmatpush1.bf16.msra.mxu0 0
  %2115 = vmatprep.subr.bf16.mxu0 0
  %2116 = vmatpush1.bf16.msra.mxu0 0
  %2117 = vmatprep.subr.bf16.mxu0 0
  %2118 = vmatpush1.bf16.msra.mxu0 0
  %2119 = vmatprep.subr.bf16.mxu0 0
  %2120 = vmatpush1.bf16.msra.mxu0 0
  %2121 = vmatprep.subr.bf16.mxu0 0
  %2122 = vmatpush1.bf16.msra.mxu0 0
  %2123 = vmatprep.subr.bf16.mxu0 0
  %2124 = vmatpush1.bf16.msra.mxu0 0
  %2125 = vmatprep.subr.bf16.mxu0 0
  %2126 = vmatpush1.bf16.msra.mxu0 0
  %2127 = vmatprep.subr.bf16.mxu0 0
  %2128 = vmatpush1.bf16.msra.mxu0 0
  %2129 = vmatprep.subr.bf16.mxu0 0
  %2130 = vmatpush1.bf16.msra.mxu0 0
  %2131 = vmatprep.subr.bf16.mxu0 0
  %2132 = vmatpush1.bf16.msra.mxu0 0
  %2133 = vmatprep.subr.bf16.mxu0 0
  %2134 = vmatpush1.bf16.msra.mxu0 0
  %2135 = vmatprep.mubr.bf16.mxu0 0
  %2136 = vmatmul.mubr.bf16.gmra.mrb[0].mxu0 %v1430
  %v2137 = vpop.f32.mrb[0].mxu0
  %v2138 = vadd.f32 %v1849, %v2137
  %v2139 = vpop.f32.mrb[0].mxu0
  %v2140 = vpop.f32.mrb[0].mxu0
  %v2141 = vadd.f32 %v1852, %v2140
  %v2142 = vpop.f32.mrb[0].mxu0
  %2143 = vmatprep.mubr.bf16.mxu0 0
  %2144 = vmatmul.mubr.bf16.gmra.mrb[0].mxu0 %v1433
  %v2145 = vpop.f32.mrb[0].mxu0
  %v2146 = vadd.f32 %v1857, %v2145
  %v2147 = vpop.f32.mrb[0].mxu0
  %v2148 = vpop.f32.mrb[0].mxu0
  %v2149 = vadd.f32 %v1860, %v2148
  %v2150 = vpop.f32.mrb[0].mxu0
  %2151 = vmatprep.mubr.bf16.mxu0 0
  %2152 = vmatmul.mubr.bf16.gmra.mrb[0].mxu0 %v1436
  %v2153 = vpop.f32.mrb[0].mxu0
  %v2154 = vadd.f32 %v1865, %v2153
  %v2155 = vpop.f32.mrb[0].mxu0
  %v2156 = vpop.f32.mrb[0].mxu0
  %v2157 = vadd.f32 %v1868, %v2156
  %v2158 = vpop.f32.mrb[0].mxu0
  %2159 = vmatprep.mubr.bf16.mxu0 0
  %2160 = vmatmul.mubr.bf16.gmra.mrb[0].mxu0 %v1439
  %v2161 = vpop.f32.mrb[0].mxu0
  %v2162 = vadd.f32 %v1873, %v2161
  %v2163 = vpop.f32.mrb[0].mxu0
  %v2164 = vpop.f32.mrb[0].mxu0
  %v2165 = vadd.f32 %v1876, %v2164
  %v2166 = vpop.f32.mrb[0].mxu0
  %2167 = vmatprep.mubr.bf16.mxu0 0
  %2168 = vmatmul.mubr.bf16.gmra.mrb[0].mxu0 %v1442
  %v2169 = vpop.f32.mrb[0].mxu0
  %v2170 = vadd.f32 %v1881, %v2169
  %v2171 = vpop.f32.mrb[0].mxu0
  %v2172 = vpop.f32.mrb[0].mxu0
  %v2173 = vadd.f32 %v1884, %v2172
  %v2174 = vpop.f32.mrb[0].mxu0
  %2175 = vmatprep.mubr.bf16.mxu0 0
  %2176 = vmatmul.mubr.bf16.gmra.mrb[0].mxu0 %v1445
  %v2177 = vpop.f32.mrb[0].mxu0
  %v2178 = vadd.f32 %v1889, %v2177
  %v2179 = vpop.f32.mrb[0].mxu0
  %v2180 = vpop.f32.mrb[0].mxu0
  %v2181 = vadd.f32 %v1892, %v2180
  %v2182 = vpop.f32.mrb[0].mxu0
  %2183 = vmatprep.mubr.bf16.mxu0 0
  %2184 = vmatmul.mubr.bf16.gmra.mrb[0].mxu0 %v1448
  %v2185 = vpop.f32.mrb[0].mxu0
  %v2186 = vadd.f32 %v1897, %v2185
  %v2187 = vpop.f32.mrb[0].mxu0
  %v2188 = vpop.f32.mrb[0].mxu0
  %v2189 = vadd.f32 %v1900, %v2188
  %v2190 = vpop.f32.mrb[0].mxu0
  %2191 = vmatprep.mubr.bf16.mxu0 0
  %2192 = vmatmul.mubr.bf16.gmra.mrb[0].mxu0 %v1451
  %v2193 = vpop.f32.mrb[0].mxu0
  %v2194 = vadd.f32 %v1905, %v2193
  %v2195 = vpop.f32.mrb[0].mxu0
  %v2196 = vpop.f32.mrb[0].mxu0
  %v2197 = vadd.f32 %v1908, %v2196
  %v2198 = vpop.f32.mrb[0].mxu0
  %2199 = vmatprep.mubr.bf16.mxu0 0
  %2200 = vmatmul.mubr.bf16.gmra.mrb[0].mxu0 %v1454
  %v2201 = vpop.f32.mrb[0].mxu0
  %v2202 = vadd.f32 %v1913, %v2201
  %v2203 = vpop.f32.mrb[0].mxu0
  %v2204 = vpop.f32.mrb[0].mxu0
  %v2205 = vadd.f32 %v1916, %v2204
  %v2206 = vpop.f32.mrb[0].mxu0
  %2207 = vmatprep.mubr.bf16.mxu0 0
  %2208 = vmatmul.mubr.bf16.gmra.mrb[0].mxu0 %v1457
  %v2209 = vpop.f32.mrb[0].mxu0
  %v2210 = vadd.f32 %v1921, %v2209
  %v2211 = vpop.f32.mrb[0].mxu0
  %v2212 = vpop.f32.mrb[0].mxu0
  %v2213 = vadd.f32 %v1924, %v2212
  %v2214 = vpop.f32.mrb[0].mxu0
  %2215 = vmatprep.mubr.bf16.mxu0 0
  %2216 = vmatmul.mubr.bf16.gmra.mrb[0].mxu0 %v1460
  %v2217 = vpop.f32.mrb[0].mxu0
  %v2218 = vadd.f32 %v1929, %v2217
  %v2219 = vpop.f32.mrb[0].mxu0
  %v2220 = vpop.f32.mrb[0].mxu0
  %v2221 = vadd.f32 %v1932, %v2220
  %v2222 = vpop.f32.mrb[0].mxu0
  %2223 = vmatprep.mubr.bf16.mxu0 0
  %2224 = vmatmul.mubr.bf16.gmra.mrb[0].mxu0 %v1463
  %v2225 = vpop.f32.mrb[0].mxu0
  %v2226 = vadd.f32 %v1937, %v2225
  %v2227 = vpop.f32.mrb[0].mxu0
  %v2228 = vpop.f32.mrb[0].mxu0
  %v2229 = vadd.f32 %v1940, %v2228
  %v2230 = vpop.f32.mrb[0].mxu0
  %2231 = vmatprep.mubr.bf16.mxu0 0
  %2232 = vmatmul.mubr.bf16.gmra.mrb[0].mxu0 %v1466
  %v2233 = vpop.f32.mrb[0].mxu0
  %v2234 = vadd.f32 %v1945, %v2233
  %v2235 = vpop.f32.mrb[0].mxu0
  %v2236 = vpop.f32.mrb[0].mxu0
  %v2237 = vadd.f32 %v1948, %v2236
  %v2238 = vpop.f32.mrb[0].mxu0
  %2239 = vmatprep.mubr.bf16.mxu0 0
  %2240 = vmatmul.mubr.bf16.gmra.mrb[0].mxu0 %v1469
  %v2241 = vpop.f32.mrb[0].mxu0
  %v2242 = vadd.f32 %v1953, %v2241
  %v2243 = vpop.f32.mrb[0].mxu0
  %v2244 = vpop.f32.mrb[0].mxu0
  %v2245 = vadd.f32 %v1956, %v2244
  %v2246 = vpop.f32.mrb[0].mxu0
  %2247 = vmatprep.mubr.bf16.mxu0 0
  %2248 = vmatmul.mubr.bf16.gmra.mrb[0].mxu0 %v1472
  %v2249 = vpop.f32.mrb[0].mxu0
  %v2250 = vadd.f32 %v1961, %v2249
  %v2251 = vpop.f32.mrb[0].mxu0
  %v2252 = vpop.f32.mrb[0].mxu0
  %v2253 = vadd.f32 %v1964, %v2252
  %v2254 = vpop.f32.mrb[0].mxu0
  %2255 = vmatprep.mubr.bf16.mxu0 0
  %2256 = vmatmul.mubr.bf16.gmra.mrb[0].mxu0 %v1475
  %v2257 = vpop.f32.mrb[0].mxu0
  %v2258 = vadd.f32 %v1969, %v2257
  %v2259 = vpop.f32.mrb[0].mxu0
  %v2260 = vpop.f32.mrb[0].mxu0
  %v2261 = vadd.f32 %v1972, %v2260
  %v2262 = vpop.f32.mrb[0].mxu0
  %2263 = vmatprep.mubr.bf16.mxu0 0
  %2264 = vmatmul.mubr.bf16.gmra.mrb[0].mxu0 %v1478
  %v2265 = vpop.f32.mrb[0].mxu0
  %v2266 = vadd.f32 %v1977, %v2265
  %v2267 = vpop.f32.mrb[0].mxu0
  %v2268 = vpop.f32.mrb[0].mxu0
  %v2269 = vadd.f32 %v1980, %v2268
  %v2270 = vpop.f32.mrb[0].mxu0
  %2271 = vmatprep.mubr.bf16.mxu0 0
  %2272 = vmatmul.mubr.bf16.gmra.mrb[0].mxu0 %v1481
  %v2273 = vpop.f32.mrb[0].mxu0
  %v2274 = vadd.f32 %v1985, %v2273
  %v2275 = vpop.f32.mrb[0].mxu0
  %v2276 = vpop.f32.mrb[0].mxu0
  %v2277 = vadd.f32 %v1988, %v2276
  %v2278 = vpop.f32.mrb[0].mxu0
  %2279 = vmatprep.mubr.bf16.mxu0 0
  %2280 = vmatmul.mubr.bf16.gmra.mrb[0].mxu0 %v1484
  %v2281 = vpop.f32.mrb[0].mxu0
  %v2282 = vadd.f32 %v1993, %v2281
  %v2283 = vpop.f32.mrb[0].mxu0
  %v2284 = vpop.f32.mrb[0].mxu0
  %v2285 = vadd.f32 %v1996, %v2284
  %v2286 = vpop.f32.mrb[0].mxu0
  %2287 = vmatprep.mubr.bf16.mxu0 0
  %2288 = vmatmul.mubr.bf16.gmra.mrb[0].mxu0 %v1487
  %v2289 = vpop.f32.mrb[0].mxu0
  %v2290 = vadd.f32 %v2001, %v2289
  %v2291 = vpop.f32.mrb[0].mxu0
  %v2292 = vpop.f32.mrb[0].mxu0
  %v2293 = vadd.f32 %v2004, %v2292
  %v2294 = vpop.f32.mrb[0].mxu0
  %2295 = vmatprep.mubr.bf16.mxu0 0
  %2296 = vmatmul.mubr.bf16.gmra.mrb[0].mxu0 %v1490
  %v2297 = vpop.f32.mrb[0].mxu0
  %v2298 = vadd.f32 %v2009, %v2297
  %v2299 = vpop.f32.mrb[0].mxu0
  %v2300 = vpop.f32.mrb[0].mxu0
  %v2301 = vadd.f32 %v2012, %v2300
  %v2302 = vpop.f32.mrb[0].mxu0
  %2303 = vmatprep.mubr.bf16.mxu0 0
  %2304 = vmatmul.mubr.bf16.gmra.mrb[0].mxu0 %v1493
  %v2305 = vpop.f32.mrb[0].mxu0
  %v2306 = vadd.f32 %v2017, %v2305
  %v2307 = vpop.f32.mrb[0].mxu0
  %v2308 = vpop.f32.mrb[0].mxu0
  %v2309 = vadd.f32 %v2020, %v2308
  %v2310 = vpop.f32.mrb[0].mxu0
  %2311 = vmatprep.mubr.bf16.mxu0 0
  %2312 = vmatmul.mubr.bf16.gmra.mrb[0].mxu0 %v1496
  %v2313 = vpop.f32.mrb[0].mxu0
  %v2314 = vadd.f32 %v2025, %v2313
  %v2315 = vpop.f32.mrb[0].mxu0
  %v2316 = vpop.f32.mrb[0].mxu0
  %v2317 = vadd.f32 %v2028, %v2316
  %v2318 = vpop.f32.mrb[0].mxu0
  %2319 = vmatprep.mubr.bf16.mxu0 0
  %2320 = vmatmul.mubr.bf16.gmra.mrb[0].mxu0 %v1499
  %v2321 = vpop.f32.mrb[0].mxu0
  %v2322 = vadd.f32 %v2033, %v2321
  %v2323 = vpop.f32.mrb[0].mxu0
  %v2324 = vpop.f32.mrb[0].mxu0
  %v2325 = vadd.f32 %v2036, %v2324
  %v2326 = vpop.f32.mrb[0].mxu0
  %2327 = vmatprep.mubr.bf16.mxu0 0
  %2328 = vmatmul.mubr.bf16.gmra.mrb[0].mxu0 %v1502
  %v2329 = vpop.f32.mrb[0].mxu0
  %v2330 = vadd.f32 %v2041, %v2329
  %v2331 = vpop.f32.mrb[0].mxu0
  %v2332 = vpop.f32.mrb[0].mxu0
  %v2333 = vadd.f32 %v2044, %v2332
  %v2334 = vpop.f32.mrb[0].mxu0
  %2335 = vmatprep.mubr.bf16.mxu0 0
  %2336 = vmatmul.mubr.bf16.gmra.mrb[0].mxu0 %v1505
  %v2337 = vpop.f32.mrb[0].mxu0
  %v2338 = vadd.f32 %v2049, %v2337
  %v2339 = vpop.f32.mrb[0].mxu0
  %v2340 = vpop.f32.mrb[0].mxu0
  %v2341 = vadd.f32 %v2052, %v2340
  %v2342 = vpop.f32.mrb[0].mxu0
  %2343 = vmatprep.mubr.bf16.mxu0 0
  %2344 = vmatmul.mubr.bf16.gmra.mrb[0].mxu0 %v1508
  %v2345 = vpop.f32.mrb[0].mxu0
  %v2346 = vadd.f32 %v2057, %v2345
  %v2347 = vpop.f32.mrb[0].mxu0
  %v2348 = vpop.f32.mrb[0].mxu0
  %v2349 = vadd.f32 %v2060, %v2348
  %v2350 = vpop.f32.mrb[0].mxu0
  %2351 = vmatprep.mubr.bf16.mxu0 0
  %2352 = vmatmul.mubr.bf16.gmra.mrb[0].mxu0 %v1511
  %v2353 = vpop.f32.mrb[0].mxu0
  %v2354 = vadd.f32 %v2065, %v2353
  %v2355 = vpop.f32.mrb[0].mxu0
  %v2356 = vpop.f32.mrb[0].mxu0
  %v2357 = vadd.f32 %v2068, %v2356
  %v2358 = vpop.f32.mrb[0].mxu0
  %2359 = vmatprep.mubr.bf16.mxu0 0
  %2360 = vmatmul.mubr.bf16.gmra.mrb[0].mxu0 %v1514
  %v2361 = vpop.f32.mrb[0].mxu0
  %v2362 = vadd.f32 %v2073, %v2361
  %v2363 = vpop.f32.mrb[0].mxu0
  %v2364 = vpop.f32.mrb[0].mxu0
  %v2365 = vadd.f32 %v2076, %v2364
  %v2366 = vpop.f32.mrb[0].mxu0
  %2367 = vmatprep.mubr.bf16.mxu0 0
  %2368 = vmatmul.mubr.bf16.gmra.mrb[0].mxu0 %v1517
  %v2369 = vpop.f32.mrb[0].mxu0
  %v2370 = vadd.f32 %v2081, %v2369
  %v2371 = vpop.f32.mrb[0].mxu0
  %v2372 = vpop.f32.mrb[0].mxu0
  %v2373 = vadd.f32 %v2084, %v2372
  %v2374 = vpop.f32.mrb[0].mxu0
  %2375 = vmatprep.mubr.bf16.mxu0 0
  %2376 = vmatmul.mubr.bf16.gmra.mrb[0].mxu0 %v1520
  %v2377 = vpop.f32.mrb[0].mxu0
  %v2378 = vadd.f32 %v2089, %v2377
  %v2379 = vpop.f32.mrb[0].mxu0
  %v2380 = vpop.f32.mrb[0].mxu0
  %v2381 = vadd.f32 %v2092, %v2380
  %v2382 = vpop.f32.mrb[0].mxu0
  %2383 = vmatprep.mubr.bf16.mxu0 0
  %2384 = vmatmul.mubr.bf16.gmra.mrb[0].mxu0 %v1523
  %v2385 = vpop.f32.mrb[0].mxu0
  %v2386 = vadd.f32 %v2097, %v2385
  %v2387 = vpop.f32.mrb[0].mxu0
  %v2388 = vpop.f32.mrb[0].mxu0
  %v2389 = vadd.f32 %v2100, %v2388
  %v2390 = vpop.f32.mrb[0].mxu0
  %2391 = vdwg.mxu0
  %v2392 = vadd.f32 %v84, %v2138
  %v2393 = vadd.f32 %v85, %v2141
  %v2394 = vadd.f32 %v86, %v2146
  %v2395 = vadd.f32 %v87, %v2149
  %v2396 = vadd.f32 %v88, %v2154
  %v2397 = vadd.f32 %v89, %v2157
  %v2398 = vadd.f32 %v90, %v2162
  %v2399 = vadd.f32 %v91, %v2165
  %v2400 = vadd.f32 %v92, %v2170
  %v2401 = vadd.f32 %v93, %v2173
  %v2402 = vadd.f32 %v94, %v2178
  %v2403 = vadd.f32 %v95, %v2181
  %v2404 = vadd.f32 %v96, %v2186
  %v2405 = vadd.f32 %v97, %v2189
  %v2406 = vadd.f32 %v98, %v2194
  %v2407 = vadd.f32 %v99, %v2197
  %v2408 = vadd.f32 %v100, %v2202
  %v2409 = vadd.f32 %v101, %v2205
  %v2410 = vadd.f32 %v102, %v2210
  %v2411 = vadd.f32 %v103, %v2213
  %v2412 = vadd.f32 %v104, %v2218
  %v2413 = vadd.f32 %v105, %v2221
  %v2414 = vadd.f32 %v106, %v2226
  %v2415 = vadd.f32 %v107, %v2229
  %v2416 = vadd.f32 %v108, %v2234
  %v2417 = vadd.f32 %v109, %v2237
  %v2418 = vadd.f32 %v110, %v2242
  %v2419 = vadd.f32 %v111, %v2245
  %v2420 = vadd.f32 %v112, %v2250
  %v2421 = vadd.f32 %v113, %v2253
  %v2422 = vadd.f32 %v114, %v2258
  %v2423 = vadd.f32 %v115, %v2261
  %v2424 = vadd.f32 %v116, %v2266
  %v2425 = vadd.f32 %v117, %v2269
  %v2426 = vadd.f32 %v118, %v2274
  %v2427 = vadd.f32 %v119, %v2277
  %v2428 = vadd.f32 %v120, %v2282
  %v2429 = vadd.f32 %v121, %v2285
  %v2430 = vadd.f32 %v122, %v2290
  %v2431 = vadd.f32 %v123, %v2293
  %v2432 = vadd.f32 %v124, %v2298
  %v2433 = vadd.f32 %v125, %v2301
  %v2434 = vadd.f32 %v126, %v2306
  %v2435 = vadd.f32 %v127, %v2309
  %v2436 = vadd.f32 %v128, %v2314
  %v2437 = vadd.f32 %v129, %v2317
  %v2438 = vadd.f32 %v130, %v2322
  %v2439 = vadd.f32 %v131, %v2325
  %v2440 = vadd.f32 %v132, %v2330
  %v2441 = vadd.f32 %v133, %v2333
  %v2442 = vadd.f32 %v134, %v2338
  %v2443 = vadd.f32 %v135, %v2341
  %v2444 = vadd.f32 %v136, %v2346
  %v2445 = vadd.f32 %v137, %v2349
  %v2446 = vadd.f32 %v138, %v2354
  %v2447 = vadd.f32 %v139, %v2357
  %v2448 = vadd.f32 %v140, %v2362
  %v2449 = vadd.f32 %v141, %v2365
  %v2450 = vadd.f32 %v142, %v2370
  %v2451 = vadd.f32 %v143, %v2373
  %v2452 = vadd.f32 %v144, %v2378
  %v2453 = vadd.f32 %v145, %v2381
  %v2454 = vadd.f32 %v146, %v2386
  %v2455 = vadd.f32 %v147, %v2389
  %2456 = vst.msk [vmem:[%s2] sm:$0xff] %vm1428, %v2392
  %2457 = vst.msk [vmem:[%s2 + $0x8] sm:$0xff] %vm1428, %v2393
  %2458 = vst.msk [vmem:[%s2 + $0x10] sm:$0xff] %vm1428, %v2394
  %2459 = vst.msk [vmem:[%s2 + $0x18] sm:$0xff] %vm1428, %v2395
  %2460 = vst.msk [vmem:[%s2 + $0x20] sm:$0xff] %vm1428, %v2396
  %2461 = vst.msk [vmem:[%s2 + $0x28] sm:$0xff] %vm1428, %v2397
  %2462 = vst.msk [vmem:[%s2 + $0x30] sm:$0xff] %vm1428, %v2398
  %2463 = vst.msk [vmem:[%s2 + $0x38] sm:$0xff] %vm1428, %v2399
  %2464 = vst.msk [vmem:[%s2 + $0x40] sm:$0xff] %vm1428, %v2400
  %2465 = vst.msk [vmem:[%s2 + $0x48] sm:$0xff] %vm1428, %v2401
  %2466 = vst.msk [vmem:[%s2 + $0x50] sm:$0xff] %vm1428, %v2402
  %2467 = vst.msk [vmem:[%s2 + $0x58] sm:$0xff] %vm1428, %v2403
  %2468 = vst.msk [vmem:[%s2 + $0x60] sm:$0xff] %vm1428, %v2404
  %2469 = vst.msk [vmem:[%s2 + $0x68] sm:$0xff] %vm1428, %v2405
  %2470 = vst.msk [vmem:[%s2 + $0x70] sm:$0xff] %vm1428, %v2406
  %2471 = vst.msk [vmem:[%s2 + $0x78] sm:$0xff] %vm1428, %v2407
  %2472 = vst.msk [vmem:[%s2 + $0x80] sm:$0xff] %vm1428, %v2408
  %2473 = vst.msk [vmem:[%s2 + $0x88] sm:$0xff] %vm1428, %v2409
  %2474 = vst.msk [vmem:[%s2 + $0x90] sm:$0xff] %vm1428, %v2410
  %2475 = vst.msk [vmem:[%s2 + $0x98] sm:$0xff] %vm1428, %v2411
  %2476 = vst.msk [vmem:[%s2 + $0xa0] sm:$0xff] %vm1428, %v2412
  %2477 = vst.msk [vmem:[%s2 + $0xa8] sm:$0xff] %vm1428, %v2413
  %2478 = vst.msk [vmem:[%s2 + $0xb0] sm:$0xff] %vm1428, %v2414
  %2479 = vst.msk [vmem:[%s2 + $0xb8] sm:$0xff] %vm1428, %v2415
  %2480 = vst.msk [vmem:[%s2 + $0xc0] sm:$0xff] %vm1428, %v2416
  %2481 = vst.msk [vmem:[%s2 + $0xc8] sm:$0xff] %vm1428, %v2417
  %2482 = vst.msk [vmem:[%s2 + $0xd0] sm:$0xff] %vm1428, %v2418
  %2483 = vst.msk [vmem:[%s2 + $0xd8] sm:$0xff] %vm1428, %v2419
  %2484 = vst.msk [vmem:[%s2 + $0xe0] sm:$0xff] %vm1428, %v2420
  %2485 = vst.msk [vmem:[%s2 + $0xe8] sm:$0xff] %vm1428, %v2421
  %2486 = vst.msk [vmem:[%s2 + $0xf0] sm:$0xff] %vm1428, %v2422
  %2487 = vst.msk [vmem:[%s2 + $0xf8] sm:$0xff] %vm1428, %v2423
  %2488 = vst.msk [vmem:[%s2 + $0x100] sm:$0xff] %vm1428, %v2424
  %2489 = vst.msk [vmem:[%s2 + $0x108] sm:$0xff] %vm1428, %v2425
  %2490 = vst.msk [vmem:[%s2 + $0x110] sm:$0xff] %vm1428, %v2426
  %2491 = vst.msk [vmem:[%s2 + $0x118] sm:$0xff] %vm1428, %v2427
  %2492 = vst.msk [vmem:[%s2 + $0x120] sm:$0xff] %vm1428, %v2428
  %2493 = vst.msk [vmem:[%s2 + $0x128] sm:$0xff] %vm1428, %v2429
  %2494 = vst.msk [vmem:[%s2 + $0x130] sm:$0xff] %vm1428, %v2430
  %2495 = vst.msk [vmem:[%s2 + $0x138] sm:$0xff] %vm1428, %v2431
  %2496 = vst.msk [vmem:[%s2 + $0x140] sm:$0xff] %vm1428, %v2432
  %2497 = vst.msk [vmem:[%s2 + $0x148] sm:$0xff] %vm1428, %v2433
  %2498 = vst.msk [vmem:[%s2 + $0x150] sm:$0xff] %vm1428, %v2434
  %2499 = vst.msk [vmem:[%s2 + $0x158] sm:$0xff] %vm1428, %v2435
  %2500 = vst.msk [vmem:[%s2 + $0x160] sm:$0xff] %vm1428, %v2436
  %2501 = vst.msk [vmem:[%s2 + $0x168] sm:$0xff] %vm1428, %v2437
  %2502 = vst.msk [vmem:[%s2 + $0x170] sm:$0xff] %vm1428, %v2438
  %2503 = vst.msk [vmem:[%s2 + $0x178] sm:$0xff] %vm1428, %v2439
  %2504 = vst.msk [vmem:[%s2 + $0x180] sm:$0xff] %vm1428, %v2440
  %2505 = vst.msk [vmem:[%s2 + $0x188] sm:$0xff] %vm1428, %v2441
  %2506 = vst.msk [vmem:[%s2 + $0x190] sm:$0xff] %vm1428, %v2442
  %2507 = vst.msk [vmem:[%s2 + $0x198] sm:$0xff] %vm1428, %v2443
  %2508 = vst.msk [vmem:[%s2 + $0x1a0] sm:$0xff] %vm1428, %v2444
  %2509 = vst.msk [vmem:[%s2 + $0x1a8] sm:$0xff] %vm1428, %v2445
  %2510 = vst.msk [vmem:[%s2 + $0x1b0] sm:$0xff] %vm1428, %v2446
  %2511 = vst.msk [vmem:[%s2 + $0x1b8] sm:$0xff] %vm1428, %v2447
  %2512 = vst.msk [vmem:[%s2 + $0x1c0] sm:$0xff] %vm1428, %v2448
  %2513 = vst.msk [vmem:[%s2 + $0x1c8] sm:$0xff] %vm1428, %v2449
  %2514 = vst.msk [vmem:[%s2 + $0x1d0] sm:$0xff] %vm1428, %v2450
  %2515 = vst.msk [vmem:[%s2 + $0x1d8] sm:$0xff] %vm1428, %v2451
  %2516 = vst.msk [vmem:[%s2 + $0x1e0] sm:$0xff] %vm1428, %v2452
  %2517 = vst.msk [vmem:[%s2 + $0x1e8] sm:$0xff] %vm1428, %v2453
  %2518 = vst.msk [vmem:[%s2 + $0x1f0] sm:$0xff] %vm1428, %v2454
  %2519 = vst.msk [vmem:[%s2 + $0x1f8] sm:$0xff] %vm1428, %v2455
  // Predicated region
  $region14: #{_lambda_.4} parent=0 // pred_check
    %p2520 = pneg %p15
  $region15: #{_lambda_.4} parent=0 // pred_check_branch
    %2522 = sbr.rel (%p2520) target = $region17
  $region16: #{_lambda_.4} parent=0 // pred_region
    %v2523 = vld [vmem:[%s2] sm:$0xff]
    %v2524 = vld [vmem:[%s2 + $0x8] sm:$0xff]
    %v2525 = vld [vmem:[%s2 + $0x10] sm:$0xff]
    %v2526 = vld [vmem:[%s2 + $0x18] sm:$0xff]
    %v2527 = vld [vmem:[%s2 + $0x20] sm:$0xff]
    %v2528 = vld [vmem:[%s2 + $0x28] sm:$0xff]
    %v2529 = vld [vmem:[%s2 + $0x30] sm:$0xff]
    %v2530 = vld [vmem:[%s2 + $0x38] sm:$0xff]
    %v2531 = vld [vmem:[%s2 + $0x40] sm:$0xff]
    %v2532 = vld [vmem:[%s2 + $0x48] sm:$0xff]
    %v2533 = vld [vmem:[%s2 + $0x50] sm:$0xff]
    %v2534 = vld [vmem:[%s2 + $0x58] sm:$0xff]
    %v2535 = vld [vmem:[%s2 + $0x60] sm:$0xff]
    %v2536 = vld [vmem:[%s2 + $0x68] sm:$0xff]
    %v2537 = vld [vmem:[%s2 + $0x70] sm:$0xff]
    %v2538 = vld [vmem:[%s2 + $0x78] sm:$0xff]
    %v2539 = vld [vmem:[%s2 + $0x80] sm:$0xff]
    %v2540 = vld [vmem:[%s2 + $0x88] sm:$0xff]
    %v2541 = vld [vmem:[%s2 + $0x90] sm:$0xff]
    %v2542 = vld [vmem:[%s2 + $0x98] sm:$0xff]
    %v2543 = vld [vmem:[%s2 + $0xa0] sm:$0xff]
    %v2544 = vld [vmem:[%s2 + $0xa8] sm:$0xff]
    %v2545 = vld [vmem:[%s2 + $0xb0] sm:$0xff]
    %v2546 = vld [vmem:[%s2 + $0xb8] sm:$0xff]
    %v2547 = vld [vmem:[%s2 + $0xc0] sm:$0xff]
    %v2548 = vld [vmem:[%s2 + $0xc8] sm:$0xff]
    %v2549 = vld [vmem:[%s2 + $0xd0] sm:$0xff]
    %v2550 = vld [vmem:[%s2 + $0xd8] sm:$0xff]
    %v2551 = vld [vmem:[%s2 + $0xe0] sm:$0xff]
    %v2552 = vld [vmem:[%s2 + $0xe8] sm:$0xff]
    %v2553 = vld [vmem:[%s2 + $0xf0] sm:$0xff]
    %v2554 = vld [vmem:[%s2 + $0xf8] sm:$0xff]
    %v2555 = vld [vmem:[%s2 + $0x100] sm:$0xff]
    %v2556 = vld [vmem:[%s2 + $0x108] sm:$0xff]
    %v2557 = vld [vmem:[%s2 + $0x110] sm:$0xff]
    %v2558 = vld [vmem:[%s2 + $0x118] sm:$0xff]
    %v2559 = vld [vmem:[%s2 + $0x120] sm:$0xff]
    %v2560 = vld [vmem:[%s2 + $0x128] sm:$0xff]
    %v2561 = vld [vmem:[%s2 + $0x130] sm:$0xff]
    %v2562 = vld [vmem:[%s2 + $0x138] sm:$0xff]
    %v2563 = vld [vmem:[%s2 + $0x140] sm:$0xff]
    %v2564 = vld [vmem:[%s2 + $0x148] sm:$0xff]
    %v2565 = vld [vmem:[%s2 + $0x150] sm:$0xff]
    %v2566 = vld [vmem:[%s2 + $0x158] sm:$0xff]
    %v2567 = vld [vmem:[%s2 + $0x160] sm:$0xff]
    %v2568 = vld [vmem:[%s2 + $0x168] sm:$0xff]
    %v2569 = vld [vmem:[%s2 + $0x170] sm:$0xff]
    %v2570 = vld [vmem:[%s2 + $0x178] sm:$0xff]
    %v2571 = vld [vmem:[%s2 + $0x180] sm:$0xff]
    %v2572 = vld [vmem:[%s2 + $0x188] sm:$0xff]
    %v2573 = vld [vmem:[%s2 + $0x190] sm:$0xff]
    %v2574 = vld [vmem:[%s2 + $0x198] sm:$0xff]
    %v2575 = vld [vmem:[%s2 + $0x1a0] sm:$0xff]
    %v2576 = vld [vmem:[%s2 + $0x1a8] sm:$0xff]
    %v2577 = vld [vmem:[%s2 + $0x1b0] sm:$0xff]
    %v2578 = vld [vmem:[%s2 + $0x1b8] sm:$0xff]
    %v2579 = vld [vmem:[%s2 + $0x1c0] sm:$0xff]
    %v2580 = vld [vmem:[%s2 + $0x1c8] sm:$0xff]
    %v2581 = vld [vmem:[%s2 + $0x1d0] sm:$0xff]
    %v2582 = vld [vmem:[%s2 + $0x1d8] sm:$0xff]
    %v2583 = vld [vmem:[%s2 + $0x1e0] sm:$0xff]
    %v2584 = vld [vmem:[%s2 + $0x1e8] sm:$0xff]
    %v2585 = vld [vmem:[%s2 + $0x1f0] sm:$0xff]
    %v2586 = vld [vmem:[%s2 + $0x1f8] sm:$0xff]
    %v2587 = vsel %vm1428, %v2523, 0.0
    %v2588 = vsel %vm1428, %v2524, 0.0
    %v2589 = vadd.f32 %v2587, %v2588
    %v2590 = vsel %vm1428, %v2525, 0.0
    %v2591 = vadd.f32 %v2589, %v2590
    %v2592 = vsel %vm1428, %v2526, 0.0
    %v2593 = vadd.f32 %v2591, %v2592
    %v2594 = vsel %vm1428, %v2527, 0.0
    %v2595 = vadd.f32 %v2593, %v2594
    %v2596 = vsel %vm1428, %v2528, 0.0
    %v2597 = vadd.f32 %v2595, %v2596
    %v2598 = vsel %vm1428, %v2529, 0.0
    %v2599 = vadd.f32 %v2597, %v2598
    %v2600 = vsel %vm1428, %v2530, 0.0
    %v2601 = vadd.f32 %v2599, %v2600
    %v2602 = vsel %vm1428, %v2531, 0.0
    %v2603 = vadd.f32 %v2601, %v2602
    %v2604 = vsel %vm1428, %v2532, 0.0
    %v2605 = vadd.f32 %v2603, %v2604
    %v2606 = vsel %vm1428, %v2533, 0.0
    %v2607 = vadd.f32 %v2605, %v2606
    %v2608 = vsel %vm1428, %v2534, 0.0
    %v2609 = vadd.f32 %v2607, %v2608
    %v2610 = vsel %vm1428, %v2535, 0.0
    %v2611 = vadd.f32 %v2609, %v2610
    %v2612 = vsel %vm1428, %v2536, 0.0
    %v2613 = vadd.f32 %v2611, %v2612
    %v2614 = vsel %vm1428, %v2537, 0.0
    %v2615 = vadd.f32 %v2613, %v2614
    %v2616 = vsel %vm1428, %v2538, 0.0
    %v2617 = vadd.f32 %v2615, %v2616
    %v2618 = vsel %vm1428, %v2539, 0.0
    %v2619 = vadd.f32 %v2617, %v2618
    %v2620 = vsel %vm1428, %v2540, 0.0
    %v2621 = vadd.f32 %v2619, %v2620
    %v2622 = vsel %vm1428, %v2541, 0.0
    %v2623 = vadd.f32 %v2621, %v2622
    %v2624 = vsel %vm1428, %v2542, 0.0
    %v2625 = vadd.f32 %v2623, %v2624
    %v2626 = vsel %vm1428, %v2543, 0.0
    %v2627 = vadd.f32 %v2625, %v2626
    %v2628 = vsel %vm1428, %v2544, 0.0
    %v2629 = vadd.f32 %v2627, %v2628
    %v2630 = vsel %vm1428, %v2545, 0.0
    %v2631 = vadd.f32 %v2629, %v2630
    %v2632 = vsel %vm1428, %v2546, 0.0
    %v2633 = vadd.f32 %v2631, %v2632
    %v2634 = vsel %vm1428, %v2547, 0.0
    %v2635 = vadd.f32 %v2633, %v2634
    %v2636 = vsel %vm1428, %v2548, 0.0
    %v2637 = vadd.f32 %v2635, %v2636
    %v2638 = vsel %vm1428, %v2549, 0.0
    %v2639 = vadd.f32 %v2637, %v2638
    %v2640 = vsel %vm1428, %v2550, 0.0
    %v2641 = vadd.f32 %v2639, %v2640
    %v2642 = vsel %vm1428, %v2551, 0.0
    %v2643 = vadd.f32 %v2641, %v2642
    %v2644 = vsel %vm1428, %v2552, 0.0
    %v2645 = vadd.f32 %v2643, %v2644
    %v2646 = vsel %vm1428, %v2553, 0.0
    %v2647 = vadd.f32 %v2645, %v2646
    %v2648 = vsel %vm1428, %v2554, 0.0
    %v2649 = vadd.f32 %v2647, %v2648
    %v2650 = vsel %vm1428, %v2555, 0.0
    %v2651 = vadd.f32 %v2649, %v2650
    %v2652 = vsel %vm1428, %v2556, 0.0
    %v2653 = vadd.f32 %v2651, %v2652
    %v2654 = vsel %vm1428, %v2557, 0.0
    %v2655 = vadd.f32 %v2653, %v2654
    %v2656 = vsel %vm1428, %v2558, 0.0
    %v2657 = vadd.f32 %v2655, %v2656
    %v2658 = vsel %vm1428, %v2559, 0.0
    %v2659 = vadd.f32 %v2657, %v2658
    %v2660 = vsel %vm1428, %v2560, 0.0
    %v2661 = vadd.f32 %v2659, %v2660
    %v2662 = vsel %vm1428, %v2561, 0.0
    %v2663 = vadd.f32 %v2661, %v2662
    %v2664 = vsel %vm1428, %v2562, 0.0
    %v2665 = vadd.f32 %v2663, %v2664
    %v2666 = vsel %vm1428, %v2563, 0.0
    %v2667 = vadd.f32 %v2665, %v2666
    %v2668 = vsel %vm1428, %v2564, 0.0
    %v2669 = vadd.f32 %v2667, %v2668
    %v2670 = vsel %vm1428, %v2565, 0.0
    %v2671 = vadd.f32 %v2669, %v2670
    %v2672 = vsel %vm1428, %v2566, 0.0
    %v2673 = vadd.f32 %v2671, %v2672
    %v2674 = vsel %vm1428, %v2567, 0.0
    %v2675 = vadd.f32 %v2673, %v2674
    %v2676 = vsel %vm1428, %v2568, 0.0
    %v2677 = vadd.f32 %v2675, %v2676
    %v2678 = vsel %vm1428, %v2569, 0.0
    %v2679 = vadd.f32 %v2677, %v2678
    %v2680 = vsel %vm1428, %v2570, 0.0
    %v2681 = vadd.f32 %v2679, %v2680
    %v2682 = vsel %vm1428, %v2571, 0.0
    %v2683 = vadd.f32 %v2681, %v2682
    %v2684 = vsel %vm1428, %v2572, 0.0
    %v2685 = vadd.f32 %v2683, %v2684
    %v2686 = vsel %vm1428, %v2573, 0.0
    %v2687 = vadd.f32 %v2685, %v2686
    %v2688 = vsel %vm1428, %v2574, 0.0
    %v2689 = vadd.f32 %v2687, %v2688
    %v2690 = vsel %vm1428, %v2575, 0.0
    %v2691 = vadd.f32 %v2689, %v2690
    %v2692 = vsel %vm1428, %v2576, 0.0
    %v2693 = vadd.f32 %v2691, %v2692
    %v2694 = vsel %vm1428, %v2577, 0.0
    %v2695 = vadd.f32 %v2693, %v2694
    %v2696 = vsel %vm1428, %v2578, 0.0
    %v2697 = vadd.f32 %v2695, %v2696
    %v2698 = vsel %vm1428, %v2579, 0.0
    %v2699 = vadd.f32 %v2697, %v2698
    %v2700 = vsel %vm1428, %v2580, 0.0
    %v2701 = vadd.f32 %v2699, %v2700
    %v2702 = vsel %vm1428, %v2581, 0.0
    %v2703 = vadd.f32 %v2701, %v2702
    %v2704 = vsel %vm1428, %v2582, 0.0
    %v2705 = vadd.f32 %v2703, %v2704
    %v2706 = vsel %vm1428, %v2583, 0.0
    %v2707 = vadd.f32 %v2705, %v2706
    %v2708 = vsel %vm1428, %v2584, 0.0
    %v2709 = vadd.f32 %v2707, %v2708
    %v2710 = vsel %vm1428, %v2585, 0.0
    %v2711 = vadd.f32 %v2709, %v2710
    %v2712 = vsel %vm1428, %v2586, 0.0
    %v2713 = vadd.f32 %v2711, %v2712
    %v2714 = vrot.slane %v2713, 4
    %v2715 = vadd.f32 %v2713, %v2714
    %v2716 = vrot.slane %v2715, 2
    %v2717 = vadd.f32 %v2715, %v2716
    %v2718 = vrot.slane %v2717, 1
    %v2719 = vadd.f32 %v2717, %v2718
    %v2720 = vmul.f32 %v2523, %v2523
    %v2721 = vmul.f32 %v2524, %v2524
    %v2722 = vmul.f32 %v2525, %v2525
    %v2723 = vmul.f32 %v2526, %v2526
    %v2724 = vmul.f32 %v2527, %v2527
    %v2725 = vmul.f32 %v2528, %v2528
    %v2726 = vmul.f32 %v2529, %v2529
    %v2727 = vmul.f32 %v2530, %v2530
    %v2728 = vmul.f32 %v2531, %v2531
    %v2729 = vmul.f32 %v2532, %v2532
    %v2730 = vmul.f32 %v2533, %v2533
    %v2731 = vmul.f32 %v2534, %v2534
    %v2732 = vmul.f32 %v2535, %v2535
    %v2733 = vmul.f32 %v2536, %v2536
    %v2734 = vmul.f32 %v2537, %v2537
    %v2735 = vmul.f32 %v2538, %v2538
    %v2736 = vmul.f32 %v2539, %v2539
    %v2737 = vmul.f32 %v2540, %v2540
    %v2738 = vmul.f32 %v2541, %v2541
    %v2739 = vmul.f32 %v2542, %v2542
    %v2740 = vmul.f32 %v2543, %v2543
    %v2741 = vmul.f32 %v2544, %v2544
    %v2742 = vmul.f32 %v2545, %v2545
    %v2743 = vmul.f32 %v2546, %v2546
    %v2744 = vmul.f32 %v2547, %v2547
    %v2745 = vmul.f32 %v2548, %v2548
    %v2746 = vmul.f32 %v2549, %v2549
    %v2747 = vmul.f32 %v2550, %v2550
    %v2748 = vmul.f32 %v2551, %v2551
    %v2749 = vmul.f32 %v2552, %v2552
    %v2750 = vmul.f32 %v2553, %v2553
    %v2751 = vmul.f32 %v2554, %v2554
    %v2752 = vmul.f32 %v2555, %v2555
    %v2753 = vmul.f32 %v2556, %v2556
    %v2754 = vmul.f32 %v2557, %v2557
    %v2755 = vmul.f32 %v2558, %v2558
    %v2756 = vmul.f32 %v2559, %v2559
    %v2757 = vmul.f32 %v2560, %v2560
    %v2758 = vmul.f32 %v2561, %v2561
    %v2759 = vmul.f32 %v2562, %v2562
    %v2760 = vmul.f32 %v2563, %v2563
    %v2761 = vmul.f32 %v2564, %v2564
    %v2762 = vmul.f32 %v2565, %v2565
    %v2763 = vmul.f32 %v2566, %v2566
    %v2764 = vmul.f32 %v2567, %v2567
    %v2765 = vmul.f32 %v2568, %v2568
    %v2766 = vmul.f32 %v2569, %v2569
    %v2767 = vmul.f32 %v2570, %v2570
    %v2768 = vmul.f32 %v2571, %v2571
    %v2769 = vmul.f32 %v2572, %v2572
    %v2770 = vmul.f32 %v2573, %v2573
    %v2771 = vmul.f32 %v2574, %v2574
    %v2772 = vmul.f32 %v2575, %v2575
    %v2773 = vmul.f32 %v2576, %v2576
    %v2774 = vmul.f32 %v2577, %v2577
    %v2775 = vmul.f32 %v2578, %v2578
    %v2776 = vmul.f32 %v2579, %v2579
    %v2777 = vmul.f32 %v2580, %v2580
    %v2778 = vmul.f32 %v2581, %v2581
    %v2779 = vmul.f32 %v2582, %v2582
    %v2780 = vmul.f32 %v2583, %v2583
    %v2781 = vmul.f32 %v2584, %v2584
    %v2782 = vmul.f32 %v2585, %v2585
    %v2783 = vmul.f32 %v2586, %v2586
    %v2784 = vsel %vm1428, %v2720, 0.0
    %v2785 = vsel %vm1428, %v2721, 0.0
    %v2786 = vadd.f32 %v2784, %v2785
    %v2787 = vsel %vm1428, %v2722, 0.0
    %v2788 = vadd.f32 %v2786, %v2787
    %v2789 = vsel %vm1428, %v2723, 0.0
    %v2790 = vadd.f32 %v2788, %v2789
    %v2791 = vsel %vm1428, %v2724, 0.0
    %v2792 = vadd.f32 %v2790, %v2791
    %v2793 = vsel %vm1428, %v2725, 0.0
    %v2794 = vadd.f32 %v2792, %v2793
    %v2795 = vsel %vm1428, %v2726, 0.0
    %v2796 = vadd.f32 %v2794, %v2795
    %v2797 = vsel %vm1428, %v2727, 0.0
    %v2798 = vadd.f32 %v2796, %v2797
    %v2799 = vsel %vm1428, %v2728, 0.0
    %v2800 = vadd.f32 %v2798, %v2799
    %v2801 = vsel %vm1428, %v2729, 0.0
    %v2802 = vadd.f32 %v2800, %v2801
    %v2803 = vsel %vm1428, %v2730, 0.0
    %v2804 = vadd.f32 %v2802, %v2803
    %v2805 = vsel %vm1428, %v2731, 0.0
    %v2806 = vadd.f32 %v2804, %v2805
    %v2807 = vsel %vm1428, %v2732, 0.0
    %v2808 = vadd.f32 %v2806, %v2807
    %v2809 = vsel %vm1428, %v2733, 0.0
    %v2810 = vadd.f32 %v2808, %v2809
    %v2811 = vsel %vm1428, %v2734, 0.0
    %v2812 = vadd.f32 %v2810, %v2811
    %v2813 = vsel %vm1428, %v2735, 0.0
    %v2814 = vadd.f32 %v2812, %v2813
    %v2815 = vsel %vm1428, %v2736, 0.0
    %v2816 = vadd.f32 %v2814, %v2815
    %v2817 = vsel %vm1428, %v2737, 0.0
    %v2818 = vadd.f32 %v2816, %v2817
    %v2819 = vsel %vm1428, %v2738, 0.0
    %v2820 = vadd.f32 %v2818, %v2819
    %v2821 = vsel %vm1428, %v2739, 0.0
    %v2822 = vadd.f32 %v2820, %v2821
    %v2823 = vsel %vm1428, %v2740, 0.0
    %v2824 = vadd.f32 %v2822, %v2823
    %v2825 = vsel %vm1428, %v2741, 0.0
    %v2826 = vadd.f32 %v2824, %v2825
    %v2827 = vsel %vm1428, %v2742, 0.0
    %v2828 = vadd.f32 %v2826, %v2827
    %v2829 = vsel %vm1428, %v2743, 0.0
    %v2830 = vadd.f32 %v2828, %v2829
    %v2831 = vsel %vm1428, %v2744, 0.0
    %v2832 = vadd.f32 %v2830, %v2831
    %v2833 = vsel %vm1428, %v2745, 0.0
    %v2834 = vadd.f32 %v2832, %v2833
    %v2835 = vsel %vm1428, %v2746, 0.0
    %v2836 = vadd.f32 %v2834, %v2835
    %v2837 = vsel %vm1428, %v2747, 0.0
    %v2838 = vadd.f32 %v2836, %v2837
    %v2839 = vsel %vm1428, %v2748, 0.0
    %v2840 = vadd.f32 %v2838, %v2839
    %v2841 = vsel %vm1428, %v2749, 0.0
    %v2842 = vadd.f32 %v2840, %v2841
    %v2843 = vsel %vm1428, %v2750, 0.0
    %v2844 = vadd.f32 %v2842, %v2843
    %v2845 = vsel %vm1428, %v2751, 0.0
    %v2846 = vadd.f32 %v2844, %v2845
    %v2847 = vsel %vm1428, %v2752, 0.0
    %v2848 = vadd.f32 %v2846, %v2847
    %v2849 = vsel %vm1428, %v2753, 0.0
    %v2850 = vadd.f32 %v2848, %v2849
    %v2851 = vsel %vm1428, %v2754, 0.0
    %v2852 = vadd.f32 %v2850, %v2851
    %v2853 = vsel %vm1428, %v2755, 0.0
    %v2854 = vadd.f32 %v2852, %v2853
    %v2855 = vsel %vm1428, %v2756, 0.0
    %v2856 = vadd.f32 %v2854, %v2855
    %v2857 = vsel %vm1428, %v2757, 0.0
    %v2858 = vadd.f32 %v2856, %v2857
    %v2859 = vsel %vm1428, %v2758, 0.0
    %v2860 = vadd.f32 %v2858, %v2859
    %v2861 = vsel %vm1428, %v2759, 0.0
    %v2862 = vadd.f32 %v2860, %v2861
    %v2863 = vsel %vm1428, %v2760, 0.0
    %v2864 = vadd.f32 %v2862, %v2863
    %v2865 = vsel %vm1428, %v2761, 0.0
    %v2866 = vadd.f32 %v2864, %v2865
    %v2867 = vsel %vm1428, %v2762, 0.0
    %v2868 = vadd.f32 %v2866, %v2867
    %v2869 = vsel %vm1428, %v2763, 0.0
    %v2870 = vadd.f32 %v2868, %v2869
    %v2871 = vsel %vm1428, %v2764, 0.0
    %v2872 = vadd.f32 %v2870, %v2871
    %v2873 = vsel %vm1428, %v2765, 0.0
    %v2874 = vadd.f32 %v2872, %v2873
    %v2875 = vsel %vm1428, %v2766, 0.0
    %v2876 = vadd.f32 %v2874, %v2875
    %v2877 = vsel %vm1428, %v2767, 0.0
    %v2878 = vadd.f32 %v2876, %v2877
    %v2879 = vsel %vm1428, %v2768, 0.0
    %v2880 = vadd.f32 %v2878, %v2879
    %v2881 = vsel %vm1428, %v2769, 0.0
    %v2882 = vadd.f32 %v2880, %v2881
    %v2883 = vsel %vm1428, %v2770, 0.0
    %v2884 = vadd.f32 %v2882, %v2883
    %v2885 = vsel %vm1428, %v2771, 0.0
    %v2886 = vadd.f32 %v2884, %v2885
    %v2887 = vsel %vm1428, %v2772, 0.0
    %v2888 = vadd.f32 %v2886, %v2887
    %v2889 = vsel %vm1428, %v2773, 0.0
    %v2890 = vadd.f32 %v2888, %v2889
    %v2891 = vsel %vm1428, %v2774, 0.0
    %v2892 = vadd.f32 %v2890, %v2891
    %v2893 = vsel %vm1428, %v2775, 0.0
    %v2894 = vadd.f32 %v2892, %v2893
    %v2895 = vsel %vm1428, %v2776, 0.0
    %v2896 = vadd.f32 %v2894, %v2895
    %v2897 = vsel %vm1428, %v2777, 0.0
    %v2898 = vadd.f32 %v2896, %v2897
    %v2899 = vsel %vm1428, %v2778, 0.0
    %v2900 = vadd.f32 %v2898, %v2899
    %v2901 = vsel %vm1428, %v2779, 0.0
    %v2902 = vadd.f32 %v2900, %v2901
    %v2903 = vsel %vm1428, %v2780, 0.0
    %v2904 = vadd.f32 %v2902, %v2903
    %v2905 = vsel %vm1428, %v2781, 0.0
    %v2906 = vadd.f32 %v2904, %v2905
    %v2907 = vsel %vm1428, %v2782, 0.0
    %v2908 = vadd.f32 %v2906, %v2907
    %v2909 = vsel %vm1428, %v2783, 0.0
    %v2910 = vadd.f32 %v2908, %v2909
    %v2911 = vrot.slane %v2910, 4
    %v2912 = vadd.f32 %v2910, %v2911
    %v2913 = vrot.slane %v2912, 2
    %v2914 = vadd.f32 %v2912, %v2913
    %v2915 = vrot.slane %v2914, 1
    %v2916 = vadd.f32 %v2914, %v2915
    %2917 = vst.msk [vmem:[%s3] sm:$0xff] %vm1428, %v2719
    %2918 = vst.msk [vmem:[%s4] sm:$0xff] %vm1428, %v2916
  $region17: #{_lambda_.4} parent=0 // pred_fallthru
    _
  // Predicated region
  $region18: #{_lambda_.4} parent=0 // pred_check
    _
  $region19: #{_lambda_.4} parent=0 // pred_check_branch
    %2920 = sbr.rel (0) target = $region21
  $region20: #{_lambda_.4} parent=0 // pred_region
    _
  $region21: #{_lambda_.4} parent=0 // pred_fallthru
    _
  // Predicated region
  $region22: #{_lambda_.4} parent=0 // pred_check
    _
  $region23: #{_lambda_.4} parent=0 // pred_check_branch
    %2922 = sbr.rel (0) target = $region25
  $region24: #{_lambda_.4} parent=0 // pred_region
    _
  $region25: #{_lambda_.4} parent=0 // pred_fallthru
    _
  // Predicated region
  $region26: #{_lambda_.4} parent=0 // pred_check
    _
  $region27: #{_lambda_.4} parent=0 // pred_check_branch
    %2924 = sbr.rel (0) target = $region29
  $region28: #{_lambda_.4} parent=0 // pred_region
    _
  $region29: #{_lambda_.4} parent=0 // pred_fallthru
    _
  // Predicated region
  $region30: #{_lambda_.4} parent=0 // pred_check
    _
  $region31: #{_lambda_.4} parent=0 // pred_check_branch
    %2926 = sbr.rel (0) target = $region33
  $region32: #{_lambda_.4} parent=0 // pred_region
    _
  $region33: #{_lambda_.4} parent=0 // pred_fallthru
    _
  // Predicated region
  $region34: #{_lambda_.4} parent=0 // pred_check
    _
  $region35: #{_lambda_.4} parent=0 // pred_check_branch
    %2928 = sbr.rel (0) target = $region37
  $region36: #{_lambda_.4} parent=0 // pred_region
    _
  $region37: #{_lambda_.4} parent=0 // pred_fallthru
    _
  // Predicated region
  $region38: #{_lambda_.4} parent=0 // pred_check
    _
  $region39: #{_lambda_.4} parent=0 // pred_check_branch
    %2930 = sbr.rel (0) target = $region41
  $region40: #{_lambda_.4} parent=0 // pred_region
    _
  $region41: #{_lambda_.4} parent=0 // pred_fallthru
    _

</llo_original>
